<compile_context>
chip_gen: v5e
topology: v5e:2x2
jax: 0.10.0
libtpu: 0.0.40
codegen_flags: <defaults>
</compile_context>

<pallas_src>
import jax
import jax.numpy as jnp
import numpy as np
from jax import lax
from jax.experimental import pallas as pl
from jax.experimental.pallas import tpu as pltpu


_H = _W = 32      # spatial size required so the flatten is 16*5*5 = 400
_CIN = 3
_PAD = 384        # lane padding so every shifted window read stays in bounds


def _make_kernel(batch):
    """Builds the fused forward kernel for a given (static) batch size."""
    S = batch * _H * _W                                   # flattened lane length

    conv1_shifts = [32 * kh + kw for kh in range(5) for kw in range(5)]
    conv2_shifts = [64 * kh + 2 * kw for kh in range(5) for kw in range(5)]
    pool1_shifts = (1, 32, 33)                            # plus the 0 shift
    pool2_shifts = (2, 64, 66)
    # lane offset (within one batch image) of pool2 output (i, j), PyTorch order
    feat_offsets = [128 * i + 4 * j for i in range(5) for j in range(5)]

    def kernel(x_ref, w1_ref, b1_ref, w2_ref, b2_ref,
               wf1_ref, bf1_ref, wf2_ref, bf2_ref, wf3_ref, bf3_ref,
               o_ref, sc_ref):
        f32 = jnp.float32

        # Zero the staging scratch once.  Its padding lanes only ever feed
        # spatial positions that are never read back as valid outputs.
        sc_ref[...] = jnp.zeros_like(sc_ref)

        # ---------------- conv1 :  (8,200) @ (200,S) -----------------------
        xin = x_ref[...]                                            # (8, S+PAD)
        patches = jnp.concatenate([xin[:, d:d + S] for d in conv1_shifts],
                                  axis=0)                           # (200, S)
        y1 = jnp.dot(w1_ref[...], patches,
                     preferred_element_type=f32) + b1_ref[...]      # (8, S)

        # ---------------- maxpool1 (2x2, stride 2) --------------------------
        sc_ref[0:8, 0:S] = y1
        buf = sc_ref[0:8, :]                                        # (8, S+PAD)
        p1 = buf[:, 0:S]
        for d in pool1_shifts:
            p1 = jnp.maximum(p1, buf[:, d:d + S])                   # (8, S)
        # valid pooled values now live at lane stride (64, 2) on the same grid

        # ---------------- conv2 :  (16,200) @ (200,S) -----------------------
        sc_ref[0:8, 0:S] = p1
        buf = sc_ref[0:8, :]
        patches = jnp.concatenate([buf[:, d:d + S] for d in conv2_shifts],
                                  axis=0)                           # (200, S)
        y2 = jnp.dot(w2_ref[...], patches,
                     preferred_element_type=f32) + b2_ref[...]      # (16, S)

        # ---------------- maxpool2 ------------------------------------------
        sc_ref[:, 0:S] = y2
        buf = sc_ref[...]                                           # (16, S+PAD)
        p2 = buf[:, 0:S]
        for d in pool2_shifts:
            p2 = jnp.maximum(p2, buf[:, d:d + S])                   # (16, S)
        # valid pooled values live at lanes b*1024 + 128*i + 4*j, i,j in [0,5)

        # -------- flatten (PyTorch NCHW order) + 3 Linear layers ------------
        # Feature columns are gathered as width-8 windows whose column 0 is the
        # real feature (avoids degenerate N=1 matmuls); the wrapper keeps only
        # column 0 of the output.
        outs = []
        for b in range(batch):
            base = b * (_H * _W)
            cols = [p2[:, base + u: base + u + 8] for u in feat_offsets]
            feat = jnp.concatenate(cols, axis=0)                    # (400, 8)
            h = jnp.dot(wf1_ref[...], feat, preferred_element_type=f32) + bf1_ref[...]
            h = jnp.dot(wf2_ref[...], h, preferred_element_type=f32) + bf2_ref[...]
            h = jnp.dot(wf3_ref[...], h, preferred_element_type=f32) + bf3_ref[...]
            outs.append(h)                                          # (16, 8)
        o_ref[...] = jnp.concatenate(outs, axis=0)                  # (16*B, 8)

    return kernel, S


# ----------------------------------------------------------------------------
# One-time weight packing (kept OUTSIDE the jitted forward)
# ----------------------------------------------------------------------------
def pack_params(p):
    # conv1 (6,3,5,5) -> (8, 200); column (kh*5+kw)*8 + ci, zero padded co/ci
    w1 = jnp.transpose(p["w_conv1"], (0, 2, 3, 1))                  # (6,5,5,3)
    w1 = jnp.pad(w1, ((0, 2), (0, 0), (0, 0), (0, 5))).reshape(8, 200)
    b1 = jnp.pad(p["b_conv1"], (0, 2)).reshape(8, 1)
    # conv2 (16,6,5,5) -> (16, 200)
    w2 = jnp.transpose(p["w_conv2"], (0, 2, 3, 1))                  # (16,5,5,6)
    w2 = jnp.pad(w2, ((0, 0), (0, 0), (0, 0), (0, 2))).reshape(16, 200)
    b2 = p["b_conv2"].reshape(16, 1)
    # fc1: reorder columns from PyTorch flatten order (c*25 + p) to the
    # kernel's gather order (p*16 + c)
    wf1 = p["w_fc1"].reshape(120, 16, 25).transpose(0, 2, 1).reshape(120, 400)
    bf1 = p["b_fc1"].reshape(120, 1)
    wf2 = p["w_fc2"]                                                # (84, 120)
    bf2 = p["b_fc2"].reshape(84, 1)
    # fc3 padded 10 -> 16 rows (sliced off in the wrapper)
    wf3 = jnp.pad(p["w_fc3"], ((0, 6), (0, 0)))                     # (16, 84)
    bf3 = jnp.pad(p["b_fc3"], (0, 6)).reshape(16, 1)
    return (w1, b1, w2, b2, wf1, bf1, wf2, bf2, wf3, bf3)


# ----------------------------------------------------------------------------
# Forward
# ----------------------------------------------------------------------------
@jax.jit
def forward_pallas(x_nchw, packed):
    B, C, H, W = x_nchw.shape
    assert (C, H, W) == (_CIN, _H, _W), "this LeNet expects 3x32x32 inputs"
    kernel, S = _make_kernel(B)

    # Only input glue: channels-first flatten + zero pad (tiny, one-shot).
    x2 = jnp.transpose(x_nchw, (1, 0, 2, 3)).reshape(C, S)
    x2 = jnp.pad(x2, ((0, 8 - C), (0, _PAD)))                       # (8, S+PAD)

    vmem = pl.BlockSpec(memory_space=pltpu.MemorySpace.VMEM)
    out = pl.pallas_call(
        kernel,
        out_shape=jax.ShapeDtypeStruct((16 * B, 8), jnp.float32),
        in_specs=[vmem] * 11,
        out_specs=vmem,
        scratch_shapes=[pltpu.VMEM((16, S + _PAD), jnp.float32)],
    )(x2, *packed)
    # column 0 holds the real result; rows 10..15 of each batch block are the
    # zero padding of the last Linear layer.
    return out[:, 0].reshape(B, 16)[:, :10]


# ----------------------------------------------------------------------------
# Pure-JAX reference (matches the PyTorch module) + params
# ----------------------------------------------------------------------------
def init_params(key):
    ks = jax.random.split(key, 10)
    n = jax.random.normal
    return dict(
        w_conv1=0.10 * n(ks[0], (6, 3, 5, 5), jnp.float32),
        b_conv1=0.10 * n(ks[1], (6,), jnp.float32),
        w_conv2=0.05 * n(ks[2], (16, 6, 5, 5), jnp.float32),
        b_conv2=0.10 * n(ks[3], (16,), jnp.float32),
        w_fc1=0.05 * n(ks[4], (120, 400), jnp.float32),
        b_fc1=0.10 * n(ks[5], (120,), jnp.float32),
        w_fc2=0.05 * n(ks[6], (84, 120), jnp.float32),
        b_fc2=0.10 * n(ks[7], (84,), jnp.float32),
        w_fc3=0.05 * n(ks[8], (10, 84), jnp.float32),
        b_fc3=0.10 * n(ks[9], (10,), jnp.float32),
    )


def forward_reference(x_nchw, params):
    dn = ("NCHW", "OIHW", "NCHW")
    y = lax.conv_general_dilated(x_nchw, params["w_conv1"], (1, 1), "VALID",
                                 dimension_numbers=dn)
    y = y + params["b_conv1"][None, :, None, None]
    y = lax.reduce_window(y, -jnp.inf, lax.max, (1, 1, 2, 2), (1, 1, 2, 2), "VALID")
    y = lax.conv_general_dilated(y, params["w_conv2"], (1, 1), "VALID",
                                 dimension_numbers=dn)
    y = y + params["b_conv2"][None, :, None, None]
    y = lax.reduce_window(y, -jnp.inf, lax.max, (1, 1, 2, 2), (1, 1, 2, 2), "VALID")
    y = y.reshape(y.shape[0], -1)
    y = y @ params["w_fc1"].T + params["b_fc1"]
    y = y @ params["w_fc2"].T + params["b_fc2"]
    y = y @ params["w_fc3"].T + params["b_fc3"]
    return y


if __name__ == "__main__":
    key = jax.random.PRNGKey(0)
    kx, kp = jax.random.split(key)
    # Input must be 3x32x32 so the flattened feature size is 16*5*5 = 400.
    x = jax.random.normal(kx, (2, 3, 32, 32), jnp.float32)
    params = init_params(kp)
    packed = pack_params(params)          # one-time weight packing

    out = jax.block_until_ready(forward_pallas(x, packed))
    assert out.shape == (2, 10) and out.dtype == jnp.float32

    ref = jax.block_until_ready(forward_reference(x, params))
    np.testing.assert_allclose(np.asarray(out), np.asarray(ref), rtol=2e-2, atol=2e-2)

    print("KERNEL_OK")
</pallas_src>

<mosaic_0001>
module attributes {stable_mosaic.version = 11 : i64} {
  func.func @kernel(%arg0: memref<8x2432xf32, #tpu.memory_space<vmem>>, %arg1: memref<8x200xf32, #tpu.memory_space<vmem>>, %arg2: memref<8x1xf32, #tpu.memory_space<vmem>>, %arg3: memref<16x200xf32, #tpu.memory_space<vmem>>, %arg4: memref<16x1xf32, #tpu.memory_space<vmem>>, %arg5: memref<120x400xf32, #tpu.memory_space<vmem>>, %arg6: memref<120x1xf32, #tpu.memory_space<vmem>>, %arg7: memref<84x120xf32, #tpu.memory_space<vmem>>, %arg8: memref<84x1xf32, #tpu.memory_space<vmem>>, %arg9: memref<16x84xf32, #tpu.memory_space<vmem>>, %arg10: memref<16x1xf32, #tpu.memory_space<vmem>>, %arg11: memref<32x8xf32, #tpu.memory_space<vmem>>, %arg12: memref<16x2432xf32, #tpu.memory_space<vmem>>) attributes {dimension_semantics = [], scalar_prefetch = 0 : i64, scratch_operands = 1 : i64, tpu.core_type = #tpu.core_type<tc>} {
    %cst = arith.constant 0.000000e+00 : f32
    %0 = vector.broadcast %cst : f32 to vector<16x2432xf32>
    %c0 = arith.constant 0 : index
    %c0_0 = arith.constant 0 : index
    %1 = vector.load %arg12[%c0, %c0_0] : memref<16x2432xf32, #tpu.memory_space<vmem>>, vector<16x2432xf32>
    tpu.vector_store %arg12[%c0, %c0_0], %0 {strides = array<i32>} : memref<16x2432xf32, #tpu.memory_space<vmem>>, vector<16x2432xf32>,
    %c0_1 = arith.constant 0 : index
    %c0_2 = arith.constant 0 : index
    %2 = vector.load %arg0[%c0_1, %c0_2] : memref<8x2432xf32, #tpu.memory_space<vmem>>, vector<8x2432xf32>
    %3 = vector.extract_strided_slice %2 {offsets = [0, 0], sizes = [8, 2048], strides = [1, 1]} : vector<8x2432xf32> to vector<8x2048xf32>
    %4 = vector.extract_strided_slice %2 {offsets = [0, 1], sizes = [8, 2048], strides = [1, 1]} : vector<8x2432xf32> to vector<8x2048xf32>
    %5 = vector.extract_strided_slice %2 {offsets = [0, 2], sizes = [8, 2048], strides = [1, 1]} : vector<8x2432xf32> to vector<8x2048xf32>
    %6 = vector.extract_strided_slice %2 {offsets = [0, 3], sizes = [8, 2048], strides = [1, 1]} : vector<8x2432xf32> to vector<8x2048xf32>
    %7 = vector.extract_strided_slice %2 {offsets = [0, 4], sizes = [8, 2048], strides = [1, 1]} : vector<8x2432xf32> to vector<8x2048xf32>
    %8 = vector.extract_strided_slice %2 {offsets = [0, 32], sizes = [8, 2048], strides = [1, 1]} : vector<8x2432xf32> to vector<8x2048xf32>
    %9 = vector.extract_strided_slice %2 {offsets = [0, 33], sizes = [8, 2048], strides = [1, 1]} : vector<8x2432xf32> to vector<8x2048xf32>
    %10 = vector.extract_strided_slice %2 {offsets = [0, 34], sizes = [8, 2048], strides = [1, 1]} : vector<8x2432xf32> to vector<8x2048xf32>
    %11 = vector.extract_strided_slice %2 {offsets = [0, 35], sizes = [8, 2048], strides = [1, 1]} : vector<8x2432xf32> to vector<8x2048xf32>
    %12 = vector.extract_strided_slice %2 {offsets = [0, 36], sizes = [8, 2048], strides = [1, 1]} : vector<8x2432xf32> to vector<8x2048xf32>
    %13 = vector.extract_strided_slice %2 {offsets = [0, 64], sizes = [8, 2048], strides = [1, 1]} : vector<8x2432xf32> to vector<8x2048xf32>
    %14 = vector.extract_strided_slice %2 {offsets = [0, 65], sizes = [8, 2048], strides = [1, 1]} : vector<8x2432xf32> to vector<8x2048xf32>
    %15 = vector.extract_strided_slice %2 {offsets = [0, 66], sizes = [8, 2048], strides = [1, 1]} : vector<8x2432xf32> to vector<8x2048xf32>
    %16 = vector.extract_strided_slice %2 {offsets = [0, 67], sizes = [8, 2048], strides = [1, 1]} : vector<8x2432xf32> to vector<8x2048xf32>
    %17 = vector.extract_strided_slice %2 {offsets = [0, 68], sizes = [8, 2048], strides = [1, 1]} : vector<8x2432xf32> to vector<8x2048xf32>
    %18 = vector.extract_strided_slice %2 {offsets = [0, 96], sizes = [8, 2048], strides = [1, 1]} : vector<8x2432xf32> to vector<8x2048xf32>
    %19 = vector.extract_strided_slice %2 {offsets = [0, 97], sizes = [8, 2048], strides = [1, 1]} : vector<8x2432xf32> to vector<8x2048xf32>
    %20 = vector.extract_strided_slice %2 {offsets = [0, 98], sizes = [8, 2048], strides = [1, 1]} : vector<8x2432xf32> to vector<8x2048xf32>
    %21 = vector.extract_strided_slice %2 {offsets = [0, 99], sizes = [8, 2048], strides = [1, 1]} : vector<8x2432xf32> to vector<8x2048xf32>
    %22 = vector.extract_strided_slice %2 {offsets = [0, 100], sizes = [8, 2048], strides = [1, 1]} : vector<8x2432xf32> to vector<8x2048xf32>
    %23 = vector.extract_strided_slice %2 {offsets = [0, 128], sizes = [8, 2048], strides = [1, 1]} : vector<8x2432xf32> to vector<8x2048xf32>
    %24 = vector.extract_strided_slice %2 {offsets = [0, 129], sizes = [8, 2048], strides = [1, 1]} : vector<8x2432xf32> to vector<8x2048xf32>
    %25 = vector.extract_strided_slice %2 {offsets = [0, 130], sizes = [8, 2048], strides = [1, 1]} : vector<8x2432xf32> to vector<8x2048xf32>
    %26 = vector.extract_strided_slice %2 {offsets = [0, 131], sizes = [8, 2048], strides = [1, 1]} : vector<8x2432xf32> to vector<8x2048xf32>
    %27 = vector.extract_strided_slice %2 {offsets = [0, 132], sizes = [8, 2048], strides = [1, 1]} : vector<8x2432xf32> to vector<8x2048xf32>
    %28 = tpu.concatenate %3, %4, %5, %6, %7, %8, %9, %10, %11, %12, %13, %14, %15, %16, %17, %18 in 0 : vector<8x2048xf32>, vector<8x2048xf32>, vector<8x2048xf32>, vector<8x2048xf32>, vector<8x2048xf32>, vector<8x2048xf32>, vector<8x2048xf32>, vector<8x2048xf32>, vector<8x2048xf32>, vector<8x2048xf32>, vector<8x2048xf32>, vector<8x2048xf32>, vector<8x2048xf32>, vector<8x2048xf32>, vector<8x2048xf32>, vector<8x2048xf32> -> vector<128x2048xf32>
    %29 = tpu.concatenate %19, %20, %21, %22, %23, %24, %25, %26, %27 in 0 : vector<8x2048xf32>, vector<8x2048xf32>, vector<8x2048xf32>, vector<8x2048xf32>, vector<8x2048xf32>, vector<8x2048xf32>, vector<8x2048xf32>, vector<8x2048xf32>, vector<8x2048xf32> -> vector<72x2048xf32>
    %30 = tpu.concatenate %28, %29 in 0 : vector<128x2048xf32>, vector<72x2048xf32> -> vector<200x2048xf32>
    %c0_3 = arith.constant 0 : index
    %c0_4 = arith.constant 0 : index
    %31 = vector.load %arg1[%c0_3, %c0_4] : memref<8x200xf32, #tpu.memory_space<vmem>>, vector<8x200xf32>
    %cst_5 = arith.constant dense<0.000000e+00> : vector<8x2048xf32>
    %32 = tpu.matmul %31, %30, %cst_5 {dimension_numbers = #tpu.dot_dimension_numbers<[1], [0], [0], [1], [0, 0, 1, 1], [], []>} : vector<8x200xf32>, vector<200x2048xf32>, vector<8x2048xf32> -> vector<8x2048xf32>
    %c0_6 = arith.constant 0 : index
    %c0_7 = arith.constant 0 : index
    %33 = vector.load %arg2[%c0_6, %c0_7] : memref<8x1xf32, #tpu.memory_space<vmem>>, vector<8x1xf32>
    %34 = vector.broadcast %33 : vector<8x1xf32> to vector<8x2048xf32>
    %35 = arith.addf %32, %34 : vector<8x2048xf32>
    %c0_8 = arith.constant 0 : index
    %c0_9 = arith.constant 0 : index
    %36 = vector.load %arg12[%c0_8, %c0_9] : memref<16x2432xf32, #tpu.memory_space<vmem>>, vector<8x2048xf32>
    tpu.vector_store %arg12[%c0_8, %c0_9], %35 {strides = array<i32>} : memref<16x2432xf32, #tpu.memory_space<vmem>>, vector<8x2048xf32>,
    %c0_10 = arith.constant 0 : index
    %c0_11 = arith.constant 0 : index
    %37 = vector.load %arg12[%c0_10, %c0_11] : memref<16x2432xf32, #tpu.memory_space<vmem>>, vector<8x2432xf32>
    %38 = vector.extract_strided_slice %37 {offsets = [0, 0], sizes = [8, 2048], strides = [1, 1]} : vector<8x2432xf32> to vector<8x2048xf32>
    %39 = vector.extract_strided_slice %37 {offsets = [0, 1], sizes = [8, 2048], strides = [1, 1]} : vector<8x2432xf32> to vector<8x2048xf32>
    %40 = arith.maximumf %38, %39 : vector<8x2048xf32>
    %41 = vector.extract_strided_slice %37 {offsets = [0, 32], sizes = [8, 2048], strides = [1, 1]} : vector<8x2432xf32> to vector<8x2048xf32>
    %42 = arith.maximumf %40, %41 : vector<8x2048xf32>
    %43 = vector.extract_strided_slice %37 {offsets = [0, 33], sizes = [8, 2048], strides = [1, 1]} : vector<8x2432xf32> to vector<8x2048xf32>
    %44 = arith.maximumf %42, %43 : vector<8x2048xf32>
    %c0_12 = arith.constant 0 : index
    %c0_13 = arith.constant 0 : index
    %45 = vector.load %arg12[%c0_12, %c0_13] : memref<16x2432xf32, #tpu.memory_space<vmem>>, vector<8x2048xf32>
    tpu.vector_store %arg12[%c0_12, %c0_13], %44 {strides = array<i32>} : memref<16x2432xf32, #tpu.memory_space<vmem>>, vector<8x2048xf32>,
    %c0_14 = arith.constant 0 : index
    %c0_15 = arith.constant 0 : index
    %46 = vector.load %arg12[%c0_14, %c0_15] : memref<16x2432xf32, #tpu.memory_space<vmem>>, vector<8x2432xf32>
    %47 = vector.extract_strided_slice %46 {offsets = [0, 0], sizes = [8, 2048], strides = [1, 1]} : vector<8x2432xf32> to vector<8x2048xf32>
    %48 = vector.extract_strided_slice %46 {offsets = [0, 2], sizes = [8, 2048], strides = [1, 1]} : vector<8x2432xf32> to vector<8x2048xf32>
    %49 = vector.extract_strided_slice %46 {offsets = [0, 4], sizes = [8, 2048], strides = [1, 1]} : vector<8x2432xf32> to vector<8x2048xf32>
    %50 = vector.extract_strided_slice %46 {offsets = [0, 6], sizes = [8, 2048], strides = [1, 1]} : vector<8x2432xf32> to vector<8x2048xf32>
    %51 = vector.extract_strided_slice %46 {offsets = [0, 8], sizes = [8, 2048], strides = [1, 1]} : vector<8x2432xf32> to vector<8x2048xf32>
    %52 = vector.extract_strided_slice %46 {offsets = [0, 64], sizes = [8, 2048], strides = [1, 1]} : vector<8x2432xf32> to vector<8x2048xf32>
    %53 = vector.extract_strided_slice %46 {offsets = [0, 66], sizes = [8, 2048], strides = [1, 1]} : vector<8x2432xf32> to vector<8x2048xf32>
    %54 = vector.extract_strided_slice %46 {offsets = [0, 68], sizes = [8, 2048], strides = [1, 1]} : vector<8x2432xf32> to vector<8x2048xf32>
    %55 = vector.extract_strided_slice %46 {offsets = [0, 70], sizes = [8, 2048], strides = [1, 1]} : vector<8x2432xf32> to vector<8x2048xf32>
    %56 = vector.extract_strided_slice %46 {offsets = [0, 72], sizes = [8, 2048], strides = [1, 1]} : vector<8x2432xf32> to vector<8x2048xf32>
    %57 = vector.extract_strided_slice %46 {offsets = [0, 128], sizes = [8, 2048], strides = [1, 1]} : vector<8x2432xf32> to vector<8x2048xf32>
    %58 = vector.extract_strided_slice %46 {offsets = [0, 130], sizes = [8, 2048], strides = [1, 1]} : vector<8x2432xf32> to vector<8x2048xf32>
    %59 = vector.extract_strided_slice %46 {offsets = [0, 132], sizes = [8, 2048], strides = [1, 1]} : vector<8x2432xf32> to vector<8x2048xf32>
    %60 = vector.extract_strided_slice %46 {offsets = [0, 134], sizes = [8, 2048], strides = [1, 1]} : vector<8x2432xf32> to vector<8x2048xf32>
    %61 = vector.extract_strided_slice %46 {offsets = [0, 136], sizes = [8, 2048], strides = [1, 1]} : vector<8x2432xf32> to vector<8x2048xf32>
    %62 = vector.extract_strided_slice %46 {offsets = [0, 192], sizes = [8, 2048], strides = [1, 1]} : vector<8x2432xf32> to vector<8x2048xf32>
    %63 = vector.extract_strided_slice %46 {offsets = [0, 194], sizes = [8, 2048], strides = [1, 1]} : vector<8x2432xf32> to vector<8x2048xf32>
    %64 = vector.extract_strided_slice %46 {offsets = [0, 196], sizes = [8, 2048], strides = [1, 1]} : vector<8x2432xf32> to vector<8x2048xf32>
    %65 = vector.extract_strided_slice %46 {offsets = [0, 198], sizes = [8, 2048], strides = [1, 1]} : vector<8x2432xf32> to vector<8x2048xf32>
    %66 = vector.extract_strided_slice %46 {offsets = [0, 200], sizes = [8, 2048], strides = [1, 1]} : vector<8x2432xf32> to vector<8x2048xf32>
    %67 = vector.extract_strided_slice %46 {offsets = [0, 256], sizes = [8, 2048], strides = [1, 1]} : vector<8x2432xf32> to vector<8x2048xf32>
    %68 = vector.extract_strided_slice %46 {offsets = [0, 258], sizes = [8, 2048], strides = [1, 1]} : vector<8x2432xf32> to vector<8x2048xf32>
    %69 = vector.extract_strided_slice %46 {offsets = [0, 260], sizes = [8, 2048], strides = [1, 1]} : vector<8x2432xf32> to vector<8x2048xf32>
    %70 = vector.extract_strided_slice %46 {offsets = [0, 262], sizes = [8, 2048], strides = [1, 1]} : vector<8x2432xf32> to vector<8x2048xf32>
    %71 = vector.extract_strided_slice %46 {offsets = [0, 264], sizes = [8, 2048], strides = [1, 1]} : vector<8x2432xf32> to vector<8x2048xf32>
    %72 = tpu.concatenate %47, %48, %49, %50, %51, %52, %53, %54, %55, %56, %57, %58, %59, %60, %61, %62 in 0 : vector<8x2048xf32>, vector<8x2048xf32>, vector<8x2048xf32>, vector<8x2048xf32>, vector<8x2048xf32>, vector<8x2048xf32>, vector<8x2048xf32>, vector<8x2048xf32>, vector<8x2048xf32>, vector<8x2048xf32>, vector<8x2048xf32>, vector<8x2048xf32>, vector<8x2048xf32>, vector<8x2048xf32>, vector<8x2048xf32>, vector<8x2048xf32> -> vector<128x2048xf32>
    %73 = tpu.concatenate %63, %64, %65, %66, %67, %68, %69, %70, %71 in 0 : vector<8x2048xf32>, vector<8x2048xf32>, vector<8x2048xf32>, vector<8x2048xf32>, vector<8x2048xf32>, vector<8x2048xf32>, vector<8x2048xf32>, vector<8x2048xf32>, vector<8x2048xf32> -> vector<72x2048xf32>
    %74 = tpu.concatenate %72, %73 in 0 : vector<128x2048xf32>, vector<72x2048xf32> -> vector<200x2048xf32>
    %c0_16 = arith.constant 0 : index
    %c0_17 = arith.constant 0 : index
    %75 = vector.load %arg3[%c0_16, %c0_17] : memref<16x200xf32, #tpu.memory_space<vmem>>, vector<16x200xf32>
    %cst_18 = arith.constant dense<0.000000e+00> : vector<16x2048xf32>
    %76 = tpu.matmul %75, %74, %cst_18 {dimension_numbers = #tpu.dot_dimension_numbers<[1], [0], [0], [1], [0, 0, 1, 1], [], []>} : vector<16x200xf32>, vector<200x2048xf32>, vector<16x2048xf32> -> vector<16x2048xf32>
    %c0_19 = arith.constant 0 : index
    %c0_20 = arith.constant 0 : index
    %77 = vector.load %arg4[%c0_19, %c0_20] : memref<16x1xf32, #tpu.memory_space<vmem>>, vector<16x1xf32>
    %78 = vector.broadcast %77 : vector<16x1xf32> to vector<16x2048xf32>
    %79 = arith.addf %76, %78 : vector<16x2048xf32>
    %c0_21 = arith.constant 0 : index
    %c0_22 = arith.constant 0 : index
    %80 = vector.load %arg12[%c0_21, %c0_22] : memref<16x2432xf32, #tpu.memory_space<vmem>>, vector<16x2048xf32>
    tpu.vector_store %arg12[%c0_21, %c0_22], %79 {strides = array<i32>} : memref<16x2432xf32, #tpu.memory_space<vmem>>, vector<16x2048xf32>,
    %c0_23 = arith.constant 0 : index
    %c0_24 = arith.constant 0 : index
    %81 = vector.load %arg12[%c0_23, %c0_24] : memref<16x2432xf32, #tpu.memory_space<vmem>>, vector<16x2432xf32>
    %82 = vector.extract_strided_slice %81 {offsets = [0, 0], sizes = [16, 2048], strides = [1, 1]} : vector<16x2432xf32> to vector<16x2048xf32>
    %83 = vector.extract_strided_slice %81 {offsets = [0, 2], sizes = [16, 2048], strides = [1, 1]} : vector<16x2432xf32> to vector<16x2048xf32>
    %84 = arith.maximumf %82, %83 : vector<16x2048xf32>
    %85 = vector.extract_strided_slice %81 {offsets = [0, 64], sizes = [16, 2048], strides = [1, 1]} : vector<16x2432xf32> to vector<16x2048xf32>
    %86 = arith.maximumf %84, %85 : vector<16x2048xf32>
    %87 = vector.extract_strided_slice %81 {offsets = [0, 66], sizes = [16, 2048], strides = [1, 1]} : vector<16x2432xf32> to vector<16x2048xf32>
    %88 = arith.maximumf %86, %87 : vector<16x2048xf32>
    %89 = vector.extract_strided_slice %88 {offsets = [0, 0], sizes = [16, 8], strides = [1, 1]} : vector<16x2048xf32> to vector<16x8xf32>
    %90 = vector.extract_strided_slice %88 {offsets = [0, 4], sizes = [16, 8], strides = [1, 1]} : vector<16x2048xf32> to vector<16x8xf32>
    %91 = vector.extract_strided_slice %88 {offsets = [0, 8], sizes = [16, 8], strides = [1, 1]} : vector<16x2048xf32> to vector<16x8xf32>
    %92 = vector.extract_strided_slice %88 {offsets = [0, 12], sizes = [16, 8], strides = [1, 1]} : vector<16x2048xf32> to vector<16x8xf32>
    %93 = vector.extract_strided_slice %88 {offsets = [0, 16], sizes = [16, 8], strides = [1, 1]} : vector<16x2048xf32> to vector<16x8xf32>
    %94 = vector.extract_strided_slice %88 {offsets = [0, 128], sizes = [16, 8], strides = [1, 1]} : vector<16x2048xf32> to vector<16x8xf32>
    %95 = vector.extract_strided_slice %88 {offsets = [0, 132], sizes = [16, 8], strides = [1, 1]} : vector<16x2048xf32> to vector<16x8xf32>
    %96 = vector.extract_strided_slice %88 {offsets = [0, 136], sizes = [16, 8], strides = [1, 1]} : vector<16x2048xf32> to vector<16x8xf32>
    %97 = vector.extract_strided_slice %88 {offsets = [0, 140], sizes = [16, 8], strides = [1, 1]} : vector<16x2048xf32> to vector<16x8xf32>
    %98 = vector.extract_strided_slice %88 {offsets = [0, 144], sizes = [16, 8], strides = [1, 1]} : vector<16x2048xf32> to vector<16x8xf32>
    %99 = vector.extract_strided_slice %88 {offsets = [0, 256], sizes = [16, 8], strides = [1, 1]} : vector<16x2048xf32> to vector<16x8xf32>
    %100 = vector.extract_strided_slice %88 {offsets = [0, 260], sizes = [16, 8], strides = [1, 1]} : vector<16x2048xf32> to vector<16x8xf32>
    %101 = vector.extract_strided_slice %88 {offsets = [0, 264], sizes = [16, 8], strides = [1, 1]} : vector<16x2048xf32> to vector<16x8xf32>
    %102 = vector.extract_strided_slice %88 {offsets = [0, 268], sizes = [16, 8], strides = [1, 1]} : vector<16x2048xf32> to vector<16x8xf32>
    %103 = vector.extract_strided_slice %88 {offsets = [0, 272], sizes = [16, 8], strides = [1, 1]} : vector<16x2048xf32> to vector<16x8xf32>
    %104 = vector.extract_strided_slice %88 {offsets = [0, 384], sizes = [16, 8], strides = [1, 1]} : vector<16x2048xf32> to vector<16x8xf32>
    %105 = vector.extract_strided_slice %88 {offsets = [0, 388], sizes = [16, 8], strides = [1, 1]} : vector<16x2048xf32> to vector<16x8xf32>
    %106 = vector.extract_strided_slice %88 {offsets = [0, 392], sizes = [16, 8], strides = [1, 1]} : vector<16x2048xf32> to vector<16x8xf32>
    %107 = vector.extract_strided_slice %88 {offsets = [0, 396], sizes = [16, 8], strides = [1, 1]} : vector<16x2048xf32> to vector<16x8xf32>
    %108 = vector.extract_strided_slice %88 {offsets = [0, 400], sizes = [16, 8], strides = [1, 1]} : vector<16x2048xf32> to vector<16x8xf32>
    %109 = vector.extract_strided_slice %88 {offsets = [0, 512], sizes = [16, 8], strides = [1, 1]} : vector<16x2048xf32> to vector<16x8xf32>
    %110 = vector.extract_strided_slice %88 {offsets = [0, 516], sizes = [16, 8], strides = [1, 1]} : vector<16x2048xf32> to vector<16x8xf32>
    %111 = vector.extract_strided_slice %88 {offsets = [0, 520], sizes = [16, 8], strides = [1, 1]} : vector<16x2048xf32> to vector<16x8xf32>
    %112 = vector.extract_strided_slice %88 {offsets = [0, 524], sizes = [16, 8], strides = [1, 1]} : vector<16x2048xf32> to vector<16x8xf32>
    %113 = vector.extract_strided_slice %88 {offsets = [0, 528], sizes = [16, 8], strides = [1, 1]} : vector<16x2048xf32> to vector<16x8xf32>
    %114 = tpu.concatenate %89, %90, %91, %92, %93, %94, %95, %96, %97, %98, %99, %100, %101, %102, %103, %104 in 0 : vector<16x8xf32>, vector<16x8xf32>, vector<16x8xf32>, vector<16x8xf32>, vector<16x8xf32>, vector<16x8xf32>, vector<16x8xf32>, vector<16x8xf32>, vector<16x8xf32>, vector<16x8xf32>, vector<16x8xf32>, vector<16x8xf32>, vector<16x8xf32>, vector<16x8xf32>, vector<16x8xf32>, vector<16x8xf32> -> vector<256x8xf32>
    %115 = tpu.concatenate %105, %106, %107, %108, %109, %110, %111, %112, %113 in 0 : vector<16x8xf32>, vector<16x8xf32>, vector<16x8xf32>, vector<16x8xf32>, vector<16x8xf32>, vector<16x8xf32>, vector<16x8xf32>, vector<16x8xf32>, vector<16x8xf32> -> vector<144x8xf32>
    %116 = tpu.concatenate %114, %115 in 0 : vector<256x8xf32>, vector<144x8xf32> -> vector<400x8xf32>
    %c0_25 = arith.constant 0 : index
    %c0_26 = arith.constant 0 : index
    %117 = vector.load %arg5[%c0_25, %c0_26] : memref<120x400xf32, #tpu.memory_space<vmem>>, vector<120x400xf32>
    %cst_27 = arith.constant dense<0.000000e+00> : vector<120x8xf32>
    %118 = tpu.matmul %117, %116, %cst_27 {dimension_numbers = #tpu.dot_dimension_numbers<[1], [0], [0], [1], [0, 0, 1, 1], [], []>} : vector<120x400xf32>, vector<400x8xf32>, vector<120x8xf32> -> vector<120x8xf32>
    %c0_28 = arith.constant 0 : index
    %c0_29 = arith.constant 0 : index
    %119 = vector.load %arg6[%c0_28, %c0_29] : memref<120x1xf32, #tpu.memory_space<vmem>>, vector<120x1xf32>
    %120 = vector.broadcast %119 : vector<120x1xf32> to vector<120x8xf32>
    %121 = arith.addf %118, %120 : vector<120x8xf32>
    %c0_30 = arith.constant 0 : index
    %c0_31 = arith.constant 0 : index
    %122 = vector.load %arg7[%c0_30, %c0_31] : memref<84x120xf32, #tpu.memory_space<vmem>>, vector<84x120xf32>
    %cst_32 = arith.constant dense<0.000000e+00> : vector<84x8xf32>
    %123 = tpu.matmul %122, %121, %cst_32 {dimension_numbers = #tpu.dot_dimension_numbers<[1], [0], [0], [1], [0, 0, 1, 1], [], []>} : vector<84x120xf32>, vector<120x8xf32>, vector<84x8xf32> -> vector<84x8xf32>
    %c0_33 = arith.constant 0 : index
    %c0_34 = arith.constant 0 : index
    %124 = vector.load %arg8[%c0_33, %c0_34] : memref<84x1xf32, #tpu.memory_space<vmem>>, vector<84x1xf32>
    %125 = vector.broadcast %124 : vector<84x1xf32> to vector<84x8xf32>
    %126 = arith.addf %123, %125 : vector<84x8xf32>
    %c0_35 = arith.constant 0 : index
    %c0_36 = arith.constant 0 : index
    %127 = vector.load %arg9[%c0_35, %c0_36] : memref<16x84xf32, #tpu.memory_space<vmem>>, vector<16x84xf32>
    %cst_37 = arith.constant dense<0.000000e+00> : vector<16x8xf32>
    %128 = tpu.matmul %127, %126, %cst_37 {dimension_numbers = #tpu.dot_dimension_numbers<[1], [0], [0], [1], [0, 0, 1, 1], [], []>} : vector<16x84xf32>, vector<84x8xf32>, vector<16x8xf32> -> vector<16x8xf32>
    %c0_38 = arith.constant 0 : index
    %c0_39 = arith.constant 0 : index
    %129 = vector.load %arg10[%c0_38, %c0_39] : memref<16x1xf32, #tpu.memory_space<vmem>>, vector<16x1xf32>
    %130 = vector.broadcast %129 : vector<16x1xf32> to vector<16x8xf32>
    %131 = arith.addf %128, %130 : vector<16x8xf32>
    %132 = vector.extract_strided_slice %88 {offsets = [0, 1024], sizes = [16, 8], strides = [1, 1]} : vector<16x2048xf32> to vector<16x8xf32>
    %133 = vector.extract_strided_slice %88 {offsets = [0, 1028], sizes = [16, 8], strides = [1, 1]} : vector<16x2048xf32> to vector<16x8xf32>
    %134 = vector.extract_strided_slice %88 {offsets = [0, 1032], sizes = [16, 8], strides = [1, 1]} : vector<16x2048xf32> to vector<16x8xf32>
    %135 = vector.extract_strided_slice %88 {offsets = [0, 1036], sizes = [16, 8], strides = [1, 1]} : vector<16x2048xf32> to vector<16x8xf32>
    %136 = vector.extract_strided_slice %88 {offsets = [0, 1040], sizes = [16, 8], strides = [1, 1]} : vector<16x2048xf32> to vector<16x8xf32>
    %137 = vector.extract_strided_slice %88 {offsets = [0, 1152], sizes = [16, 8], strides = [1, 1]} : vector<16x2048xf32> to vector<16x8xf32>
    %138 = vector.extract_strided_slice %88 {offsets = [0, 1156], sizes = [16, 8], strides = [1, 1]} : vector<16x2048xf32> to vector<16x8xf32>
    %139 = vector.extract_strided_slice %88 {offsets = [0, 1160], sizes = [16, 8], strides = [1, 1]} : vector<16x2048xf32> to vector<16x8xf32>
    %140 = vector.extract_strided_slice %88 {offsets = [0, 1164], sizes = [16, 8], strides = [1, 1]} : vector<16x2048xf32> to vector<16x8xf32>
    %141 = vector.extract_strided_slice %88 {offsets = [0, 1168], sizes = [16, 8], strides = [1, 1]} : vector<16x2048xf32> to vector<16x8xf32>
    %142 = vector.extract_strided_slice %88 {offsets = [0, 1280], sizes = [16, 8], strides = [1, 1]} : vector<16x2048xf32> to vector<16x8xf32>
    %143 = vector.extract_strided_slice %88 {offsets = [0, 1284], sizes = [16, 8], strides = [1, 1]} : vector<16x2048xf32> to vector<16x8xf32>
    %144 = vector.extract_strided_slice %88 {offsets = [0, 1288], sizes = [16, 8], strides = [1, 1]} : vector<16x2048xf32> to vector<16x8xf32>
    %145 = vector.extract_strided_slice %88 {offsets = [0, 1292], sizes = [16, 8], strides = [1, 1]} : vector<16x2048xf32> to vector<16x8xf32>
    %146 = vector.extract_strided_slice %88 {offsets = [0, 1296], sizes = [16, 8], strides = [1, 1]} : vector<16x2048xf32> to vector<16x8xf32>
    %147 = vector.extract_strided_slice %88 {offsets = [0, 1408], sizes = [16, 8], strides = [1, 1]} : vector<16x2048xf32> to vector<16x8xf32>
    %148 = vector.extract_strided_slice %88 {offsets = [0, 1412], sizes = [16, 8], strides = [1, 1]} : vector<16x2048xf32> to vector<16x8xf32>
    %149 = vector.extract_strided_slice %88 {offsets = [0, 1416], sizes = [16, 8], strides = [1, 1]} : vector<16x2048xf32> to vector<16x8xf32>
    %150 = vector.extract_strided_slice %88 {offsets = [0, 1420], sizes = [16, 8], strides = [1, 1]} : vector<16x2048xf32> to vector<16x8xf32>
    %151 = vector.extract_strided_slice %88 {offsets = [0, 1424], sizes = [16, 8], strides = [1, 1]} : vector<16x2048xf32> to vector<16x8xf32>
    %152 = vector.extract_strided_slice %88 {offsets = [0, 1536], sizes = [16, 8], strides = [1, 1]} : vector<16x2048xf32> to vector<16x8xf32>
    %153 = vector.extract_strided_slice %88 {offsets = [0, 1540], sizes = [16, 8], strides = [1, 1]} : vector<16x2048xf32> to vector<16x8xf32>
    %154 = vector.extract_strided_slice %88 {offsets = [0, 1544], sizes = [16, 8], strides = [1, 1]} : vector<16x2048xf32> to vector<16x8xf32>
    %155 = vector.extract_strided_slice %88 {offsets = [0, 1548], sizes = [16, 8], strides = [1, 1]} : vector<16x2048xf32> to vector<16x8xf32>
    %156 = vector.extract_strided_slice %88 {offsets = [0, 1552], sizes = [16, 8], strides = [1, 1]} : vector<16x2048xf32> to vector<16x8xf32>
    %157 = tpu.concatenate %132, %133, %134, %135, %136, %137, %138, %139, %140, %141, %142, %143, %144, %145, %146, %147 in 0 : vector<16x8xf32>, vector<16x8xf32>, vector<16x8xf32>, vector<16x8xf32>, vector<16x8xf32>, vector<16x8xf32>, vector<16x8xf32>, vector<16x8xf32>, vector<16x8xf32>, vector<16x8xf32>, vector<16x8xf32>, vector<16x8xf32>, vector<16x8xf32>, vector<16x8xf32>, vector<16x8xf32>, vector<16x8xf32> -> vector<256x8xf32>
    %158 = tpu.concatenate %148, %149, %150, %151, %152, %153, %154, %155, %156 in 0 : vector<16x8xf32>, vector<16x8xf32>, vector<16x8xf32>, vector<16x8xf32>, vector<16x8xf32>, vector<16x8xf32>, vector<16x8xf32>, vector<16x8xf32>, vector<16x8xf32> -> vector<144x8xf32>
    %159 = tpu.concatenate %157, %158 in 0 : vector<256x8xf32>, vector<144x8xf32> -> vector<400x8xf32>
    %c0_40 = arith.constant 0 : index
    %c0_41 = arith.constant 0 : index
    %160 = vector.load %arg5[%c0_40, %c0_41] : memref<120x400xf32, #tpu.memory_space<vmem>>, vector<120x400xf32>
    %cst_42 = arith.constant dense<0.000000e+00> : vector<120x8xf32>
    %161 = tpu.matmul %160, %159, %cst_42 {dimension_numbers = #tpu.dot_dimension_numbers<[1], [0], [0], [1], [0, 0, 1, 1], [], []>} : vector<120x400xf32>, vector<400x8xf32>, vector<120x8xf32> -> vector<120x8xf32>
    %c0_43 = arith.constant 0 : index
    %c0_44 = arith.constant 0 : index
    %162 = vector.load %arg6[%c0_43, %c0_44] : memref<120x1xf32, #tpu.memory_space<vmem>>, vector<120x1xf32>
    %163 = vector.broadcast %162 : vector<120x1xf32> to vector<120x8xf32>
    %164 = arith.addf %161, %163 : vector<120x8xf32>
    %c0_45 = arith.constant 0 : index
    %c0_46 = arith.constant 0 : index
    %165 = vector.load %arg7[%c0_45, %c0_46] : memref<84x120xf32, #tpu.memory_space<vmem>>, vector<84x120xf32>
    %cst_47 = arith.constant dense<0.000000e+00> : vector<84x8xf32>
    %166 = tpu.matmul %165, %164, %cst_47 {dimension_numbers = #tpu.dot_dimension_numbers<[1], [0], [0], [1], [0, 0, 1, 1], [], []>} : vector<84x120xf32>, vector<120x8xf32>, vector<84x8xf32> -> vector<84x8xf32>
    %c0_48 = arith.constant 0 : index
    %c0_49 = arith.constant 0 : index
    %167 = vector.load %arg8[%c0_48, %c0_49] : memref<84x1xf32, #tpu.memory_space<vmem>>, vector<84x1xf32>
    %168 = vector.broadcast %167 : vector<84x1xf32> to vector<84x8xf32>
    %169 = arith.addf %166, %168 : vector<84x8xf32>
    %c0_50 = arith.constant 0 : index
    %c0_51 = arith.constant 0 : index
    %170 = vector.load %arg9[%c0_50, %c0_51] : memref<16x84xf32, #tpu.memory_space<vmem>>, vector<16x84xf32>
    %cst_52 = arith.constant dense<0.000000e+00> : vector<16x8xf32>
    %171 = tpu.matmul %170, %169, %cst_52 {dimension_numbers = #tpu.dot_dimension_numbers<[1], [0], [0], [1], [0, 0, 1, 1], [], []>} : vector<16x84xf32>, vector<84x8xf32>, vector<16x8xf32> -> vector<16x8xf32>
    %c0_53 = arith.constant 0 : index
    %c0_54 = arith.constant 0 : index
    %172 = vector.load %arg10[%c0_53, %c0_54] : memref<16x1xf32, #tpu.memory_space<vmem>>, vector<16x1xf32>
    %173 = vector.broadcast %172 : vector<16x1xf32> to vector<16x8xf32>
    %174 = arith.addf %171, %173 : vector<16x8xf32>
    %175 = tpu.concatenate %131, %174 in 0 : vector<16x8xf32>, vector<16x8xf32> -> vector<32x8xf32>
    %c0_55 = arith.constant 0 : index
    %c0_56 = arith.constant 0 : index
    %176 = vector.load %arg11[%c0_55, %c0_56] : memref<32x8xf32, #tpu.memory_space<vmem>>, vector<32x8xf32>
    tpu.vector_store %arg11[%c0_55, %c0_56], %175 {strides = array<i32>} : memref<32x8xf32, #tpu.memory_space<vmem>>, vector<32x8xf32>,
    return
  }
}

</mosaic_0001>

<llo_original>
// kernel: squeeze.1
$region0: #{squeeze.1}
  %s0 = inlined_call_operand.vmem [shape: f32[32], index: 0, kind: input, shape index: {}]
  %s1 = inlined_call_operand.hbm [shape: f32[2,16], index: 1, kind: output, shape index: {}]
  $region1: #{squeeze.1} parent=0
    #allocation0 [shape = 'u8[1024]{0}', space=vmem, size = 0x400, scoped, tag = 'operand span for operand 1']
    #allocation1 [shape = 's32[1]{0}', space=sflag, size = 0x4, scoped, tag = 'scoped memory for squeeze.1']
    #allocation2 [shape = 'u8[4096]{0}', space=vmem, size = 0x1000, scoped, tag = 'scoped mem for output reshape']
    #allocation3 [shape = 'u8[4096]{0}', space=vmem, size = 0x1000, scoped, tag = 'scoped mem for input reshape']
    %2 = vsyncpa [#allocation1], 0
    %s4 = ssub.s32 2, 1
    %v5 = vld [vmem:[%s0] sm:%s4]
    %6 = vst [vmem:[#allocation3] sm:%s4] %v5
    %v7 = vld [vmem:[#allocation3] sm:$0x1]
    %vm8 = vcmask 130048
    %9 = vst.msk [vmem:[#allocation2] sm:$0x1] %vm8, %v7
    %v10 = vld [vmem:[#allocation3] sm:$0x1]
    %11 = vrot.lane.b32.xlu0 %v10, 112
    %v12 = vpop.permute.xlu0 %11
    %vm13 = vcmask 130048
    %s14 = scalar_lea.vmem [#allocation2], 1
    %15 = vst.msk [vmem:[%s14] sm:$0x1] %vm13, %v12
    %s17 = ssub.s32 4, 1
    %v18 = vld [vmem:[#allocation2] sm:%s17]
    %s20 = ssub.s32 4, 1
    %21 = vst [vmem:[#allocation0] sm:%s20] %v18
    %23 = vsyncadd [#allocation1], 0
    %s25 = sshll.u32 [#allocation0], 4
    %s26 = int_to_ptr.vmem [resolvable:$true] %s25
    %s27 = sshll.u32 %s1, 4
    %s28 = int_to_ptr.hbm [resolvable:$true] %s27
    %30 = dma.vmem_to_hbm [thread:$0]  %s26, 32, %s28, [#allocation1]
    %32 = dma.done [#allocation1], 32
    %33 = vsyncpa [#allocation1], 1

// kernel: forward_pallas.1
$region0: #{forward_pallas.1}
  #allocation0 [shape = 'u32[]', space=smem, size = 0x4, offset = 0x4, fixed_abs, tag = 'smem constant byte address 0x4 - core index']
  #allocation1 [shape = 'u32[72,128]{1,0:T(1,128)}', space=vmem, size = 0x9000, scoped, tag = 'internal scratch']
  #allocation2 [shape = 'f32[16,2432]{1,0:T(8,128)}', space=vmem, size = 0x26000, scoped, tag = 'scratch operand']
  %s0 = inlined_call_operand.vmem [shape: f32[8,2432], index: 0, kind: input, shape index: {}]
  %s1 = inlined_call_operand.vmem [shape: f32[8,200], index: 1, kind: input, shape index: {}]
  %s2 = inlined_call_operand.vmem [shape: f32[8,1], index: 2, kind: input, shape index: {}]
  %s3 = inlined_call_operand.vmem [shape: f32[16,200], index: 3, kind: input, shape index: {}]
  %s4 = inlined_call_operand.vmem [shape: f32[16,1], index: 4, kind: input, shape index: {}]
  %s5 = inlined_call_operand.vmem [shape: f32[120,400], index: 5, kind: input, shape index: {}]
  %s6 = inlined_call_operand.vmem [shape: f32[120,1], index: 6, kind: input, shape index: {}]
  %s7 = inlined_call_operand.vmem [shape: f32[84,120], index: 7, kind: input, shape index: {}]
  %s8 = inlined_call_operand.vmem [shape: f32[84,1], index: 8, kind: input, shape index: {}]
  %s9 = inlined_call_operand.vmem [shape: f32[16,84], index: 9, kind: input, shape index: {}]
  %s10 = inlined_call_operand.vmem [shape: f32[16,1], index: 10, kind: input, shape index: {}]
  %s11 = inlined_call_operand.vmem [shape: f32[32,8], index: 11, kind: output, shape index: {}]
  %s12 = sld [smem:[#allocation0]]
  $region54: #{forward_pallas.1} parent=0
    _
  %s14 = ssub.s32 1, %s12
  %s15 = scalar_select 0, %s14, %s12
  // Predicated region
  $region2: #{forward_pallas.1} parent=0 // pred_check
    _
  $region3: #{forward_pallas.1} parent=0 // pred_check_branch
    %17 = sbr.rel (0) target = $region5
  $region4: #{forward_pallas.1} parent=0 // pred_region
    _
  $region5: #{forward_pallas.1} parent=0 // pred_fallthru
    _
  // Predicated region
  $region6: #{forward_pallas.1} parent=0 // pred_check
    _
  $region7: #{forward_pallas.1} parent=0 // pred_check_branch
    %19 = sbr.rel (0) target = $region9
  $region8: #{forward_pallas.1} parent=0 // pred_region
    _
  $region9: #{forward_pallas.1} parent=0 // pred_fallthru
    _
  // Predicated region
  $region10: #{forward_pallas.1} parent=0 // pred_check
    _
  $region11: #{forward_pallas.1} parent=0 // pred_check_branch
    %21 = sbr.rel (0) target = $region13
  $region12: #{forward_pallas.1} parent=0 // pred_region
    _
  $region13: #{forward_pallas.1} parent=0 // pred_fallthru
    _
  // Predicated region
  $region14: #{forward_pallas.1} parent=0 // pred_check
    _
  $region15: #{forward_pallas.1} parent=0 // pred_check_branch
    %23 = sbr.rel (0) target = $region17
  $region16: #{forward_pallas.1} parent=0 // pred_region
    _
  $region17: #{forward_pallas.1} parent=0 // pred_fallthru
    _
  // Predicated region
  $region18: #{forward_pallas.1} parent=0 // pred_check
    _
  $region19: #{forward_pallas.1} parent=0 // pred_check_branch
    %25 = sbr.rel (0) target = $region21
  $region20: #{forward_pallas.1} parent=0 // pred_region
    _
  $region21: #{forward_pallas.1} parent=0 // pred_fallthru
    _
  // Predicated region
  $region22: #{forward_pallas.1} parent=0 // pred_check
    _
  $region23: #{forward_pallas.1} parent=0 // pred_check_branch
    %27 = sbr.rel (0) target = $region25
  $region24: #{forward_pallas.1} parent=0 // pred_region
    _
  $region25: #{forward_pallas.1} parent=0 // pred_fallthru
    _
  // Predicated region
  $region26: #{forward_pallas.1} parent=0 // pred_check
    _
  $region27: #{forward_pallas.1} parent=0 // pred_check_branch
    %29 = sbr.rel (0) target = $region29
  $region28: #{forward_pallas.1} parent=0 // pred_region
    _
  $region29: #{forward_pallas.1} parent=0 // pred_fallthru
    _
  // Predicated region
  $region30: #{forward_pallas.1} parent=0 // pred_check
    _
  $region31: #{forward_pallas.1} parent=0 // pred_check_branch
    %31 = sbr.rel (0) target = $region33
  $region32: #{forward_pallas.1} parent=0 // pred_region
    _
  $region33: #{forward_pallas.1} parent=0 // pred_fallthru
    _
  // Predicated region
  $region34: #{forward_pallas.1} parent=0 // pred_check
    _
  $region35: #{forward_pallas.1} parent=0 // pred_check_branch
    %33 = sbr.rel (0) target = $region37
  $region36: #{forward_pallas.1} parent=0 // pred_region
    _
  $region37: #{forward_pallas.1} parent=0 // pred_fallthru
    _
  // Predicated region
  $region38: #{forward_pallas.1} parent=0 // pred_check
    _
  $region39: #{forward_pallas.1} parent=0 // pred_check_branch
    %35 = sbr.rel (0) target = $region41
  $region40: #{forward_pallas.1} parent=0 // pred_region
    _
  $region41: #{forward_pallas.1} parent=0 // pred_fallthru
    _
  // Predicated region
  $region42: #{forward_pallas.1} parent=0 // pred_check
    _
  $region43: #{forward_pallas.1} parent=0 // pred_check_branch
    %37 = sbr.rel (0) target = $region45
  $region44: #{forward_pallas.1} parent=0 // pred_region
    _
  $region45: #{forward_pallas.1} parent=0 // pred_fallthru
    _
  %38 = vst [vmem:[#allocation2] sm:$0xff] 0.0
  %39 = vst [vmem:[#allocation2 + $0x8] sm:$0xff] 0.0
  %40 = vst [vmem:[#allocation2 + $0x10] sm:$0xff] 0.0
  %41 = vst [vmem:[#allocation2 + $0x18] sm:$0xff] 0.0
  %42 = vst [vmem:[#allocation2 + $0x20] sm:$0xff] 0.0
  %43 = vst [vmem:[#allocation2 + $0x28] sm:$0xff] 0.0
  %44 = vst [vmem:[#allocation2 + $0x30] sm:$0xff] 0.0
  %45 = vst [vmem:[#allocation2 + $0x38] sm:$0xff] 0.0
  %46 = vst [vmem:[#allocation2 + $0x40] sm:$0xff] 0.0
  %47 = vst [vmem:[#allocation2 + $0x48] sm:$0xff] 0.0
  %48 = vst [vmem:[#allocation2 + $0x50] sm:$0xff] 0.0
  %49 = vst [vmem:[#allocation2 + $0x58] sm:$0xff] 0.0
  %50 = vst [vmem:[#allocation2 + $0x60] sm:$0xff] 0.0
  %51 = vst [vmem:[#allocation2 + $0x68] sm:$0xff] 0.0
  %52 = vst [vmem:[#allocation2 + $0x70] sm:$0xff] 0.0
  %53 = vst [vmem:[#allocation2 + $0x78] sm:$0xff] 0.0
  %54 = vst [vmem:[#allocation2 + $0x80] sm:$0xff] 0.0
  %55 = vst [vmem:[#allocation2 + $0x88] sm:$0xff] 0.0
  %56 = vst [vmem:[#allocation2 + $0x90] sm:$0xff] 0.0
  %57 = vst [vmem:[#allocation2 + $0x98] sm:$0xff] 0.0
  %58 = vst [vmem:[#allocation2 + $0xa0] sm:$0xff] 0.0
  %59 = vst [vmem:[#allocation2 + $0xa8] sm:$0xff] 0.0
  %60 = vst [vmem:[#allocation2 + $0xb0] sm:$0xff] 0.0
  %61 = vst [vmem:[#allocation2 + $0xb8] sm:$0xff] 0.0
  %62 = vst [vmem:[#allocation2 + $0xc0] sm:$0xff] 0.0
  %63 = vst [vmem:[#allocation2 + $0xc8] sm:$0xff] 0.0
  %64 = vst [vmem:[#allocation2 + $0xd0] sm:$0xff] 0.0
  %65 = vst [vmem:[#allocation2 + $0xd8] sm:$0xff] 0.0
  %66 = vst [vmem:[#allocation2 + $0xe0] sm:$0xff] 0.0
  %67 = vst [vmem:[#allocation2 + $0xe8] sm:$0xff] 0.0
  %68 = vst [vmem:[#allocation2 + $0xf0] sm:$0xff] 0.0
  %69 = vst [vmem:[#allocation2 + $0xf8] sm:$0xff] 0.0
  %70 = vst [vmem:[#allocation2 + $0x100] sm:$0xff] 0.0
  %71 = vst [vmem:[#allocation2 + $0x108] sm:$0xff] 0.0
  %72 = vst [vmem:[#allocation2 + $0x110] sm:$0xff] 0.0
  %73 = vst [vmem:[#allocation2 + $0x118] sm:$0xff] 0.0
  %74 = vst [vmem:[#allocation2 + $0x120] sm:$0xff] 0.0
  %75 = vst [vmem:[#allocation2 + $0x128] sm:$0xff] 0.0
  %v76 = vld [vmem:[%s0] sm:$0xff]
  %v77 = vld [vmem:[%s0 + $0x8] sm:$0xff]
  %v78 = vld [vmem:[%s0 + $0x10] sm:$0xff]
  %v79 = vld [vmem:[%s0 + $0x18] sm:$0xff]
  %v80 = vld [vmem:[%s0 + $0x20] sm:$0xff]
  %v81 = vld [vmem:[%s0 + $0x28] sm:$0xff]
  %v82 = vld [vmem:[%s0 + $0x30] sm:$0xff]
  %v83 = vld [vmem:[%s0 + $0x38] sm:$0xff]
  %v84 = vld [vmem:[%s0 + $0x40] sm:$0xff]
  %v85 = vld [vmem:[%s0 + $0x48] sm:$0xff]
  %v86 = vld [vmem:[%s0 + $0x50] sm:$0xff]
  %v87 = vld [vmem:[%s0 + $0x58] sm:$0xff]
  %v88 = vld [vmem:[%s0 + $0x60] sm:$0xff]
  %v89 = vld [vmem:[%s0 + $0x68] sm:$0xff]
  %v90 = vld [vmem:[%s0 + $0x70] sm:$0xff]
  %v91 = vld [vmem:[%s0 + $0x78] sm:$0xff]
  %v92 = vld [vmem:[%s0 + $0x80] sm:$0xff]
  %v93 = vld [vmem:[%s0 + $0x88] sm:$0xff]
  %111 = vrot.lane.b32.xlu0 %v76, 127
  %v112 = vpop.permute.xlu0 %111
  %113 = vrot.lane.b32.xlu0 %v77, 127
  %v114 = vpop.permute.xlu0 %113
  %115 = vrot.lane.b32.xlu0 %v78, 127
  %v116 = vpop.permute.xlu0 %115
  %117 = vrot.lane.b32.xlu0 %v79, 127
  %v118 = vpop.permute.xlu0 %117
  %119 = vrot.lane.b32.xlu0 %v80, 127
  %v120 = vpop.permute.xlu0 %119
  %121 = vrot.lane.b32.xlu0 %v81, 127
  %v122 = vpop.permute.xlu0 %121
  %123 = vrot.lane.b32.xlu0 %v82, 127
  %v124 = vpop.permute.xlu0 %123
  %125 = vrot.lane.b32.xlu0 %v83, 127
  %v126 = vpop.permute.xlu0 %125
  %127 = vrot.lane.b32.xlu0 %v84, 127
  %v128 = vpop.permute.xlu0 %127
  %129 = vrot.lane.b32.xlu0 %v85, 127
  %v130 = vpop.permute.xlu0 %129
  %131 = vrot.lane.b32.xlu0 %v86, 127
  %v132 = vpop.permute.xlu0 %131
  %133 = vrot.lane.b32.xlu0 %v87, 127
  %v134 = vpop.permute.xlu0 %133
  %135 = vrot.lane.b32.xlu0 %v88, 127
  %v136 = vpop.permute.xlu0 %135
  %137 = vrot.lane.b32.xlu0 %v89, 127
  %v138 = vpop.permute.xlu0 %137
  %139 = vrot.lane.b32.xlu0 %v90, 127
  %v140 = vpop.permute.xlu0 %139
  %141 = vrot.lane.b32.xlu0 %v91, 127
  %v142 = vpop.permute.xlu0 %141
  %143 = vrot.lane.b32.xlu0 %v92, 127
  %v144 = vpop.permute.xlu0 %143
  %vm145 = vcmask 1039360
  %v146 = vsel %vm145, %v112, %v114
  %v147 = vsel %vm145, %v114, %v116
  %v148 = vsel %vm145, %v116, %v118
  %v149 = vsel %vm145, %v118, %v120
  %v150 = vsel %vm145, %v120, %v122
  %v151 = vsel %vm145, %v122, %v124
  %v152 = vsel %vm145, %v124, %v126
  %v153 = vsel %vm145, %v126, %v128
  %v154 = vsel %vm145, %v128, %v130
  %v155 = vsel %vm145, %v130, %v132
  %v156 = vsel %vm145, %v132, %v134
  %v157 = vsel %vm145, %v134, %v136
  %v158 = vsel %vm145, %v136, %v138
  %v159 = vsel %vm145, %v138, %v140
  %v160 = vsel %vm145, %v140, %v142
  %v161 = vsel %vm145, %v142, %v144
  %178 = vrot.lane.b32.xlu0 %v76, 126
  %v179 = vpop.permute.xlu0 %178
  %180 = vrot.lane.b32.xlu0 %v77, 126
  %v181 = vpop.permute.xlu0 %180
  %182 = vrot.lane.b32.xlu0 %v78, 126
  %v183 = vpop.permute.xlu0 %182
  %184 = vrot.lane.b32.xlu0 %v79, 126
  %v185 = vpop.permute.xlu0 %184
  %186 = vrot.lane.b32.xlu0 %v80, 126
  %v187 = vpop.permute.xlu0 %186
  %188 = vrot.lane.b32.xlu0 %v81, 126
  %v189 = vpop.permute.xlu0 %188
  %190 = vrot.lane.b32.xlu0 %v82, 126
  %v191 = vpop.permute.xlu0 %190
  %192 = vrot.lane.b32.xlu0 %v83, 126
  %v193 = vpop.permute.xlu0 %192
  %194 = vrot.lane.b32.xlu0 %v84, 126
  %v195 = vpop.permute.xlu0 %194
  %196 = vrot.lane.b32.xlu0 %v85, 126
  %v197 = vpop.permute.xlu0 %196
  %198 = vrot.lane.b32.xlu0 %v86, 126
  %v199 = vpop.permute.xlu0 %198
  %200 = vrot.lane.b32.xlu0 %v87, 126
  %v201 = vpop.permute.xlu0 %200
  %202 = vrot.lane.b32.xlu0 %v88, 126
  %v203 = vpop.permute.xlu0 %202
  %204 = vrot.lane.b32.xlu0 %v89, 126
  %v205 = vpop.permute.xlu0 %204
  %206 = vrot.lane.b32.xlu0 %v90, 126
  %v207 = vpop.permute.xlu0 %206
  %208 = vrot.lane.b32.xlu0 %v91, 126
  %v209 = vpop.permute.xlu0 %208
  %210 = vrot.lane.b32.xlu0 %v92, 126
  %v211 = vpop.permute.xlu0 %210
  %vm212 = vcmask 1031168
  %v213 = vsel %vm212, %v179, %v181
  %v214 = vsel %vm212, %v181, %v183
  %v215 = vsel %vm212, %v183, %v185
  %v216 = vsel %vm212, %v185, %v187
  %v217 = vsel %vm212, %v187, %v189
  %v218 = vsel %vm212, %v189, %v191
  %v219 = vsel %vm212, %v191, %v193
  %v220 = vsel %vm212, %v193, %v195
  %v221 = vsel %vm212, %v195, %v197
  %v222 = vsel %vm212, %v197, %v199
  %v223 = vsel %vm212, %v199, %v201
  %v224 = vsel %vm212, %v201, %v203
  %v225 = vsel %vm212, %v203, %v205
  %v226 = vsel %vm212, %v205, %v207
  %v227 = vsel %vm212, %v207, %v209
  %v228 = vsel %vm212, %v209, %v211
  %245 = vrot.lane.b32.xlu0 %v76, 125
  %v246 = vpop.permute.xlu0 %245
  %247 = vrot.lane.b32.xlu0 %v77, 125
  %v248 = vpop.permute.xlu0 %247
  %249 = vrot.lane.b32.xlu0 %v78, 125
  %v250 = vpop.permute.xlu0 %249
  %251 = vrot.lane.b32.xlu0 %v79, 125
  %v252 = vpop.permute.xlu0 %251
  %253 = vrot.lane.b32.xlu0 %v80, 125
  %v254 = vpop.permute.xlu0 %253
  %255 = vrot.lane.b32.xlu0 %v81, 125
  %v256 = vpop.permute.xlu0 %255
  %257 = vrot.lane.b32.xlu0 %v82, 125
  %v258 = vpop.permute.xlu0 %257
  %259 = vrot.lane.b32.xlu0 %v83, 125
  %v260 = vpop.permute.xlu0 %259
  %261 = vrot.lane.b32.xlu0 %v84, 125
  %v262 = vpop.permute.xlu0 %261
  %263 = vrot.lane.b32.xlu0 %v85, 125
  %v264 = vpop.permute.xlu0 %263
  %265 = vrot.lane.b32.xlu0 %v86, 125
  %v266 = vpop.permute.xlu0 %265
  %267 = vrot.lane.b32.xlu0 %v87, 125
  %v268 = vpop.permute.xlu0 %267
  %269 = vrot.lane.b32.xlu0 %v88, 125
  %v270 = vpop.permute.xlu0 %269
  %271 = vrot.lane.b32.xlu0 %v89, 125
  %v272 = vpop.permute.xlu0 %271
  %273 = vrot.lane.b32.xlu0 %v90, 125
  %v274 = vpop.permute.xlu0 %273
  %275 = vrot.lane.b32.xlu0 %v91, 125
  %v276 = vpop.permute.xlu0 %275
  %277 = vrot.lane.b32.xlu0 %v92, 125
  %v278 = vpop.permute.xlu0 %277
  %vm279 = vcmask 1022976
  %v280 = vsel %vm279, %v246, %v248
  %v281 = vsel %vm279, %v248, %v250
  %v282 = vsel %vm279, %v250, %v252
  %v283 = vsel %vm279, %v252, %v254
  %v284 = vsel %vm279, %v254, %v256
  %v285 = vsel %vm279, %v256, %v258
  %v286 = vsel %vm279, %v258, %v260
  %v287 = vsel %vm279, %v260, %v262
  %v288 = vsel %vm279, %v262, %v264
  %v289 = vsel %vm279, %v264, %v266
  %v290 = vsel %vm279, %v266, %v268
  %v291 = vsel %vm279, %v268, %v270
  %v292 = vsel %vm279, %v270, %v272
  %v293 = vsel %vm279, %v272, %v274
  %v294 = vsel %vm279, %v274, %v276
  %v295 = vsel %vm279, %v276, %v278
  %312 = vrot.lane.b32.xlu0 %v76, 124
  %v313 = vpop.permute.xlu0 %312
  %314 = vrot.lane.b32.xlu0 %v77, 124
  %v315 = vpop.permute.xlu0 %314
  %316 = vrot.lane.b32.xlu0 %v78, 124
  %v317 = vpop.permute.xlu0 %316
  %318 = vrot.lane.b32.xlu0 %v79, 124
  %v319 = vpop.permute.xlu0 %318
  %320 = vrot.lane.b32.xlu0 %v80, 124
  %v321 = vpop.permute.xlu0 %320
  %322 = vrot.lane.b32.xlu0 %v81, 124
  %v323 = vpop.permute.xlu0 %322
  %324 = vrot.lane.b32.xlu0 %v82, 124
  %v325 = vpop.permute.xlu0 %324
  %326 = vrot.lane.b32.xlu0 %v83, 124
  %v327 = vpop.permute.xlu0 %326
  %328 = vrot.lane.b32.xlu0 %v84, 124
  %v329 = vpop.permute.xlu0 %328
  %330 = vrot.lane.b32.xlu0 %v85, 124
  %v331 = vpop.permute.xlu0 %330
  %332 = vrot.lane.b32.xlu0 %v86, 124
  %v333 = vpop.permute.xlu0 %332
  %334 = vrot.lane.b32.xlu0 %v87, 124
  %v335 = vpop.permute.xlu0 %334
  %336 = vrot.lane.b32.xlu0 %v88, 124
  %v337 = vpop.permute.xlu0 %336
  %338 = vrot.lane.b32.xlu0 %v89, 124
  %v339 = vpop.permute.xlu0 %338
  %340 = vrot.lane.b32.xlu0 %v90, 124
  %v341 = vpop.permute.xlu0 %340
  %342 = vrot.lane.b32.xlu0 %v91, 124
  %v343 = vpop.permute.xlu0 %342
  %344 = vrot.lane.b32.xlu0 %v92, 124
  %v345 = vpop.permute.xlu0 %344
  %vm346 = vcmask 1014784
  %v347 = vsel %vm346, %v313, %v315
  %v348 = vsel %vm346, %v315, %v317
  %v349 = vsel %vm346, %v317, %v319
  %v350 = vsel %vm346, %v319, %v321
  %v351 = vsel %vm346, %v321, %v323
  %v352 = vsel %vm346, %v323, %v325
  %v353 = vsel %vm346, %v325, %v327
  %v354 = vsel %vm346, %v327, %v329
  %v355 = vsel %vm346, %v329, %v331
  %v356 = vsel %vm346, %v331, %v333
  %v357 = vsel %vm346, %v333, %v335
  %v358 = vsel %vm346, %v335, %v337
  %v359 = vsel %vm346, %v337, %v339
  %v360 = vsel %vm346, %v339, %v341
  %v361 = vsel %vm346, %v341, %v343
  %v362 = vsel %vm346, %v343, %v345
  %379 = vrot.lane.b32.xlu0 %v76, 96
  %v380 = vpop.permute.xlu0 %379
  %381 = vrot.lane.b32.xlu0 %v77, 96
  %v382 = vpop.permute.xlu0 %381
  %383 = vrot.lane.b32.xlu0 %v78, 96
  %v384 = vpop.permute.xlu0 %383
  %385 = vrot.lane.b32.xlu0 %v79, 96
  %v386 = vpop.permute.xlu0 %385
  %387 = vrot.lane.b32.xlu0 %v80, 96
  %v388 = vpop.permute.xlu0 %387
  %389 = vrot.lane.b32.xlu0 %v81, 96
  %v390 = vpop.permute.xlu0 %389
  %391 = vrot.lane.b32.xlu0 %v82, 96
  %v392 = vpop.permute.xlu0 %391
  %393 = vrot.lane.b32.xlu0 %v83, 96
  %v394 = vpop.permute.xlu0 %393
  %395 = vrot.lane.b32.xlu0 %v84, 96
  %v396 = vpop.permute.xlu0 %395
  %397 = vrot.lane.b32.xlu0 %v85, 96
  %v398 = vpop.permute.xlu0 %397
  %399 = vrot.lane.b32.xlu0 %v86, 96
  %v400 = vpop.permute.xlu0 %399
  %401 = vrot.lane.b32.xlu0 %v87, 96
  %v402 = vpop.permute.xlu0 %401
  %403 = vrot.lane.b32.xlu0 %v88, 96
  %v404 = vpop.permute.xlu0 %403
  %405 = vrot.lane.b32.xlu0 %v89, 96
  %v406 = vpop.permute.xlu0 %405
  %407 = vrot.lane.b32.xlu0 %v90, 96
  %v408 = vpop.permute.xlu0 %407
  %409 = vrot.lane.b32.xlu0 %v91, 96
  %v410 = vpop.permute.xlu0 %409
  %411 = vrot.lane.b32.xlu0 %v92, 96
  %v412 = vpop.permute.xlu0 %411
  %vm413 = vcmask 785408
  %v414 = vsel %vm413, %v380, %v382
  %v415 = vsel %vm413, %v382, %v384
  %v416 = vsel %vm413, %v384, %v386
  %v417 = vsel %vm413, %v386, %v388
  %v418 = vsel %vm413, %v388, %v390
  %v419 = vsel %vm413, %v390, %v392
  %v420 = vsel %vm413, %v392, %v394
  %v421 = vsel %vm413, %v394, %v396
  %v422 = vsel %vm413, %v396, %v398
  %v423 = vsel %vm413, %v398, %v400
  %v424 = vsel %vm413, %v400, %v402
  %v425 = vsel %vm413, %v402, %v404
  %v426 = vsel %vm413, %v404, %v406
  %v427 = vsel %vm413, %v406, %v408
  %v428 = vsel %vm413, %v408, %v410
  %v429 = vsel %vm413, %v410, %v412
  %446 = vrot.lane.b32.xlu0 %v76, 95
  %v447 = vpop.permute.xlu0 %446
  %448 = vrot.lane.b32.xlu0 %v77, 95
  %v449 = vpop.permute.xlu0 %448
  %450 = vrot.lane.b32.xlu0 %v78, 95
  %v451 = vpop.permute.xlu0 %450
  %452 = vrot.lane.b32.xlu0 %v79, 95
  %v453 = vpop.permute.xlu0 %452
  %454 = vrot.lane.b32.xlu0 %v80, 95
  %v455 = vpop.permute.xlu0 %454
  %456 = vrot.lane.b32.xlu0 %v81, 95
  %v457 = vpop.permute.xlu0 %456
  %458 = vrot.lane.b32.xlu0 %v82, 95
  %v459 = vpop.permute.xlu0 %458
  %460 = vrot.lane.b32.xlu0 %v83, 95
  %v461 = vpop.permute.xlu0 %460
  %462 = vrot.lane.b32.xlu0 %v84, 95
  %v463 = vpop.permute.xlu0 %462
  %464 = vrot.lane.b32.xlu0 %v85, 95
  %v465 = vpop.permute.xlu0 %464
  %466 = vrot.lane.b32.xlu0 %v86, 95
  %v467 = vpop.permute.xlu0 %466
  %468 = vrot.lane.b32.xlu0 %v87, 95
  %v469 = vpop.permute.xlu0 %468
  %470 = vrot.lane.b32.xlu0 %v88, 95
  %v471 = vpop.permute.xlu0 %470
  %472 = vrot.lane.b32.xlu0 %v89, 95
  %v473 = vpop.permute.xlu0 %472
  %474 = vrot.lane.b32.xlu0 %v90, 95
  %v475 = vpop.permute.xlu0 %474
  %476 = vrot.lane.b32.xlu0 %v91, 95
  %v477 = vpop.permute.xlu0 %476
  %478 = vrot.lane.b32.xlu0 %v92, 95
  %v479 = vpop.permute.xlu0 %478
  %vm480 = vcmask 777216
  %v481 = vsel %vm480, %v447, %v449
  %v482 = vsel %vm480, %v449, %v451
  %v483 = vsel %vm480, %v451, %v453
  %v484 = vsel %vm480, %v453, %v455
  %v485 = vsel %vm480, %v455, %v457
  %v486 = vsel %vm480, %v457, %v459
  %v487 = vsel %vm480, %v459, %v461
  %v488 = vsel %vm480, %v461, %v463
  %v489 = vsel %vm480, %v463, %v465
  %v490 = vsel %vm480, %v465, %v467
  %v491 = vsel %vm480, %v467, %v469
  %v492 = vsel %vm480, %v469, %v471
  %v493 = vsel %vm480, %v471, %v473
  %v494 = vsel %vm480, %v473, %v475
  %v495 = vsel %vm480, %v475, %v477
  %v496 = vsel %vm480, %v477, %v479
  %513 = vrot.lane.b32.xlu0 %v76, 94
  %v514 = vpop.permute.xlu0 %513
  %515 = vrot.lane.b32.xlu0 %v77, 94
  %v516 = vpop.permute.xlu0 %515
  %517 = vrot.lane.b32.xlu0 %v78, 94
  %v518 = vpop.permute.xlu0 %517
  %519 = vrot.lane.b32.xlu0 %v79, 94
  %v520 = vpop.permute.xlu0 %519
  %521 = vrot.lane.b32.xlu0 %v80, 94
  %v522 = vpop.permute.xlu0 %521
  %523 = vrot.lane.b32.xlu0 %v81, 94
  %v524 = vpop.permute.xlu0 %523
  %525 = vrot.lane.b32.xlu0 %v82, 94
  %v526 = vpop.permute.xlu0 %525
  %527 = vrot.lane.b32.xlu0 %v83, 94
  %v528 = vpop.permute.xlu0 %527
  %529 = vrot.lane.b32.xlu0 %v84, 94
  %v530 = vpop.permute.xlu0 %529
  %531 = vrot.lane.b32.xlu0 %v85, 94
  %v532 = vpop.permute.xlu0 %531
  %533 = vrot.lane.b32.xlu0 %v86, 94
  %v534 = vpop.permute.xlu0 %533
  %535 = vrot.lane.b32.xlu0 %v87, 94
  %v536 = vpop.permute.xlu0 %535
  %537 = vrot.lane.b32.xlu0 %v88, 94
  %v538 = vpop.permute.xlu0 %537
  %539 = vrot.lane.b32.xlu0 %v89, 94
  %v540 = vpop.permute.xlu0 %539
  %541 = vrot.lane.b32.xlu0 %v90, 94
  %v542 = vpop.permute.xlu0 %541
  %543 = vrot.lane.b32.xlu0 %v91, 94
  %v544 = vpop.permute.xlu0 %543
  %545 = vrot.lane.b32.xlu0 %v92, 94
  %v546 = vpop.permute.xlu0 %545
  %vm547 = vcmask 769024
  %v548 = vsel %vm547, %v514, %v516
  %v549 = vsel %vm547, %v516, %v518
  %v550 = vsel %vm547, %v518, %v520
  %v551 = vsel %vm547, %v520, %v522
  %v552 = vsel %vm547, %v522, %v524
  %v553 = vsel %vm547, %v524, %v526
  %v554 = vsel %vm547, %v526, %v528
  %v555 = vsel %vm547, %v528, %v530
  %v556 = vsel %vm547, %v530, %v532
  %v557 = vsel %vm547, %v532, %v534
  %v558 = vsel %vm547, %v534, %v536
  %v559 = vsel %vm547, %v536, %v538
  %v560 = vsel %vm547, %v538, %v540
  %v561 = vsel %vm547, %v540, %v542
  %v562 = vsel %vm547, %v542, %v544
  %v563 = vsel %vm547, %v544, %v546
  %580 = vrot.lane.b32.xlu0 %v76, 93
  %v581 = vpop.permute.xlu0 %580
  %582 = vrot.lane.b32.xlu0 %v77, 93
  %v583 = vpop.permute.xlu0 %582
  %584 = vrot.lane.b32.xlu0 %v78, 93
  %v585 = vpop.permute.xlu0 %584
  %586 = vrot.lane.b32.xlu0 %v79, 93
  %v587 = vpop.permute.xlu0 %586
  %588 = vrot.lane.b32.xlu0 %v80, 93
  %v589 = vpop.permute.xlu0 %588
  %590 = vrot.lane.b32.xlu0 %v81, 93
  %v591 = vpop.permute.xlu0 %590
  %592 = vrot.lane.b32.xlu0 %v82, 93
  %v593 = vpop.permute.xlu0 %592
  %594 = vrot.lane.b32.xlu0 %v83, 93
  %v595 = vpop.permute.xlu0 %594
  %596 = vrot.lane.b32.xlu0 %v84, 93
  %v597 = vpop.permute.xlu0 %596
  %598 = vrot.lane.b32.xlu0 %v85, 93
  %v599 = vpop.permute.xlu0 %598
  %600 = vrot.lane.b32.xlu0 %v86, 93
  %v601 = vpop.permute.xlu0 %600
  %602 = vrot.lane.b32.xlu0 %v87, 93
  %v603 = vpop.permute.xlu0 %602
  %604 = vrot.lane.b32.xlu0 %v88, 93
  %v605 = vpop.permute.xlu0 %604
  %606 = vrot.lane.b32.xlu0 %v89, 93
  %v607 = vpop.permute.xlu0 %606
  %608 = vrot.lane.b32.xlu0 %v90, 93
  %v609 = vpop.permute.xlu0 %608
  %610 = vrot.lane.b32.xlu0 %v91, 93
  %v611 = vpop.permute.xlu0 %610
  %612 = vrot.lane.b32.xlu0 %v92, 93
  %v613 = vpop.permute.xlu0 %612
  %vm614 = vcmask 760832
  %v615 = vsel %vm614, %v581, %v583
  %v616 = vsel %vm614, %v583, %v585
  %v617 = vsel %vm614, %v585, %v587
  %v618 = vsel %vm614, %v587, %v589
  %v619 = vsel %vm614, %v589, %v591
  %v620 = vsel %vm614, %v591, %v593
  %v621 = vsel %vm614, %v593, %v595
  %v622 = vsel %vm614, %v595, %v597
  %v623 = vsel %vm614, %v597, %v599
  %v624 = vsel %vm614, %v599, %v601
  %v625 = vsel %vm614, %v601, %v603
  %v626 = vsel %vm614, %v603, %v605
  %v627 = vsel %vm614, %v605, %v607
  %v628 = vsel %vm614, %v607, %v609
  %v629 = vsel %vm614, %v609, %v611
  %v630 = vsel %vm614, %v611, %v613
  %647 = vrot.lane.b32.xlu0 %v76, 92
  %v648 = vpop.permute.xlu0 %647
  %649 = vrot.lane.b32.xlu0 %v77, 92
  %v650 = vpop.permute.xlu0 %649
  %651 = vrot.lane.b32.xlu0 %v78, 92
  %v652 = vpop.permute.xlu0 %651
  %653 = vrot.lane.b32.xlu0 %v79, 92
  %v654 = vpop.permute.xlu0 %653
  %655 = vrot.lane.b32.xlu0 %v80, 92
  %v656 = vpop.permute.xlu0 %655
  %657 = vrot.lane.b32.xlu0 %v81, 92
  %v658 = vpop.permute.xlu0 %657
  %659 = vrot.lane.b32.xlu0 %v82, 92
  %v660 = vpop.permute.xlu0 %659
  %661 = vrot.lane.b32.xlu0 %v83, 92
  %v662 = vpop.permute.xlu0 %661
  %663 = vrot.lane.b32.xlu0 %v84, 92
  %v664 = vpop.permute.xlu0 %663
  %665 = vrot.lane.b32.xlu0 %v85, 92
  %v666 = vpop.permute.xlu0 %665
  %667 = vrot.lane.b32.xlu0 %v86, 92
  %v668 = vpop.permute.xlu0 %667
  %669 = vrot.lane.b32.xlu0 %v87, 92
  %v670 = vpop.permute.xlu0 %669
  %671 = vrot.lane.b32.xlu0 %v88, 92
  %v672 = vpop.permute.xlu0 %671
  %673 = vrot.lane.b32.xlu0 %v89, 92
  %v674 = vpop.permute.xlu0 %673
  %675 = vrot.lane.b32.xlu0 %v90, 92
  %v676 = vpop.permute.xlu0 %675
  %677 = vrot.lane.b32.xlu0 %v91, 92
  %v678 = vpop.permute.xlu0 %677
  %679 = vrot.lane.b32.xlu0 %v92, 92
  %v680 = vpop.permute.xlu0 %679
  %vm681 = vcmask 752640
  %v682 = vsel %vm681, %v648, %v650
  %v683 = vsel %vm681, %v650, %v652
  %v684 = vsel %vm681, %v652, %v654
  %v685 = vsel %vm681, %v654, %v656
  %v686 = vsel %vm681, %v656, %v658
  %v687 = vsel %vm681, %v658, %v660
  %v688 = vsel %vm681, %v660, %v662
  %v689 = vsel %vm681, %v662, %v664
  %v690 = vsel %vm681, %v664, %v666
  %v691 = vsel %vm681, %v666, %v668
  %v692 = vsel %vm681, %v668, %v670
  %v693 = vsel %vm681, %v670, %v672
  %v694 = vsel %vm681, %v672, %v674
  %v695 = vsel %vm681, %v674, %v676
  %v696 = vsel %vm681, %v676, %v678
  %v697 = vsel %vm681, %v678, %v680
  %714 = vrot.lane.b32.xlu0 %v76, 64
  %v715 = vpop.permute.xlu0 %714
  %716 = vrot.lane.b32.xlu0 %v77, 64
  %v717 = vpop.permute.xlu0 %716
  %718 = vrot.lane.b32.xlu0 %v78, 64
  %v719 = vpop.permute.xlu0 %718
  %720 = vrot.lane.b32.xlu0 %v79, 64
  %v721 = vpop.permute.xlu0 %720
  %722 = vrot.lane.b32.xlu0 %v80, 64
  %v723 = vpop.permute.xlu0 %722
  %724 = vrot.lane.b32.xlu0 %v81, 64
  %v725 = vpop.permute.xlu0 %724
  %726 = vrot.lane.b32.xlu0 %v82, 64
  %v727 = vpop.permute.xlu0 %726
  %728 = vrot.lane.b32.xlu0 %v83, 64
  %v729 = vpop.permute.xlu0 %728
  %730 = vrot.lane.b32.xlu0 %v84, 64
  %v731 = vpop.permute.xlu0 %730
  %732 = vrot.lane.b32.xlu0 %v85, 64
  %v733 = vpop.permute.xlu0 %732
  %734 = vrot.lane.b32.xlu0 %v86, 64
  %v735 = vpop.permute.xlu0 %734
  %736 = vrot.lane.b32.xlu0 %v87, 64
  %v737 = vpop.permute.xlu0 %736
  %738 = vrot.lane.b32.xlu0 %v88, 64
  %v739 = vpop.permute.xlu0 %738
  %740 = vrot.lane.b32.xlu0 %v89, 64
  %v741 = vpop.permute.xlu0 %740
  %742 = vrot.lane.b32.xlu0 %v90, 64
  %v743 = vpop.permute.xlu0 %742
  %744 = vrot.lane.b32.xlu0 %v91, 64
  %v745 = vpop.permute.xlu0 %744
  %746 = vrot.lane.b32.xlu0 %v92, 64
  %v747 = vpop.permute.xlu0 %746
  %vm748 = vcmask 523264
  %v749 = vsel %vm748, %v715, %v717
  %v750 = vsel %vm748, %v717, %v719
  %v751 = vsel %vm748, %v719, %v721
  %v752 = vsel %vm748, %v721, %v723
  %v753 = vsel %vm748, %v723, %v725
  %v754 = vsel %vm748, %v725, %v727
  %v755 = vsel %vm748, %v727, %v729
  %v756 = vsel %vm748, %v729, %v731
  %v757 = vsel %vm748, %v731, %v733
  %v758 = vsel %vm748, %v733, %v735
  %v759 = vsel %vm748, %v735, %v737
  %v760 = vsel %vm748, %v737, %v739
  %v761 = vsel %vm748, %v739, %v741
  %v762 = vsel %vm748, %v741, %v743
  %v763 = vsel %vm748, %v743, %v745
  %v764 = vsel %vm748, %v745, %v747
  %781 = vrot.lane.b32.xlu0 %v76, 63
  %v782 = vpop.permute.xlu0 %781
  %783 = vrot.lane.b32.xlu0 %v77, 63
  %v784 = vpop.permute.xlu0 %783
  %785 = vrot.lane.b32.xlu0 %v78, 63
  %v786 = vpop.permute.xlu0 %785
  %787 = vrot.lane.b32.xlu0 %v79, 63
  %v788 = vpop.permute.xlu0 %787
  %789 = vrot.lane.b32.xlu0 %v80, 63
  %v790 = vpop.permute.xlu0 %789
  %791 = vrot.lane.b32.xlu0 %v81, 63
  %v792 = vpop.permute.xlu0 %791
  %793 = vrot.lane.b32.xlu0 %v82, 63
  %v794 = vpop.permute.xlu0 %793
  %795 = vrot.lane.b32.xlu0 %v83, 63
  %v796 = vpop.permute.xlu0 %795
  %797 = vrot.lane.b32.xlu0 %v84, 63
  %v798 = vpop.permute.xlu0 %797
  %799 = vrot.lane.b32.xlu0 %v85, 63
  %v800 = vpop.permute.xlu0 %799
  %801 = vrot.lane.b32.xlu0 %v86, 63
  %v802 = vpop.permute.xlu0 %801
  %803 = vrot.lane.b32.xlu0 %v87, 63
  %v804 = vpop.permute.xlu0 %803
  %805 = vrot.lane.b32.xlu0 %v88, 63
  %v806 = vpop.permute.xlu0 %805
  %807 = vrot.lane.b32.xlu0 %v89, 63
  %v808 = vpop.permute.xlu0 %807
  %809 = vrot.lane.b32.xlu0 %v90, 63
  %v810 = vpop.permute.xlu0 %809
  %811 = vrot.lane.b32.xlu0 %v91, 63
  %v812 = vpop.permute.xlu0 %811
  %813 = vrot.lane.b32.xlu0 %v92, 63
  %v814 = vpop.permute.xlu0 %813
  %vm815 = vcmask 515072
  %v816 = vsel %vm815, %v782, %v784
  %v817 = vsel %vm815, %v784, %v786
  %v818 = vsel %vm815, %v786, %v788
  %v819 = vsel %vm815, %v788, %v790
  %v820 = vsel %vm815, %v790, %v792
  %v821 = vsel %vm815, %v792, %v794
  %v822 = vsel %vm815, %v794, %v796
  %v823 = vsel %vm815, %v796, %v798
  %v824 = vsel %vm815, %v798, %v800
  %v825 = vsel %vm815, %v800, %v802
  %v826 = vsel %vm815, %v802, %v804
  %v827 = vsel %vm815, %v804, %v806
  %v828 = vsel %vm815, %v806, %v808
  %v829 = vsel %vm815, %v808, %v810
  %v830 = vsel %vm815, %v810, %v812
  %v831 = vsel %vm815, %v812, %v814
  %848 = vrot.lane.b32.xlu0 %v76, 62
  %v849 = vpop.permute.xlu0 %848
  %850 = vrot.lane.b32.xlu0 %v77, 62
  %v851 = vpop.permute.xlu0 %850
  %852 = vrot.lane.b32.xlu0 %v78, 62
  %v853 = vpop.permute.xlu0 %852
  %854 = vrot.lane.b32.xlu0 %v79, 62
  %v855 = vpop.permute.xlu0 %854
  %856 = vrot.lane.b32.xlu0 %v80, 62
  %v857 = vpop.permute.xlu0 %856
  %858 = vrot.lane.b32.xlu0 %v81, 62
  %v859 = vpop.permute.xlu0 %858
  %860 = vrot.lane.b32.xlu0 %v82, 62
  %v861 = vpop.permute.xlu0 %860
  %862 = vrot.lane.b32.xlu0 %v83, 62
  %v863 = vpop.permute.xlu0 %862
  %864 = vrot.lane.b32.xlu0 %v84, 62
  %v865 = vpop.permute.xlu0 %864
  %866 = vrot.lane.b32.xlu0 %v85, 62
  %v867 = vpop.permute.xlu0 %866
  %868 = vrot.lane.b32.xlu0 %v86, 62
  %v869 = vpop.permute.xlu0 %868
  %870 = vrot.lane.b32.xlu0 %v87, 62
  %v871 = vpop.permute.xlu0 %870
  %872 = vrot.lane.b32.xlu0 %v88, 62
  %v873 = vpop.permute.xlu0 %872
  %874 = vrot.lane.b32.xlu0 %v89, 62
  %v875 = vpop.permute.xlu0 %874
  %876 = vrot.lane.b32.xlu0 %v90, 62
  %v877 = vpop.permute.xlu0 %876
  %878 = vrot.lane.b32.xlu0 %v91, 62
  %v879 = vpop.permute.xlu0 %878
  %880 = vrot.lane.b32.xlu0 %v92, 62
  %v881 = vpop.permute.xlu0 %880
  %vm882 = vcmask 506880
  %v883 = vsel %vm882, %v849, %v851
  %v884 = vsel %vm882, %v851, %v853
  %v885 = vsel %vm882, %v853, %v855
  %v886 = vsel %vm882, %v855, %v857
  %v887 = vsel %vm882, %v857, %v859
  %v888 = vsel %vm882, %v859, %v861
  %v889 = vsel %vm882, %v861, %v863
  %v890 = vsel %vm882, %v863, %v865
  %v891 = vsel %vm882, %v865, %v867
  %v892 = vsel %vm882, %v867, %v869
  %v893 = vsel %vm882, %v869, %v871
  %v894 = vsel %vm882, %v871, %v873
  %v895 = vsel %vm882, %v873, %v875
  %v896 = vsel %vm882, %v875, %v877
  %v897 = vsel %vm882, %v877, %v879
  %v898 = vsel %vm882, %v879, %v881
  %915 = vrot.lane.b32.xlu0 %v76, 61
  %v916 = vpop.permute.xlu0 %915
  %917 = vrot.lane.b32.xlu0 %v77, 61
  %v918 = vpop.permute.xlu0 %917
  %919 = vrot.lane.b32.xlu0 %v78, 61
  %v920 = vpop.permute.xlu0 %919
  %921 = vrot.lane.b32.xlu0 %v79, 61
  %v922 = vpop.permute.xlu0 %921
  %923 = vrot.lane.b32.xlu0 %v80, 61
  %v924 = vpop.permute.xlu0 %923
  %925 = vrot.lane.b32.xlu0 %v81, 61
  %v926 = vpop.permute.xlu0 %925
  %927 = vrot.lane.b32.xlu0 %v82, 61
  %v928 = vpop.permute.xlu0 %927
  %929 = vrot.lane.b32.xlu0 %v83, 61
  %v930 = vpop.permute.xlu0 %929
  %931 = vrot.lane.b32.xlu0 %v84, 61
  %v932 = vpop.permute.xlu0 %931
  %933 = vrot.lane.b32.xlu0 %v85, 61
  %v934 = vpop.permute.xlu0 %933
  %935 = vrot.lane.b32.xlu0 %v86, 61
  %v936 = vpop.permute.xlu0 %935
  %937 = vrot.lane.b32.xlu0 %v87, 61
  %v938 = vpop.permute.xlu0 %937
  %939 = vrot.lane.b32.xlu0 %v88, 61
  %v940 = vpop.permute.xlu0 %939
  %941 = vrot.lane.b32.xlu0 %v89, 61
  %v942 = vpop.permute.xlu0 %941
  %943 = vrot.lane.b32.xlu0 %v90, 61
  %v944 = vpop.permute.xlu0 %943
  %945 = vrot.lane.b32.xlu0 %v91, 61
  %v946 = vpop.permute.xlu0 %945
  %947 = vrot.lane.b32.xlu0 %v92, 61
  %v948 = vpop.permute.xlu0 %947
  %vm949 = vcmask 498688
  %v950 = vsel %vm949, %v916, %v918
  %v951 = vsel %vm949, %v918, %v920
  %v952 = vsel %vm949, %v920, %v922
  %v953 = vsel %vm949, %v922, %v924
  %v954 = vsel %vm949, %v924, %v926
  %v955 = vsel %vm949, %v926, %v928
  %v956 = vsel %vm949, %v928, %v930
  %v957 = vsel %vm949, %v930, %v932
  %v958 = vsel %vm949, %v932, %v934
  %v959 = vsel %vm949, %v934, %v936
  %v960 = vsel %vm949, %v936, %v938
  %v961 = vsel %vm949, %v938, %v940
  %v962 = vsel %vm949, %v940, %v942
  %v963 = vsel %vm949, %v942, %v944
  %v964 = vsel %vm949, %v944, %v946
  %v965 = vsel %vm949, %v946, %v948
  %982 = vrot.lane.b32.xlu0 %v76, 60
  %v983 = vpop.permute.xlu0 %982
  %984 = vrot.lane.b32.xlu0 %v77, 60
  %v985 = vpop.permute.xlu0 %984
  %986 = vrot.lane.b32.xlu0 %v78, 60
  %v987 = vpop.permute.xlu0 %986
  %988 = vrot.lane.b32.xlu0 %v79, 60
  %v989 = vpop.permute.xlu0 %988
  %990 = vrot.lane.b32.xlu0 %v80, 60
  %v991 = vpop.permute.xlu0 %990
  %992 = vrot.lane.b32.xlu0 %v81, 60
  %v993 = vpop.permute.xlu0 %992
  %994 = vrot.lane.b32.xlu0 %v82, 60
  %v995 = vpop.permute.xlu0 %994
  %996 = vrot.lane.b32.xlu0 %v83, 60
  %v997 = vpop.permute.xlu0 %996
  %998 = vrot.lane.b32.xlu0 %v84, 60
  %v999 = vpop.permute.xlu0 %998
  %1000 = vrot.lane.b32.xlu0 %v85, 60
  %v1001 = vpop.permute.xlu0 %1000
  %1002 = vrot.lane.b32.xlu0 %v86, 60
  %v1003 = vpop.permute.xlu0 %1002
  %1004 = vrot.lane.b32.xlu0 %v87, 60
  %v1005 = vpop.permute.xlu0 %1004
  %1006 = vrot.lane.b32.xlu0 %v88, 60
  %v1007 = vpop.permute.xlu0 %1006
  %1008 = vrot.lane.b32.xlu0 %v89, 60
  %v1009 = vpop.permute.xlu0 %1008
  %1010 = vrot.lane.b32.xlu0 %v90, 60
  %v1011 = vpop.permute.xlu0 %1010
  %1012 = vrot.lane.b32.xlu0 %v91, 60
  %v1013 = vpop.permute.xlu0 %1012
  %1014 = vrot.lane.b32.xlu0 %v92, 60
  %v1015 = vpop.permute.xlu0 %1014
  %vm1016 = vcmask 490496
  %v1017 = vsel %vm1016, %v983, %v985
  %v1018 = vsel %vm1016, %v985, %v987
  %v1019 = vsel %vm1016, %v987, %v989
  %v1020 = vsel %vm1016, %v989, %v991
  %v1021 = vsel %vm1016, %v991, %v993
  %v1022 = vsel %vm1016, %v993, %v995
  %v1023 = vsel %vm1016, %v995, %v997
  %v1024 = vsel %vm1016, %v997, %v999
  %v1025 = vsel %vm1016, %v999, %v1001
  %v1026 = vsel %vm1016, %v1001, %v1003
  %v1027 = vsel %vm1016, %v1003, %v1005
  %v1028 = vsel %vm1016, %v1005, %v1007
  %v1029 = vsel %vm1016, %v1007, %v1009
  %v1030 = vsel %vm1016, %v1009, %v1011
  %v1031 = vsel %vm1016, %v1011, %v1013
  %v1032 = vsel %vm1016, %v1013, %v1015
  %1049 = vrot.lane.b32.xlu0 %v76, 32
  %v1050 = vpop.permute.xlu0 %1049
  %1051 = vrot.lane.b32.xlu0 %v77, 32
  %v1052 = vpop.permute.xlu0 %1051
  %1053 = vrot.lane.b32.xlu0 %v78, 32
  %v1054 = vpop.permute.xlu0 %1053
  %1055 = vrot.lane.b32.xlu0 %v79, 32
  %v1056 = vpop.permute.xlu0 %1055
  %1057 = vrot.lane.b32.xlu0 %v80, 32
  %v1058 = vpop.permute.xlu0 %1057
  %1059 = vrot.lane.b32.xlu0 %v81, 32
  %v1060 = vpop.permute.xlu0 %1059
  %1061 = vrot.lane.b32.xlu0 %v82, 32
  %v1062 = vpop.permute.xlu0 %1061
  %1063 = vrot.lane.b32.xlu0 %v83, 32
  %v1064 = vpop.permute.xlu0 %1063
  %1065 = vrot.lane.b32.xlu0 %v84, 32
  %v1066 = vpop.permute.xlu0 %1065
  %1067 = vrot.lane.b32.xlu0 %v85, 32
  %v1068 = vpop.permute.xlu0 %1067
  %1069 = vrot.lane.b32.xlu0 %v86, 32
  %v1070 = vpop.permute.xlu0 %1069
  %1071 = vrot.lane.b32.xlu0 %v87, 32
  %v1072 = vpop.permute.xlu0 %1071
  %1073 = vrot.lane.b32.xlu0 %v88, 32
  %v1074 = vpop.permute.xlu0 %1073
  %1075 = vrot.lane.b32.xlu0 %v89, 32
  %v1076 = vpop.permute.xlu0 %1075
  %1077 = vrot.lane.b32.xlu0 %v90, 32
  %v1078 = vpop.permute.xlu0 %1077
  %1079 = vrot.lane.b32.xlu0 %v91, 32
  %v1080 = vpop.permute.xlu0 %1079
  %1081 = vrot.lane.b32.xlu0 %v92, 32
  %v1082 = vpop.permute.xlu0 %1081
  %vm1083 = vcmask 261120
  %v1084 = vsel %vm1083, %v1050, %v1052
  %v1085 = vsel %vm1083, %v1052, %v1054
  %v1086 = vsel %vm1083, %v1054, %v1056
  %v1087 = vsel %vm1083, %v1056, %v1058
  %v1088 = vsel %vm1083, %v1058, %v1060
  %v1089 = vsel %vm1083, %v1060, %v1062
  %v1090 = vsel %vm1083, %v1062, %v1064
  %v1091 = vsel %vm1083, %v1064, %v1066
  %v1092 = vsel %vm1083, %v1066, %v1068
  %v1093 = vsel %vm1083, %v1068, %v1070
  %v1094 = vsel %vm1083, %v1070, %v1072
  %v1095 = vsel %vm1083, %v1072, %v1074
  %v1096 = vsel %vm1083, %v1074, %v1076
  %v1097 = vsel %vm1083, %v1076, %v1078
  %v1098 = vsel %vm1083, %v1078, %v1080
  %v1099 = vsel %vm1083, %v1080, %v1082
  %1116 = vrot.lane.b32.xlu0 %v77, 97
  %v1117 = vpop.permute.xlu0 %1116
  %1118 = vrot.lane.b32.xlu0 %v78, 97
  %v1119 = vpop.permute.xlu0 %1118
  %1120 = vrot.lane.b32.xlu0 %v79, 97
  %v1121 = vpop.permute.xlu0 %1120
  %1122 = vrot.lane.b32.xlu0 %v80, 97
  %v1123 = vpop.permute.xlu0 %1122
  %1124 = vrot.lane.b32.xlu0 %v81, 97
  %v1125 = vpop.permute.xlu0 %1124
  %1126 = vrot.lane.b32.xlu0 %v82, 97
  %v1127 = vpop.permute.xlu0 %1126
  %1128 = vrot.lane.b32.xlu0 %v83, 97
  %v1129 = vpop.permute.xlu0 %1128
  %1130 = vrot.lane.b32.xlu0 %v84, 97
  %v1131 = vpop.permute.xlu0 %1130
  %1132 = vrot.lane.b32.xlu0 %v85, 97
  %v1133 = vpop.permute.xlu0 %1132
  %1134 = vrot.lane.b32.xlu0 %v86, 97
  %v1135 = vpop.permute.xlu0 %1134
  %1136 = vrot.lane.b32.xlu0 %v87, 97
  %v1137 = vpop.permute.xlu0 %1136
  %1138 = vrot.lane.b32.xlu0 %v88, 97
  %v1139 = vpop.permute.xlu0 %1138
  %1140 = vrot.lane.b32.xlu0 %v89, 97
  %v1141 = vpop.permute.xlu0 %1140
  %1142 = vrot.lane.b32.xlu0 %v90, 97
  %v1143 = vpop.permute.xlu0 %1142
  %1144 = vrot.lane.b32.xlu0 %v91, 97
  %v1145 = vpop.permute.xlu0 %1144
  %1146 = vrot.lane.b32.xlu0 %v92, 97
  %v1147 = vpop.permute.xlu0 %1146
  %vm1148 = vcmask 793600
  %v1149 = vsel %vm1148, %v1117, %v1119
  %v1150 = vsel %vm1148, %v1119, %v1121
  %v1151 = vsel %vm1148, %v1121, %v1123
  %v1152 = vsel %vm1148, %v1123, %v1125
  %v1153 = vsel %vm1148, %v1125, %v1127
  %v1154 = vsel %vm1148, %v1127, %v1129
  %v1155 = vsel %vm1148, %v1129, %v1131
  %v1156 = vsel %vm1148, %v1131, %v1133
  %v1157 = vsel %vm1148, %v1133, %v1135
  %v1158 = vsel %vm1148, %v1135, %v1137
  %v1159 = vsel %vm1148, %v1137, %v1139
  %v1160 = vsel %vm1148, %v1139, %v1141
  %v1161 = vsel %vm1148, %v1141, %v1143
  %v1162 = vsel %vm1148, %v1143, %v1145
  %v1163 = vsel %vm1148, %v1145, %v1147
  %1165 = vrot.lane.b32.xlu0 %v93, 96
  %v1166 = vpop.permute.xlu0 %1165
  %v1167 = vsel %vm413, %v412, %v1166
  %1168 = vrot.lane.b32.xlu0 %v93, 95
  %v1169 = vpop.permute.xlu0 %1168
  %v1170 = vsel %vm480, %v479, %v1169
  %1171 = vrot.lane.b32.xlu0 %v93, 94
  %v1172 = vpop.permute.xlu0 %1171
  %v1173 = vsel %vm547, %v546, %v1172
  %1174 = vrot.lane.b32.xlu0 %v93, 93
  %v1175 = vpop.permute.xlu0 %1174
  %v1176 = vsel %vm614, %v613, %v1175
  %1177 = vrot.lane.b32.xlu0 %v76, 31
  %v1178 = vpop.permute.xlu0 %1177
  %1179 = vrot.lane.b32.xlu0 %v77, 31
  %v1180 = vpop.permute.xlu0 %1179
  %1181 = vrot.lane.b32.xlu0 %v78, 31
  %v1182 = vpop.permute.xlu0 %1181
  %1183 = vrot.lane.b32.xlu0 %v79, 31
  %v1184 = vpop.permute.xlu0 %1183
  %1185 = vrot.lane.b32.xlu0 %v80, 31
  %v1186 = vpop.permute.xlu0 %1185
  %1187 = vrot.lane.b32.xlu0 %v81, 31
  %v1188 = vpop.permute.xlu0 %1187
  %1189 = vrot.lane.b32.xlu0 %v82, 31
  %v1190 = vpop.permute.xlu0 %1189
  %1191 = vrot.lane.b32.xlu0 %v83, 31
  %v1192 = vpop.permute.xlu0 %1191
  %1193 = vrot.lane.b32.xlu0 %v84, 31
  %v1194 = vpop.permute.xlu0 %1193
  %1195 = vrot.lane.b32.xlu0 %v85, 31
  %v1196 = vpop.permute.xlu0 %1195
  %1197 = vrot.lane.b32.xlu0 %v86, 31
  %v1198 = vpop.permute.xlu0 %1197
  %1199 = vrot.lane.b32.xlu0 %v87, 31
  %v1200 = vpop.permute.xlu0 %1199
  %1201 = vrot.lane.b32.xlu0 %v88, 31
  %v1202 = vpop.permute.xlu0 %1201
  %1203 = vrot.lane.b32.xlu0 %v89, 31
  %v1204 = vpop.permute.xlu0 %1203
  %1205 = vrot.lane.b32.xlu0 %v90, 31
  %v1206 = vpop.permute.xlu0 %1205
  %1207 = vrot.lane.b32.xlu0 %v91, 31
  %v1208 = vpop.permute.xlu0 %1207
  %1209 = vrot.lane.b32.xlu0 %v92, 31
  %v1210 = vpop.permute.xlu0 %1209
  %1211 = vrot.lane.b32.xlu0 %v146, 31
  %v1212 = vpop.permute.xlu0 %1211
  %1213 = vrot.lane.b32.xlu0 %v147, 31
  %v1214 = vpop.permute.xlu0 %1213
  %1215 = vrot.lane.b32.xlu0 %v148, 31
  %v1216 = vpop.permute.xlu0 %1215
  %1217 = vrot.lane.b32.xlu0 %v149, 31
  %v1218 = vpop.permute.xlu0 %1217
  %1219 = vrot.lane.b32.xlu0 %v150, 31
  %v1220 = vpop.permute.xlu0 %1219
  %1221 = vrot.lane.b32.xlu0 %v151, 31
  %v1222 = vpop.permute.xlu0 %1221
  %1223 = vrot.lane.b32.xlu0 %v152, 31
  %v1224 = vpop.permute.xlu0 %1223
  %1225 = vrot.lane.b32.xlu0 %v153, 31
  %v1226 = vpop.permute.xlu0 %1225
  %1227 = vrot.lane.b32.xlu0 %v154, 31
  %v1228 = vpop.permute.xlu0 %1227
  %1229 = vrot.lane.b32.xlu0 %v155, 31
  %v1230 = vpop.permute.xlu0 %1229
  %1231 = vrot.lane.b32.xlu0 %v156, 31
  %v1232 = vpop.permute.xlu0 %1231
  %1233 = vrot.lane.b32.xlu0 %v157, 31
  %v1234 = vpop.permute.xlu0 %1233
  %1235 = vrot.lane.b32.xlu0 %v158, 31
  %v1236 = vpop.permute.xlu0 %1235
  %1237 = vrot.lane.b32.xlu0 %v159, 31
  %v1238 = vpop.permute.xlu0 %1237
  %1239 = vrot.lane.b32.xlu0 %v160, 31
  %v1240 = vpop.permute.xlu0 %1239
  %1241 = vrot.lane.b32.xlu0 %v161, 31
  %v1242 = vpop.permute.xlu0 %1241
  %1243 = vrot.lane.b32.xlu0 %v144, 31
  %v1244 = vpop.permute.xlu0 %1243
  %1245 = vrot.lane.b32.xlu0 %v213, 31
  %v1246 = vpop.permute.xlu0 %1245
  %1247 = vrot.lane.b32.xlu0 %v214, 31
  %v1248 = vpop.permute.xlu0 %1247
  %1249 = vrot.lane.b32.xlu0 %v215, 31
  %v1250 = vpop.permute.xlu0 %1249
  %1251 = vrot.lane.b32.xlu0 %v216, 31
  %v1252 = vpop.permute.xlu0 %1251
  %1253 = vrot.lane.b32.xlu0 %v217, 31
  %v1254 = vpop.permute.xlu0 %1253
  %1255 = vrot.lane.b32.xlu0 %v218, 31
  %v1256 = vpop.permute.xlu0 %1255
  %1257 = vrot.lane.b32.xlu0 %v219, 31
  %v1258 = vpop.permute.xlu0 %1257
  %1259 = vrot.lane.b32.xlu0 %v220, 31
  %v1260 = vpop.permute.xlu0 %1259
  %1261 = vrot.lane.b32.xlu0 %v221, 31
  %v1262 = vpop.permute.xlu0 %1261
  %1263 = vrot.lane.b32.xlu0 %v222, 31
  %v1264 = vpop.permute.xlu0 %1263
  %1265 = vrot.lane.b32.xlu0 %v223, 31
  %v1266 = vpop.permute.xlu0 %1265
  %1267 = vrot.lane.b32.xlu0 %v224, 31
  %v1268 = vpop.permute.xlu0 %1267
  %1269 = vrot.lane.b32.xlu0 %v225, 31
  %v1270 = vpop.permute.xlu0 %1269
  %1271 = vrot.lane.b32.xlu0 %v226, 31
  %v1272 = vpop.permute.xlu0 %1271
  %1273 = vrot.lane.b32.xlu0 %v227, 31
  %v1274 = vpop.permute.xlu0 %1273
  %1275 = vrot.lane.b32.xlu0 %v228, 31
  %v1276 = vpop.permute.xlu0 %1275
  %1277 = vrot.lane.b32.xlu0 %v211, 31
  %v1278 = vpop.permute.xlu0 %1277
  %1279 = vrot.lane.b32.xlu0 %v280, 31
  %v1280 = vpop.permute.xlu0 %1279
  %1281 = vrot.lane.b32.xlu0 %v281, 31
  %v1282 = vpop.permute.xlu0 %1281
  %1283 = vrot.lane.b32.xlu0 %v282, 31
  %v1284 = vpop.permute.xlu0 %1283
  %1285 = vrot.lane.b32.xlu0 %v283, 31
  %v1286 = vpop.permute.xlu0 %1285
  %1287 = vrot.lane.b32.xlu0 %v284, 31
  %v1288 = vpop.permute.xlu0 %1287
  %1289 = vrot.lane.b32.xlu0 %v285, 31
  %v1290 = vpop.permute.xlu0 %1289
  %1291 = vrot.lane.b32.xlu0 %v286, 31
  %v1292 = vpop.permute.xlu0 %1291
  %1293 = vrot.lane.b32.xlu0 %v287, 31
  %v1294 = vpop.permute.xlu0 %1293
  %1295 = vrot.lane.b32.xlu0 %v288, 31
  %v1296 = vpop.permute.xlu0 %1295
  %1297 = vrot.lane.b32.xlu0 %v289, 31
  %v1298 = vpop.permute.xlu0 %1297
  %1299 = vrot.lane.b32.xlu0 %v290, 31
  %v1300 = vpop.permute.xlu0 %1299
  %1301 = vrot.lane.b32.xlu0 %v291, 31
  %v1302 = vpop.permute.xlu0 %1301
  %1303 = vrot.lane.b32.xlu0 %v292, 31
  %v1304 = vpop.permute.xlu0 %1303
  %1305 = vrot.lane.b32.xlu0 %v293, 31
  %v1306 = vpop.permute.xlu0 %1305
  %1307 = vrot.lane.b32.xlu0 %v294, 31
  %v1308 = vpop.permute.xlu0 %1307
  %1309 = vrot.lane.b32.xlu0 %v295, 31
  %v1310 = vpop.permute.xlu0 %1309
  %1311 = vrot.lane.b32.xlu0 %v278, 31
  %v1312 = vpop.permute.xlu0 %1311
  %1313 = vrot.lane.b32.xlu0 %v1117, 31
  %v1314 = vpop.permute.xlu0 %1313
  %1315 = vrot.lane.b32.xlu0 %v1149, 31
  %v1316 = vpop.permute.xlu0 %1315
  %1317 = vrot.lane.b32.xlu0 %v1150, 31
  %v1318 = vpop.permute.xlu0 %1317
  %1319 = vrot.lane.b32.xlu0 %v1151, 31
  %v1320 = vpop.permute.xlu0 %1319
  %1321 = vrot.lane.b32.xlu0 %v1152, 31
  %v1322 = vpop.permute.xlu0 %1321
  %1323 = vrot.lane.b32.xlu0 %v1153, 31
  %v1324 = vpop.permute.xlu0 %1323
  %1325 = vrot.lane.b32.xlu0 %v1154, 31
  %v1326 = vpop.permute.xlu0 %1325
  %1327 = vrot.lane.b32.xlu0 %v1155, 31
  %v1328 = vpop.permute.xlu0 %1327
  %1329 = vrot.lane.b32.xlu0 %v1156, 31
  %v1330 = vpop.permute.xlu0 %1329
  %1331 = vrot.lane.b32.xlu0 %v1157, 31
  %v1332 = vpop.permute.xlu0 %1331
  %1333 = vrot.lane.b32.xlu0 %v1158, 31
  %v1334 = vpop.permute.xlu0 %1333
  %1335 = vrot.lane.b32.xlu0 %v1159, 31
  %v1336 = vpop.permute.xlu0 %1335
  %1337 = vrot.lane.b32.xlu0 %v1160, 31
  %v1338 = vpop.permute.xlu0 %1337
  %1339 = vrot.lane.b32.xlu0 %v1161, 31
  %v1340 = vpop.permute.xlu0 %1339
  %1341 = vrot.lane.b32.xlu0 %v1162, 31
  %v1342 = vpop.permute.xlu0 %1341
  %1343 = vrot.lane.b32.xlu0 %v1163, 31
  %v1344 = vpop.permute.xlu0 %1343
  %1345 = vrot.lane.b32.xlu0 %v1147, 31
  %v1346 = vpop.permute.xlu0 %1345
  %1347 = vrot.lane.b32.xlu0 %v382, 31
  %v1348 = vpop.permute.xlu0 %1347
  %1349 = vrot.lane.b32.xlu0 %v415, 31
  %v1350 = vpop.permute.xlu0 %1349
  %1351 = vrot.lane.b32.xlu0 %v416, 31
  %v1352 = vpop.permute.xlu0 %1351
  %1353 = vrot.lane.b32.xlu0 %v417, 31
  %v1354 = vpop.permute.xlu0 %1353
  %1355 = vrot.lane.b32.xlu0 %v418, 31
  %v1356 = vpop.permute.xlu0 %1355
  %1357 = vrot.lane.b32.xlu0 %v419, 31
  %v1358 = vpop.permute.xlu0 %1357
  %1359 = vrot.lane.b32.xlu0 %v420, 31
  %v1360 = vpop.permute.xlu0 %1359
  %1361 = vrot.lane.b32.xlu0 %v421, 31
  %v1362 = vpop.permute.xlu0 %1361
  %1363 = vrot.lane.b32.xlu0 %v422, 31
  %v1364 = vpop.permute.xlu0 %1363
  %1365 = vrot.lane.b32.xlu0 %v423, 31
  %v1366 = vpop.permute.xlu0 %1365
  %1367 = vrot.lane.b32.xlu0 %v424, 31
  %v1368 = vpop.permute.xlu0 %1367
  %1369 = vrot.lane.b32.xlu0 %v425, 31
  %v1370 = vpop.permute.xlu0 %1369
  %1371 = vrot.lane.b32.xlu0 %v426, 31
  %v1372 = vpop.permute.xlu0 %1371
  %1373 = vrot.lane.b32.xlu0 %v427, 31
  %v1374 = vpop.permute.xlu0 %1373
  %1375 = vrot.lane.b32.xlu0 %v428, 31
  %v1376 = vpop.permute.xlu0 %1375
  %1377 = vrot.lane.b32.xlu0 %v429, 31
  %v1378 = vpop.permute.xlu0 %1377
  %1379 = vrot.lane.b32.xlu0 %v1167, 31
  %v1380 = vpop.permute.xlu0 %1379
  %1381 = vrot.lane.b32.xlu0 %v449, 31
  %v1382 = vpop.permute.xlu0 %1381
  %1383 = vrot.lane.b32.xlu0 %v482, 31
  %v1384 = vpop.permute.xlu0 %1383
  %1385 = vrot.lane.b32.xlu0 %v483, 31
  %v1386 = vpop.permute.xlu0 %1385
  %1387 = vrot.lane.b32.xlu0 %v484, 31
  %v1388 = vpop.permute.xlu0 %1387
  %1389 = vrot.lane.b32.xlu0 %v485, 31
  %v1390 = vpop.permute.xlu0 %1389
  %1391 = vrot.lane.b32.xlu0 %v486, 31
  %v1392 = vpop.permute.xlu0 %1391
  %1393 = vrot.lane.b32.xlu0 %v487, 31
  %v1394 = vpop.permute.xlu0 %1393
  %1395 = vrot.lane.b32.xlu0 %v488, 31
  %v1396 = vpop.permute.xlu0 %1395
  %1397 = vrot.lane.b32.xlu0 %v489, 31
  %v1398 = vpop.permute.xlu0 %1397
  %1399 = vrot.lane.b32.xlu0 %v490, 31
  %v1400 = vpop.permute.xlu0 %1399
  %1401 = vrot.lane.b32.xlu0 %v491, 31
  %v1402 = vpop.permute.xlu0 %1401
  %1403 = vrot.lane.b32.xlu0 %v492, 31
  %v1404 = vpop.permute.xlu0 %1403
  %1405 = vrot.lane.b32.xlu0 %v493, 31
  %v1406 = vpop.permute.xlu0 %1405
  %1407 = vrot.lane.b32.xlu0 %v494, 31
  %v1408 = vpop.permute.xlu0 %1407
  %1409 = vrot.lane.b32.xlu0 %v495, 31
  %v1410 = vpop.permute.xlu0 %1409
  %1411 = vrot.lane.b32.xlu0 %v496, 31
  %v1412 = vpop.permute.xlu0 %1411
  %1413 = vrot.lane.b32.xlu0 %v1170, 31
  %v1414 = vpop.permute.xlu0 %1413
  %1415 = vrot.lane.b32.xlu0 %v516, 31
  %v1416 = vpop.permute.xlu0 %1415
  %1417 = vrot.lane.b32.xlu0 %v549, 31
  %v1418 = vpop.permute.xlu0 %1417
  %1419 = vrot.lane.b32.xlu0 %v550, 31
  %v1420 = vpop.permute.xlu0 %1419
  %1421 = vrot.lane.b32.xlu0 %v551, 31
  %v1422 = vpop.permute.xlu0 %1421
  %1423 = vrot.lane.b32.xlu0 %v552, 31
  %v1424 = vpop.permute.xlu0 %1423
  %1425 = vrot.lane.b32.xlu0 %v553, 31
  %v1426 = vpop.permute.xlu0 %1425
  %1427 = vrot.lane.b32.xlu0 %v554, 31
  %v1428 = vpop.permute.xlu0 %1427
  %1429 = vrot.lane.b32.xlu0 %v555, 31
  %v1430 = vpop.permute.xlu0 %1429
  %1431 = vrot.lane.b32.xlu0 %v556, 31
  %v1432 = vpop.permute.xlu0 %1431
  %1433 = vrot.lane.b32.xlu0 %v557, 31
  %v1434 = vpop.permute.xlu0 %1433
  %1435 = vrot.lane.b32.xlu0 %v558, 31
  %v1436 = vpop.permute.xlu0 %1435
  %1437 = vrot.lane.b32.xlu0 %v559, 31
  %v1438 = vpop.permute.xlu0 %1437
  %1439 = vrot.lane.b32.xlu0 %v560, 31
  %v1440 = vpop.permute.xlu0 %1439
  %1441 = vrot.lane.b32.xlu0 %v561, 31
  %v1442 = vpop.permute.xlu0 %1441
  %1443 = vrot.lane.b32.xlu0 %v562, 31
  %v1444 = vpop.permute.xlu0 %1443
  %1445 = vrot.lane.b32.xlu0 %v563, 31
  %v1446 = vpop.permute.xlu0 %1445
  %1447 = vrot.lane.b32.xlu0 %v1173, 31
  %v1448 = vpop.permute.xlu0 %1447
  %1449 = vrot.lane.b32.xlu0 %v583, 31
  %v1450 = vpop.permute.xlu0 %1449
  %1451 = vrot.lane.b32.xlu0 %v616, 31
  %v1452 = vpop.permute.xlu0 %1451
  %1453 = vrot.lane.b32.xlu0 %v617, 31
  %v1454 = vpop.permute.xlu0 %1453
  %1455 = vrot.lane.b32.xlu0 %v618, 31
  %v1456 = vpop.permute.xlu0 %1455
  %1457 = vrot.lane.b32.xlu0 %v619, 31
  %v1458 = vpop.permute.xlu0 %1457
  %1459 = vrot.lane.b32.xlu0 %v620, 31
  %v1460 = vpop.permute.xlu0 %1459
  %1461 = vrot.lane.b32.xlu0 %v621, 31
  %v1462 = vpop.permute.xlu0 %1461
  %1463 = vrot.lane.b32.xlu0 %v622, 31
  %v1464 = vpop.permute.xlu0 %1463
  %1465 = vrot.lane.b32.xlu0 %v623, 31
  %v1466 = vpop.permute.xlu0 %1465
  %1467 = vrot.lane.b32.xlu0 %v624, 31
  %v1468 = vpop.permute.xlu0 %1467
  %1469 = vrot.lane.b32.xlu0 %v625, 31
  %v1470 = vpop.permute.xlu0 %1469
  %1471 = vrot.lane.b32.xlu0 %v626, 31
  %v1472 = vpop.permute.xlu0 %1471
  %1473 = vrot.lane.b32.xlu0 %v627, 31
  %v1474 = vpop.permute.xlu0 %1473
  %1475 = vrot.lane.b32.xlu0 %v628, 31
  %v1476 = vpop.permute.xlu0 %1475
  %1477 = vrot.lane.b32.xlu0 %v629, 31
  %v1478 = vpop.permute.xlu0 %1477
  %1479 = vrot.lane.b32.xlu0 %v630, 31
  %v1480 = vpop.permute.xlu0 %1479
  %1481 = vrot.lane.b32.xlu0 %v1176, 31
  %v1482 = vpop.permute.xlu0 %1481
  %vm1483 = vcmask 252928
  %v1484 = vsel %vm1483, %v1178, %v1180
  %v1485 = vsel %vm1483, %v1180, %v1182
  %v1486 = vsel %vm1483, %v1182, %v1184
  %v1487 = vsel %vm1483, %v1184, %v1186
  %v1488 = vsel %vm1483, %v1186, %v1188
  %v1489 = vsel %vm1483, %v1188, %v1190
  %v1490 = vsel %vm1483, %v1190, %v1192
  %v1491 = vsel %vm1483, %v1192, %v1194
  %v1492 = vsel %vm1483, %v1194, %v1196
  %v1493 = vsel %vm1483, %v1196, %v1198
  %v1494 = vsel %vm1483, %v1198, %v1200
  %v1495 = vsel %vm1483, %v1200, %v1202
  %v1496 = vsel %vm1483, %v1202, %v1204
  %v1497 = vsel %vm1483, %v1204, %v1206
  %v1498 = vsel %vm1483, %v1206, %v1208
  %v1499 = vsel %vm1483, %v1208, %v1210
  %v1500 = vsel %vm1483, %v1212, %v1214
  %v1501 = vsel %vm1483, %v1214, %v1216
  %v1502 = vsel %vm1483, %v1216, %v1218
  %v1503 = vsel %vm1483, %v1218, %v1220
  %v1504 = vsel %vm1483, %v1220, %v1222
  %v1505 = vsel %vm1483, %v1222, %v1224
  %v1506 = vsel %vm1483, %v1224, %v1226
  %v1507 = vsel %vm1483, %v1226, %v1228
  %v1508 = vsel %vm1483, %v1228, %v1230
  %v1509 = vsel %vm1483, %v1230, %v1232
  %v1510 = vsel %vm1483, %v1232, %v1234
  %v1511 = vsel %vm1483, %v1234, %v1236
  %v1512 = vsel %vm1483, %v1236, %v1238
  %v1513 = vsel %vm1483, %v1238, %v1240
  %v1514 = vsel %vm1483, %v1240, %v1242
  %v1515 = vsel %vm1483, %v1242, %v1244
  %v1516 = vsel %vm1483, %v1246, %v1248
  %v1517 = vsel %vm1483, %v1248, %v1250
  %v1518 = vsel %vm1483, %v1250, %v1252
  %v1519 = vsel %vm1483, %v1252, %v1254
  %v1520 = vsel %vm1483, %v1254, %v1256
  %v1521 = vsel %vm1483, %v1256, %v1258
  %v1522 = vsel %vm1483, %v1258, %v1260
  %v1523 = vsel %vm1483, %v1260, %v1262
  %v1524 = vsel %vm1483, %v1262, %v1264
  %v1525 = vsel %vm1483, %v1264, %v1266
  %v1526 = vsel %vm1483, %v1266, %v1268
  %v1527 = vsel %vm1483, %v1268, %v1270
  %v1528 = vsel %vm1483, %v1270, %v1272
  %v1529 = vsel %vm1483, %v1272, %v1274
  %v1530 = vsel %vm1483, %v1274, %v1276
  %v1531 = vsel %vm1483, %v1276, %v1278
  %v1532 = vsel %vm1483, %v1280, %v1282
  %v1533 = vsel %vm1483, %v1282, %v1284
  %v1534 = vsel %vm1483, %v1284, %v1286
  %v1535 = vsel %vm1483, %v1286, %v1288
  %v1536 = vsel %vm1483, %v1288, %v1290
  %v1537 = vsel %vm1483, %v1290, %v1292
  %v1538 = vsel %vm1483, %v1292, %v1294
  %v1539 = vsel %vm1483, %v1294, %v1296
  %v1540 = vsel %vm1483, %v1296, %v1298
  %v1541 = vsel %vm1483, %v1298, %v1300
  %v1542 = vsel %vm1483, %v1300, %v1302
  %v1543 = vsel %vm1483, %v1302, %v1304
  %v1544 = vsel %vm1483, %v1304, %v1306
  %v1545 = vsel %vm1483, %v1306, %v1308
  %v1546 = vsel %vm1483, %v1308, %v1310
  %v1547 = vsel %vm1483, %v1310, %v1312
  %v1548 = vsel %vm1483, %v1314, %v1316
  %v1549 = vsel %vm1483, %v1316, %v1318
  %v1550 = vsel %vm1483, %v1318, %v1320
  %v1551 = vsel %vm1483, %v1320, %v1322
  %v1552 = vsel %vm1483, %v1322, %v1324
  %v1553 = vsel %vm1483, %v1324, %v1326
  %v1554 = vsel %vm1483, %v1326, %v1328
  %v1555 = vsel %vm1483, %v1328, %v1330
  %v1556 = vsel %vm1483, %v1330, %v1332
  %v1557 = vsel %vm1483, %v1332, %v1334
  %v1558 = vsel %vm1483, %v1334, %v1336
  %v1559 = vsel %vm1483, %v1336, %v1338
  %v1560 = vsel %vm1483, %v1338, %v1340
  %v1561 = vsel %vm1483, %v1340, %v1342
  %v1562 = vsel %vm1483, %v1342, %v1344
  %v1563 = vsel %vm1483, %v1344, %v1346
  %v1564 = vsel %vm1483, %v1348, %v1350
  %v1565 = vsel %vm1483, %v1350, %v1352
  %v1566 = vsel %vm1483, %v1352, %v1354
  %v1567 = vsel %vm1483, %v1354, %v1356
  %v1568 = vsel %vm1483, %v1356, %v1358
  %v1569 = vsel %vm1483, %v1358, %v1360
  %v1570 = vsel %vm1483, %v1360, %v1362
  %v1571 = vsel %vm1483, %v1362, %v1364
  %v1572 = vsel %vm1483, %v1364, %v1366
  %v1573 = vsel %vm1483, %v1366, %v1368
  %v1574 = vsel %vm1483, %v1368, %v1370
  %v1575 = vsel %vm1483, %v1370, %v1372
  %v1576 = vsel %vm1483, %v1372, %v1374
  %v1577 = vsel %vm1483, %v1374, %v1376
  %v1578 = vsel %vm1483, %v1376, %v1378
  %v1579 = vsel %vm1483, %v1378, %v1380
  %v1580 = vsel %vm1483, %v1382, %v1384
  %v1581 = vsel %vm1483, %v1384, %v1386
  %v1582 = vsel %vm1483, %v1386, %v1388
  %v1583 = vsel %vm1483, %v1388, %v1390
  %v1584 = vsel %vm1483, %v1390, %v1392
  %v1585 = vsel %vm1483, %v1392, %v1394
  %v1586 = vsel %vm1483, %v1394, %v1396
  %v1587 = vsel %vm1483, %v1396, %v1398
  %v1588 = vsel %vm1483, %v1398, %v1400
  %v1589 = vsel %vm1483, %v1400, %v1402
  %v1590 = vsel %vm1483, %v1402, %v1404
  %v1591 = vsel %vm1483, %v1404, %v1406
  %v1592 = vsel %vm1483, %v1406, %v1408
  %v1593 = vsel %vm1483, %v1408, %v1410
  %v1594 = vsel %vm1483, %v1410, %v1412
  %v1595 = vsel %vm1483, %v1412, %v1414
  %v1596 = vsel %vm1483, %v1416, %v1418
  %v1597 = vsel %vm1483, %v1418, %v1420
  %v1598 = vsel %vm1483, %v1420, %v1422
  %v1599 = vsel %vm1483, %v1422, %v1424
  %v1600 = vsel %vm1483, %v1424, %v1426
  %v1601 = vsel %vm1483, %v1426, %v1428
  %v1602 = vsel %vm1483, %v1428, %v1430
  %v1603 = vsel %vm1483, %v1430, %v1432
  %v1604 = vsel %vm1483, %v1432, %v1434
  %v1605 = vsel %vm1483, %v1434, %v1436
  %v1606 = vsel %vm1483, %v1436, %v1438
  %v1607 = vsel %vm1483, %v1438, %v1440
  %v1608 = vsel %vm1483, %v1440, %v1442
  %v1609 = vsel %vm1483, %v1442, %v1444
  %v1610 = vsel %vm1483, %v1444, %v1446
  %v1611 = vsel %vm1483, %v1446, %v1448
  %v1612 = vsel %vm1483, %v1450, %v1452
  %v1613 = vsel %vm1483, %v1452, %v1454
  %v1614 = vsel %vm1483, %v1454, %v1456
  %v1615 = vsel %vm1483, %v1456, %v1458
  %v1616 = vsel %vm1483, %v1458, %v1460
  %v1617 = vsel %vm1483, %v1460, %v1462
  %v1618 = vsel %vm1483, %v1462, %v1464
  %v1619 = vsel %vm1483, %v1464, %v1466
  %v1620 = vsel %vm1483, %v1466, %v1468
  %v1621 = vsel %vm1483, %v1468, %v1470
  %v1622 = vsel %vm1483, %v1470, %v1472
  %v1623 = vsel %vm1483, %v1472, %v1474
  %v1624 = vsel %vm1483, %v1474, %v1476
  %v1625 = vsel %vm1483, %v1476, %v1478
  %v1626 = vsel %vm1483, %v1478, %v1480
  %v1627 = vsel %vm1483, %v1480, %v1482
  %v1772 = vld [vmem:[%s1] sm:$0xff]
  %v1773 = vld [vmem:[%s1 + $0x8] sm:$0xff]
  %v1774 = vld [vmem:[%s2] sm:$0xff]
  %1776 = vset.pattern.permute.xlu0 0
  %1777 = vperm.xlu0 %1776, %v1774
  %v1778 = vpop.permute.xlu0 %1777
  %vm1780 = vcmask 588800
  %v1782 = vsel %vm1780, %v1773, 0
  %1784 = vmatpush.msra.mxu0 %v1084
  %1785 = vmatpush.msra.mxu0 %v1017
  %1786 = vmatpush.msra.mxu0 %v950
  %1787 = vmatpush.msra.mxu0 %v883
  %1788 = vmatpush.msra.mxu0 %v816
  %1789 = vmatpush.msra.mxu0 %v749
  %1790 = vmatpush.msra.mxu0 %v682
  %1791 = vmatpush.msra.mxu0 %v615
  %1792 = vmatpush.msra.mxu0 %v548
  %1793 = vmatpush.msra.mxu0 %v481
  %1794 = vmatpush.msra.mxu0 %v414
  %1795 = vmatpush.msra.mxu0 %v347
  %1796 = vmatpush.msra.mxu0 %v280
  %1797 = vmatpush.msra.mxu0 %v213
  %1798 = vmatpush.msra.mxu0 %v146
  %1799 = vmatpush.msra.mxu0 %v76
  %1800 = vmatmul.f32.gmra.mxu0 %v1772
  %v1801 = vpop.f32.mrf.mxu0
  %v1802 = vadd.f32 %v1778, %v1801
  %1803 = vdwg.mxu0
  %1804 = vmatpush.msra.mxu0 0.0
  %1805 = vmatpush.msra.mxu0 0.0
  %1806 = vmatpush.msra.mxu0 0.0
  %1807 = vmatpush.msra.mxu0 0.0
  %1808 = vmatpush.msra.mxu0 0.0
  %1809 = vmatpush.msra.mxu0 0.0
  %1810 = vmatpush.msra.mxu0 0.0
  %1811 = vmatpush.msra.mxu0 %v1612
  %1812 = vmatpush.msra.mxu0 %v1596
  %1813 = vmatpush.msra.mxu0 %v1580
  %1814 = vmatpush.msra.mxu0 %v1564
  %1815 = vmatpush.msra.mxu0 %v1548
  %1816 = vmatpush.msra.mxu0 %v1532
  %1817 = vmatpush.msra.mxu0 %v1516
  %1818 = vmatpush.msra.mxu0 %v1500
  %1819 = vmatpush.msra.mxu0 %v1484
  %1820 = vmatmul.f32.gmra.mxu0 %v1782
  %v1821 = vpop.f32.mrf.mxu0
  %v1822 = vadd.f32 %v1802, %v1821
  %1823 = vdwg.mxu0
  %1824 = vmatpush.msra.mxu0 %v1085
  %1825 = vmatpush.msra.mxu0 %v1018
  %1826 = vmatpush.msra.mxu0 %v951
  %1827 = vmatpush.msra.mxu0 %v884
  %1828 = vmatpush.msra.mxu0 %v817
  %1829 = vmatpush.msra.mxu0 %v750
  %1830 = vmatpush.msra.mxu0 %v683
  %1831 = vmatpush.msra.mxu0 %v616
  %1832 = vmatpush.msra.mxu0 %v549
  %1833 = vmatpush.msra.mxu0 %v482
  %1834 = vmatpush.msra.mxu0 %v415
  %1835 = vmatpush.msra.mxu0 %v348
  %1836 = vmatpush.msra.mxu0 %v281
  %1837 = vmatpush.msra.mxu0 %v214
  %1838 = vmatpush.msra.mxu0 %v147
  %1839 = vmatpush.msra.mxu0 %v77
  %1840 = vmatmul.f32.gmra.mxu0 %v1772
  %v1841 = vpop.f32.mrf.mxu0
  %v1842 = vadd.f32 %v1778, %v1841
  %1843 = vdwg.mxu0
  %1844 = vmatpush.msra.mxu0 0.0
  %1845 = vmatpush.msra.mxu0 0.0
  %1846 = vmatpush.msra.mxu0 0.0
  %1847 = vmatpush.msra.mxu0 0.0
  %1848 = vmatpush.msra.mxu0 0.0
  %1849 = vmatpush.msra.mxu0 0.0
  %1850 = vmatpush.msra.mxu0 0.0
  %1851 = vmatpush.msra.mxu0 %v1613
  %1852 = vmatpush.msra.mxu0 %v1597
  %1853 = vmatpush.msra.mxu0 %v1581
  %1854 = vmatpush.msra.mxu0 %v1565
  %1855 = vmatpush.msra.mxu0 %v1549
  %1856 = vmatpush.msra.mxu0 %v1533
  %1857 = vmatpush.msra.mxu0 %v1517
  %1858 = vmatpush.msra.mxu0 %v1501
  %1859 = vmatpush.msra.mxu0 %v1485
  %1860 = vmatmul.f32.gmra.mxu0 %v1782
  %v1861 = vpop.f32.mrf.mxu0
  %v1862 = vadd.f32 %v1842, %v1861
  %1863 = vdwg.mxu0
  %1864 = vmatpush.msra.mxu0 %v1086
  %1865 = vmatpush.msra.mxu0 %v1019
  %1866 = vmatpush.msra.mxu0 %v952
  %1867 = vmatpush.msra.mxu0 %v885
  %1868 = vmatpush.msra.mxu0 %v818
  %1869 = vmatpush.msra.mxu0 %v751
  %1870 = vmatpush.msra.mxu0 %v684
  %1871 = vmatpush.msra.mxu0 %v617
  %1872 = vmatpush.msra.mxu0 %v550
  %1873 = vmatpush.msra.mxu0 %v483
  %1874 = vmatpush.msra.mxu0 %v416
  %1875 = vmatpush.msra.mxu0 %v349
  %1876 = vmatpush.msra.mxu0 %v282
  %1877 = vmatpush.msra.mxu0 %v215
  %1878 = vmatpush.msra.mxu0 %v148
  %1879 = vmatpush.msra.mxu0 %v78
  %1880 = vmatmul.f32.gmra.mxu0 %v1772
  %v1881 = vpop.f32.mrf.mxu0
  %v1882 = vadd.f32 %v1778, %v1881
  %1883 = vdwg.mxu0
  %1884 = vmatpush.msra.mxu0 0.0
  %1885 = vmatpush.msra.mxu0 0.0
  %1886 = vmatpush.msra.mxu0 0.0
  %1887 = vmatpush.msra.mxu0 0.0
  %1888 = vmatpush.msra.mxu0 0.0
  %1889 = vmatpush.msra.mxu0 0.0
  %1890 = vmatpush.msra.mxu0 0.0
  %1891 = vmatpush.msra.mxu0 %v1614
  %1892 = vmatpush.msra.mxu0 %v1598
  %1893 = vmatpush.msra.mxu0 %v1582
  %1894 = vmatpush.msra.mxu0 %v1566
  %1895 = vmatpush.msra.mxu0 %v1550
  %1896 = vmatpush.msra.mxu0 %v1534
  %1897 = vmatpush.msra.mxu0 %v1518
  %1898 = vmatpush.msra.mxu0 %v1502
  %1899 = vmatpush.msra.mxu0 %v1486
  %1900 = vmatmul.f32.gmra.mxu0 %v1782
  %v1901 = vpop.f32.mrf.mxu0
  %v1902 = vadd.f32 %v1882, %v1901
  %1903 = vdwg.mxu0
  %1904 = vmatpush.msra.mxu0 %v1087
  %1905 = vmatpush.msra.mxu0 %v1020
  %1906 = vmatpush.msra.mxu0 %v953
  %1907 = vmatpush.msra.mxu0 %v886
  %1908 = vmatpush.msra.mxu0 %v819
  %1909 = vmatpush.msra.mxu0 %v752
  %1910 = vmatpush.msra.mxu0 %v685
  %1911 = vmatpush.msra.mxu0 %v618
  %1912 = vmatpush.msra.mxu0 %v551
  %1913 = vmatpush.msra.mxu0 %v484
  %1914 = vmatpush.msra.mxu0 %v417
  %1915 = vmatpush.msra.mxu0 %v350
  %1916 = vmatpush.msra.mxu0 %v283
  %1917 = vmatpush.msra.mxu0 %v216
  %1918 = vmatpush.msra.mxu0 %v149
  %1919 = vmatpush.msra.mxu0 %v79
  %1920 = vmatmul.f32.gmra.mxu0 %v1772
  %v1921 = vpop.f32.mrf.mxu0
  %v1922 = vadd.f32 %v1778, %v1921
  %1923 = vdwg.mxu0
  %1924 = vmatpush.msra.mxu0 0.0
  %1925 = vmatpush.msra.mxu0 0.0
  %1926 = vmatpush.msra.mxu0 0.0
  %1927 = vmatpush.msra.mxu0 0.0
  %1928 = vmatpush.msra.mxu0 0.0
  %1929 = vmatpush.msra.mxu0 0.0
  %1930 = vmatpush.msra.mxu0 0.0
  %1931 = vmatpush.msra.mxu0 %v1615
  %1932 = vmatpush.msra.mxu0 %v1599
  %1933 = vmatpush.msra.mxu0 %v1583
  %1934 = vmatpush.msra.mxu0 %v1567
  %1935 = vmatpush.msra.mxu0 %v1551
  %1936 = vmatpush.msra.mxu0 %v1535
  %1937 = vmatpush.msra.mxu0 %v1519
  %1938 = vmatpush.msra.mxu0 %v1503
  %1939 = vmatpush.msra.mxu0 %v1487
  %1940 = vmatmul.f32.gmra.mxu0 %v1782
  %v1941 = vpop.f32.mrf.mxu0
  %v1942 = vadd.f32 %v1922, %v1941
  %1943 = vdwg.mxu0
  %1944 = vmatpush.msra.mxu0 %v1088
  %1945 = vmatpush.msra.mxu0 %v1021
  %1946 = vmatpush.msra.mxu0 %v954
  %1947 = vmatpush.msra.mxu0 %v887
  %1948 = vmatpush.msra.mxu0 %v820
  %1949 = vmatpush.msra.mxu0 %v753
  %1950 = vmatpush.msra.mxu0 %v686
  %1951 = vmatpush.msra.mxu0 %v619
  %1952 = vmatpush.msra.mxu0 %v552
  %1953 = vmatpush.msra.mxu0 %v485
  %1954 = vmatpush.msra.mxu0 %v418
  %1955 = vmatpush.msra.mxu0 %v351
  %1956 = vmatpush.msra.mxu0 %v284
  %1957 = vmatpush.msra.mxu0 %v217
  %1958 = vmatpush.msra.mxu0 %v150
  %1959 = vmatpush.msra.mxu0 %v80
  %1960 = vmatmul.f32.gmra.mxu0 %v1772
  %v1961 = vpop.f32.mrf.mxu0
  %v1962 = vadd.f32 %v1778, %v1961
  %1963 = vdwg.mxu0
  %1964 = vmatpush.msra.mxu0 0.0
  %1965 = vmatpush.msra.mxu0 0.0
  %1966 = vmatpush.msra.mxu0 0.0
  %1967 = vmatpush.msra.mxu0 0.0
  %1968 = vmatpush.msra.mxu0 0.0
  %1969 = vmatpush.msra.mxu0 0.0
  %1970 = vmatpush.msra.mxu0 0.0
  %1971 = vmatpush.msra.mxu0 %v1616
  %1972 = vmatpush.msra.mxu0 %v1600
  %1973 = vmatpush.msra.mxu0 %v1584
  %1974 = vmatpush.msra.mxu0 %v1568
  %1975 = vmatpush.msra.mxu0 %v1552
  %1976 = vmatpush.msra.mxu0 %v1536
  %1977 = vmatpush.msra.mxu0 %v1520
  %1978 = vmatpush.msra.mxu0 %v1504
  %1979 = vmatpush.msra.mxu0 %v1488
  %1980 = vmatmul.f32.gmra.mxu0 %v1782
  %v1981 = vpop.f32.mrf.mxu0
  %v1982 = vadd.f32 %v1962, %v1981
  %1983 = vdwg.mxu0
  %1984 = vmatpush.msra.mxu0 %v1089
  %1985 = vmatpush.msra.mxu0 %v1022
  %1986 = vmatpush.msra.mxu0 %v955
  %1987 = vmatpush.msra.mxu0 %v888
  %1988 = vmatpush.msra.mxu0 %v821
  %1989 = vmatpush.msra.mxu0 %v754
  %1990 = vmatpush.msra.mxu0 %v687
  %1991 = vmatpush.msra.mxu0 %v620
  %1992 = vmatpush.msra.mxu0 %v553
  %1993 = vmatpush.msra.mxu0 %v486
  %1994 = vmatpush.msra.mxu0 %v419
  %1995 = vmatpush.msra.mxu0 %v352
  %1996 = vmatpush.msra.mxu0 %v285
  %1997 = vmatpush.msra.mxu0 %v218
  %1998 = vmatpush.msra.mxu0 %v151
  %1999 = vmatpush.msra.mxu0 %v81
  %2000 = vmatmul.f32.gmra.mxu0 %v1772
  %v2001 = vpop.f32.mrf.mxu0
  %v2002 = vadd.f32 %v1778, %v2001
  %2003 = vdwg.mxu0
  %2004 = vmatpush.msra.mxu0 0.0
  %2005 = vmatpush.msra.mxu0 0.0
  %2006 = vmatpush.msra.mxu0 0.0
  %2007 = vmatpush.msra.mxu0 0.0
  %2008 = vmatpush.msra.mxu0 0.0
  %2009 = vmatpush.msra.mxu0 0.0
  %2010 = vmatpush.msra.mxu0 0.0
  %2011 = vmatpush.msra.mxu0 %v1617
  %2012 = vmatpush.msra.mxu0 %v1601
  %2013 = vmatpush.msra.mxu0 %v1585
  %2014 = vmatpush.msra.mxu0 %v1569
  %2015 = vmatpush.msra.mxu0 %v1553
  %2016 = vmatpush.msra.mxu0 %v1537
  %2017 = vmatpush.msra.mxu0 %v1521
  %2018 = vmatpush.msra.mxu0 %v1505
  %2019 = vmatpush.msra.mxu0 %v1489
  %2020 = vmatmul.f32.gmra.mxu0 %v1782
  %v2021 = vpop.f32.mrf.mxu0
  %v2022 = vadd.f32 %v2002, %v2021
  %2023 = vdwg.mxu0
  %2024 = vmatpush.msra.mxu0 %v1090
  %2025 = vmatpush.msra.mxu0 %v1023
  %2026 = vmatpush.msra.mxu0 %v956
  %2027 = vmatpush.msra.mxu0 %v889
  %2028 = vmatpush.msra.mxu0 %v822
  %2029 = vmatpush.msra.mxu0 %v755
  %2030 = vmatpush.msra.mxu0 %v688
  %2031 = vmatpush.msra.mxu0 %v621
  %2032 = vmatpush.msra.mxu0 %v554
  %2033 = vmatpush.msra.mxu0 %v487
  %2034 = vmatpush.msra.mxu0 %v420
  %2035 = vmatpush.msra.mxu0 %v353
  %2036 = vmatpush.msra.mxu0 %v286
  %2037 = vmatpush.msra.mxu0 %v219
  %2038 = vmatpush.msra.mxu0 %v152
  %2039 = vmatpush.msra.mxu0 %v82
  %2040 = vmatmul.f32.gmra.mxu0 %v1772
  %v2041 = vpop.f32.mrf.mxu0
  %v2042 = vadd.f32 %v1778, %v2041
  %2043 = vdwg.mxu0
  %2044 = vmatpush.msra.mxu0 0.0
  %2045 = vmatpush.msra.mxu0 0.0
  %2046 = vmatpush.msra.mxu0 0.0
  %2047 = vmatpush.msra.mxu0 0.0
  %2048 = vmatpush.msra.mxu0 0.0
  %2049 = vmatpush.msra.mxu0 0.0
  %2050 = vmatpush.msra.mxu0 0.0
  %2051 = vmatpush.msra.mxu0 %v1618
  %2052 = vmatpush.msra.mxu0 %v1602
  %2053 = vmatpush.msra.mxu0 %v1586
  %2054 = vmatpush.msra.mxu0 %v1570
  %2055 = vmatpush.msra.mxu0 %v1554
  %2056 = vmatpush.msra.mxu0 %v1538
  %2057 = vmatpush.msra.mxu0 %v1522
  %2058 = vmatpush.msra.mxu0 %v1506
  %2059 = vmatpush.msra.mxu0 %v1490
  %2060 = vmatmul.f32.gmra.mxu0 %v1782
  %v2061 = vpop.f32.mrf.mxu0
  %v2062 = vadd.f32 %v2042, %v2061
  %2063 = vdwg.mxu0
  %2064 = vmatpush.msra.mxu0 %v1091
  %2065 = vmatpush.msra.mxu0 %v1024
  %2066 = vmatpush.msra.mxu0 %v957
  %2067 = vmatpush.msra.mxu0 %v890
  %2068 = vmatpush.msra.mxu0 %v823
  %2069 = vmatpush.msra.mxu0 %v756
  %2070 = vmatpush.msra.mxu0 %v689
  %2071 = vmatpush.msra.mxu0 %v622
  %2072 = vmatpush.msra.mxu0 %v555
  %2073 = vmatpush.msra.mxu0 %v488
  %2074 = vmatpush.msra.mxu0 %v421
  %2075 = vmatpush.msra.mxu0 %v354
  %2076 = vmatpush.msra.mxu0 %v287
  %2077 = vmatpush.msra.mxu0 %v220
  %2078 = vmatpush.msra.mxu0 %v153
  %2079 = vmatpush.msra.mxu0 %v83
  %2080 = vmatmul.f32.gmra.mxu0 %v1772
  %v2081 = vpop.f32.mrf.mxu0
  %v2082 = vadd.f32 %v1778, %v2081
  %2083 = vdwg.mxu0
  %2084 = vmatpush.msra.mxu0 0.0
  %2085 = vmatpush.msra.mxu0 0.0
  %2086 = vmatpush.msra.mxu0 0.0
  %2087 = vmatpush.msra.mxu0 0.0
  %2088 = vmatpush.msra.mxu0 0.0
  %2089 = vmatpush.msra.mxu0 0.0
  %2090 = vmatpush.msra.mxu0 0.0
  %2091 = vmatpush.msra.mxu0 %v1619
  %2092 = vmatpush.msra.mxu0 %v1603
  %2093 = vmatpush.msra.mxu0 %v1587
  %2094 = vmatpush.msra.mxu0 %v1571
  %2095 = vmatpush.msra.mxu0 %v1555
  %2096 = vmatpush.msra.mxu0 %v1539
  %2097 = vmatpush.msra.mxu0 %v1523
  %2098 = vmatpush.msra.mxu0 %v1507
  %2099 = vmatpush.msra.mxu0 %v1491
  %2100 = vmatmul.f32.gmra.mxu0 %v1782
  %v2101 = vpop.f32.mrf.mxu0
  %v2102 = vadd.f32 %v2082, %v2101
  %2103 = vdwg.mxu0
  %2104 = vmatpush.msra.mxu0 %v1092
  %2105 = vmatpush.msra.mxu0 %v1025
  %2106 = vmatpush.msra.mxu0 %v958
  %2107 = vmatpush.msra.mxu0 %v891
  %2108 = vmatpush.msra.mxu0 %v824
  %2109 = vmatpush.msra.mxu0 %v757
  %2110 = vmatpush.msra.mxu0 %v690
  %2111 = vmatpush.msra.mxu0 %v623
  %2112 = vmatpush.msra.mxu0 %v556
  %2113 = vmatpush.msra.mxu0 %v489
  %2114 = vmatpush.msra.mxu0 %v422
  %2115 = vmatpush.msra.mxu0 %v355
  %2116 = vmatpush.msra.mxu0 %v288
  %2117 = vmatpush.msra.mxu0 %v221
  %2118 = vmatpush.msra.mxu0 %v154
  %2119 = vmatpush.msra.mxu0 %v84
  %2120 = vmatmul.f32.gmra.mxu0 %v1772
  %v2121 = vpop.f32.mrf.mxu0
  %v2122 = vadd.f32 %v1778, %v2121
  %2123 = vdwg.mxu0
  %2124 = vmatpush.msra.mxu0 0.0
  %2125 = vmatpush.msra.mxu0 0.0
  %2126 = vmatpush.msra.mxu0 0.0
  %2127 = vmatpush.msra.mxu0 0.0
  %2128 = vmatpush.msra.mxu0 0.0
  %2129 = vmatpush.msra.mxu0 0.0
  %2130 = vmatpush.msra.mxu0 0.0
  %2131 = vmatpush.msra.mxu0 %v1620
  %2132 = vmatpush.msra.mxu0 %v1604
  %2133 = vmatpush.msra.mxu0 %v1588
  %2134 = vmatpush.msra.mxu0 %v1572
  %2135 = vmatpush.msra.mxu0 %v1556
  %2136 = vmatpush.msra.mxu0 %v1540
  %2137 = vmatpush.msra.mxu0 %v1524
  %2138 = vmatpush.msra.mxu0 %v1508
  %2139 = vmatpush.msra.mxu0 %v1492
  %2140 = vmatmul.f32.gmra.mxu0 %v1782
  %v2141 = vpop.f32.mrf.mxu0
  %v2142 = vadd.f32 %v2122, %v2141
  %2143 = vdwg.mxu0
  %2144 = vmatpush.msra.mxu0 %v1093
  %2145 = vmatpush.msra.mxu0 %v1026
  %2146 = vmatpush.msra.mxu0 %v959
  %2147 = vmatpush.msra.mxu0 %v892
  %2148 = vmatpush.msra.mxu0 %v825
  %2149 = vmatpush.msra.mxu0 %v758
  %2150 = vmatpush.msra.mxu0 %v691
  %2151 = vmatpush.msra.mxu0 %v624
  %2152 = vmatpush.msra.mxu0 %v557
  %2153 = vmatpush.msra.mxu0 %v490
  %2154 = vmatpush.msra.mxu0 %v423
  %2155 = vmatpush.msra.mxu0 %v356
  %2156 = vmatpush.msra.mxu0 %v289
  %2157 = vmatpush.msra.mxu0 %v222
  %2158 = vmatpush.msra.mxu0 %v155
  %2159 = vmatpush.msra.mxu0 %v85
  %2160 = vmatmul.f32.gmra.mxu0 %v1772
  %v2161 = vpop.f32.mrf.mxu0
  %v2162 = vadd.f32 %v1778, %v2161
  %2163 = vdwg.mxu0
  %2164 = vmatpush.msra.mxu0 0.0
  %2165 = vmatpush.msra.mxu0 0.0
  %2166 = vmatpush.msra.mxu0 0.0
  %2167 = vmatpush.msra.mxu0 0.0
  %2168 = vmatpush.msra.mxu0 0.0
  %2169 = vmatpush.msra.mxu0 0.0
  %2170 = vmatpush.msra.mxu0 0.0
  %2171 = vmatpush.msra.mxu0 %v1621
  %2172 = vmatpush.msra.mxu0 %v1605
  %2173 = vmatpush.msra.mxu0 %v1589
  %2174 = vmatpush.msra.mxu0 %v1573
  %2175 = vmatpush.msra.mxu0 %v1557
  %2176 = vmatpush.msra.mxu0 %v1541
  %2177 = vmatpush.msra.mxu0 %v1525
  %2178 = vmatpush.msra.mxu0 %v1509
  %2179 = vmatpush.msra.mxu0 %v1493
  %2180 = vmatmul.f32.gmra.mxu0 %v1782
  %v2181 = vpop.f32.mrf.mxu0
  %v2182 = vadd.f32 %v2162, %v2181
  %2183 = vdwg.mxu0
  %2184 = vmatpush.msra.mxu0 %v1094
  %2185 = vmatpush.msra.mxu0 %v1027
  %2186 = vmatpush.msra.mxu0 %v960
  %2187 = vmatpush.msra.mxu0 %v893
  %2188 = vmatpush.msra.mxu0 %v826
  %2189 = vmatpush.msra.mxu0 %v759
  %2190 = vmatpush.msra.mxu0 %v692
  %2191 = vmatpush.msra.mxu0 %v625
  %2192 = vmatpush.msra.mxu0 %v558
  %2193 = vmatpush.msra.mxu0 %v491
  %2194 = vmatpush.msra.mxu0 %v424
  %2195 = vmatpush.msra.mxu0 %v357
  %2196 = vmatpush.msra.mxu0 %v290
  %2197 = vmatpush.msra.mxu0 %v223
  %2198 = vmatpush.msra.mxu0 %v156
  %2199 = vmatpush.msra.mxu0 %v86
  %2200 = vmatmul.f32.gmra.mxu0 %v1772
  %v2201 = vpop.f32.mrf.mxu0
  %v2202 = vadd.f32 %v1778, %v2201
  %2203 = vdwg.mxu0
  %2204 = vmatpush.msra.mxu0 0.0
  %2205 = vmatpush.msra.mxu0 0.0
  %2206 = vmatpush.msra.mxu0 0.0
  %2207 = vmatpush.msra.mxu0 0.0
  %2208 = vmatpush.msra.mxu0 0.0
  %2209 = vmatpush.msra.mxu0 0.0
  %2210 = vmatpush.msra.mxu0 0.0
  %2211 = vmatpush.msra.mxu0 %v1622
  %2212 = vmatpush.msra.mxu0 %v1606
  %2213 = vmatpush.msra.mxu0 %v1590
  %2214 = vmatpush.msra.mxu0 %v1574
  %2215 = vmatpush.msra.mxu0 %v1558
  %2216 = vmatpush.msra.mxu0 %v1542
  %2217 = vmatpush.msra.mxu0 %v1526
  %2218 = vmatpush.msra.mxu0 %v1510
  %2219 = vmatpush.msra.mxu0 %v1494
  %2220 = vmatmul.f32.gmra.mxu0 %v1782
  %v2221 = vpop.f32.mrf.mxu0
  %v2222 = vadd.f32 %v2202, %v2221
  %2223 = vdwg.mxu0
  %2224 = vmatpush.msra.mxu0 %v1095
  %2225 = vmatpush.msra.mxu0 %v1028
  %2226 = vmatpush.msra.mxu0 %v961
  %2227 = vmatpush.msra.mxu0 %v894
  %2228 = vmatpush.msra.mxu0 %v827
  %2229 = vmatpush.msra.mxu0 %v760
  %2230 = vmatpush.msra.mxu0 %v693
  %2231 = vmatpush.msra.mxu0 %v626
  %2232 = vmatpush.msra.mxu0 %v559
  %2233 = vmatpush.msra.mxu0 %v492
  %2234 = vmatpush.msra.mxu0 %v425
  %2235 = vmatpush.msra.mxu0 %v358
  %2236 = vmatpush.msra.mxu0 %v291
  %2237 = vmatpush.msra.mxu0 %v224
  %2238 = vmatpush.msra.mxu0 %v157
  %2239 = vmatpush.msra.mxu0 %v87
  %2240 = vmatmul.f32.gmra.mxu0 %v1772
  %v2241 = vpop.f32.mrf.mxu0
  %v2242 = vadd.f32 %v1778, %v2241
  %2243 = vdwg.mxu0
  %2244 = vmatpush.msra.mxu0 0.0
  %2245 = vmatpush.msra.mxu0 0.0
  %2246 = vmatpush.msra.mxu0 0.0
  %2247 = vmatpush.msra.mxu0 0.0
  %2248 = vmatpush.msra.mxu0 0.0
  %2249 = vmatpush.msra.mxu0 0.0
  %2250 = vmatpush.msra.mxu0 0.0
  %2251 = vmatpush.msra.mxu0 %v1623
  %2252 = vmatpush.msra.mxu0 %v1607
  %2253 = vmatpush.msra.mxu0 %v1591
  %2254 = vmatpush.msra.mxu0 %v1575
  %2255 = vmatpush.msra.mxu0 %v1559
  %2256 = vmatpush.msra.mxu0 %v1543
  %2257 = vmatpush.msra.mxu0 %v1527
  %2258 = vmatpush.msra.mxu0 %v1511
  %2259 = vmatpush.msra.mxu0 %v1495
  %2260 = vmatmul.f32.gmra.mxu0 %v1782
  %v2261 = vpop.f32.mrf.mxu0
  %v2262 = vadd.f32 %v2242, %v2261
  %2263 = vdwg.mxu0
  %2264 = vmatpush.msra.mxu0 %v1096
  %2265 = vmatpush.msra.mxu0 %v1029
  %2266 = vmatpush.msra.mxu0 %v962
  %2267 = vmatpush.msra.mxu0 %v895
  %2268 = vmatpush.msra.mxu0 %v828
  %2269 = vmatpush.msra.mxu0 %v761
  %2270 = vmatpush.msra.mxu0 %v694
  %2271 = vmatpush.msra.mxu0 %v627
  %2272 = vmatpush.msra.mxu0 %v560
  %2273 = vmatpush.msra.mxu0 %v493
  %2274 = vmatpush.msra.mxu0 %v426
  %2275 = vmatpush.msra.mxu0 %v359
  %2276 = vmatpush.msra.mxu0 %v292
  %2277 = vmatpush.msra.mxu0 %v225
  %2278 = vmatpush.msra.mxu0 %v158
  %2279 = vmatpush.msra.mxu0 %v88
  %2280 = vmatmul.f32.gmra.mxu0 %v1772
  %v2281 = vpop.f32.mrf.mxu0
  %v2282 = vadd.f32 %v1778, %v2281
  %2283 = vdwg.mxu0
  %2284 = vmatpush.msra.mxu0 0.0
  %2285 = vmatpush.msra.mxu0 0.0
  %2286 = vmatpush.msra.mxu0 0.0
  %2287 = vmatpush.msra.mxu0 0.0
  %2288 = vmatpush.msra.mxu0 0.0
  %2289 = vmatpush.msra.mxu0 0.0
  %2290 = vmatpush.msra.mxu0 0.0
  %2291 = vmatpush.msra.mxu0 %v1624
  %2292 = vmatpush.msra.mxu0 %v1608
  %2293 = vmatpush.msra.mxu0 %v1592
  %2294 = vmatpush.msra.mxu0 %v1576
  %2295 = vmatpush.msra.mxu0 %v1560
  %2296 = vmatpush.msra.mxu0 %v1544
  %2297 = vmatpush.msra.mxu0 %v1528
  %2298 = vmatpush.msra.mxu0 %v1512
  %2299 = vmatpush.msra.mxu0 %v1496
  %2300 = vmatmul.f32.gmra.mxu0 %v1782
  %v2301 = vpop.f32.mrf.mxu0
  %v2302 = vadd.f32 %v2282, %v2301
  %2303 = vdwg.mxu0
  %2304 = vmatpush.msra.mxu0 %v1097
  %2305 = vmatpush.msra.mxu0 %v1030
  %2306 = vmatpush.msra.mxu0 %v963
  %2307 = vmatpush.msra.mxu0 %v896
  %2308 = vmatpush.msra.mxu0 %v829
  %2309 = vmatpush.msra.mxu0 %v762
  %2310 = vmatpush.msra.mxu0 %v695
  %2311 = vmatpush.msra.mxu0 %v628
  %2312 = vmatpush.msra.mxu0 %v561
  %2313 = vmatpush.msra.mxu0 %v494
  %2314 = vmatpush.msra.mxu0 %v427
  %2315 = vmatpush.msra.mxu0 %v360
  %2316 = vmatpush.msra.mxu0 %v293
  %2317 = vmatpush.msra.mxu0 %v226
  %2318 = vmatpush.msra.mxu0 %v159
  %2319 = vmatpush.msra.mxu0 %v89
  %2320 = vmatmul.f32.gmra.mxu0 %v1772
  %v2321 = vpop.f32.mrf.mxu0
  %v2322 = vadd.f32 %v1778, %v2321
  %2323 = vdwg.mxu0
  %2324 = vmatpush.msra.mxu0 0.0
  %2325 = vmatpush.msra.mxu0 0.0
  %2326 = vmatpush.msra.mxu0 0.0
  %2327 = vmatpush.msra.mxu0 0.0
  %2328 = vmatpush.msra.mxu0 0.0
  %2329 = vmatpush.msra.mxu0 0.0
  %2330 = vmatpush.msra.mxu0 0.0
  %2331 = vmatpush.msra.mxu0 %v1625
  %2332 = vmatpush.msra.mxu0 %v1609
  %2333 = vmatpush.msra.mxu0 %v1593
  %2334 = vmatpush.msra.mxu0 %v1577
  %2335 = vmatpush.msra.mxu0 %v1561
  %2336 = vmatpush.msra.mxu0 %v1545
  %2337 = vmatpush.msra.mxu0 %v1529
  %2338 = vmatpush.msra.mxu0 %v1513
  %2339 = vmatpush.msra.mxu0 %v1497
  %2340 = vmatmul.f32.gmra.mxu0 %v1782
  %v2341 = vpop.f32.mrf.mxu0
  %v2342 = vadd.f32 %v2322, %v2341
  %2343 = vdwg.mxu0
  %2344 = vmatpush.msra.mxu0 %v1098
  %2345 = vmatpush.msra.mxu0 %v1031
  %2346 = vmatpush.msra.mxu0 %v964
  %2347 = vmatpush.msra.mxu0 %v897
  %2348 = vmatpush.msra.mxu0 %v830
  %2349 = vmatpush.msra.mxu0 %v763
  %2350 = vmatpush.msra.mxu0 %v696
  %2351 = vmatpush.msra.mxu0 %v629
  %2352 = vmatpush.msra.mxu0 %v562
  %2353 = vmatpush.msra.mxu0 %v495
  %2354 = vmatpush.msra.mxu0 %v428
  %2355 = vmatpush.msra.mxu0 %v361
  %2356 = vmatpush.msra.mxu0 %v294
  %2357 = vmatpush.msra.mxu0 %v227
  %2358 = vmatpush.msra.mxu0 %v160
  %2359 = vmatpush.msra.mxu0 %v90
  %2360 = vmatmul.f32.gmra.mxu0 %v1772
  %v2361 = vpop.f32.mrf.mxu0
  %v2362 = vadd.f32 %v1778, %v2361
  %2363 = vdwg.mxu0
  %2364 = vmatpush.msra.mxu0 0.0
  %2365 = vmatpush.msra.mxu0 0.0
  %2366 = vmatpush.msra.mxu0 0.0
  %2367 = vmatpush.msra.mxu0 0.0
  %2368 = vmatpush.msra.mxu0 0.0
  %2369 = vmatpush.msra.mxu0 0.0
  %2370 = vmatpush.msra.mxu0 0.0
  %2371 = vmatpush.msra.mxu0 %v1626
  %2372 = vmatpush.msra.mxu0 %v1610
  %2373 = vmatpush.msra.mxu0 %v1594
  %2374 = vmatpush.msra.mxu0 %v1578
  %2375 = vmatpush.msra.mxu0 %v1562
  %2376 = vmatpush.msra.mxu0 %v1546
  %2377 = vmatpush.msra.mxu0 %v1530
  %2378 = vmatpush.msra.mxu0 %v1514
  %2379 = vmatpush.msra.mxu0 %v1498
  %2380 = vmatmul.f32.gmra.mxu0 %v1782
  %v2381 = vpop.f32.mrf.mxu0
  %v2382 = vadd.f32 %v2362, %v2381
  %2383 = vdwg.mxu0
  %2384 = vmatpush.msra.mxu0 %v1099
  %2385 = vmatpush.msra.mxu0 %v1032
  %2386 = vmatpush.msra.mxu0 %v965
  %2387 = vmatpush.msra.mxu0 %v898
  %2388 = vmatpush.msra.mxu0 %v831
  %2389 = vmatpush.msra.mxu0 %v764
  %2390 = vmatpush.msra.mxu0 %v697
  %2391 = vmatpush.msra.mxu0 %v630
  %2392 = vmatpush.msra.mxu0 %v563
  %2393 = vmatpush.msra.mxu0 %v496
  %2394 = vmatpush.msra.mxu0 %v429
  %2395 = vmatpush.msra.mxu0 %v362
  %2396 = vmatpush.msra.mxu0 %v295
  %2397 = vmatpush.msra.mxu0 %v228
  %2398 = vmatpush.msra.mxu0 %v161
  %2399 = vmatpush.msra.mxu0 %v91
  %2400 = vmatmul.f32.gmra.mxu0 %v1772
  %v2401 = vpop.f32.mrf.mxu0
  %v2402 = vadd.f32 %v1778, %v2401
  %2403 = vdwg.mxu0
  %2404 = vmatpush.msra.mxu0 0.0
  %2405 = vmatpush.msra.mxu0 0.0
  %2406 = vmatpush.msra.mxu0 0.0
  %2407 = vmatpush.msra.mxu0 0.0
  %2408 = vmatpush.msra.mxu0 0.0
  %2409 = vmatpush.msra.mxu0 0.0
  %2410 = vmatpush.msra.mxu0 0.0
  %2411 = vmatpush.msra.mxu0 %v1627
  %2412 = vmatpush.msra.mxu0 %v1611
  %2413 = vmatpush.msra.mxu0 %v1595
  %2414 = vmatpush.msra.mxu0 %v1579
  %2415 = vmatpush.msra.mxu0 %v1563
  %2416 = vmatpush.msra.mxu0 %v1547
  %2417 = vmatpush.msra.mxu0 %v1531
  %2418 = vmatpush.msra.mxu0 %v1515
  %2419 = vmatpush.msra.mxu0 %v1499
  %2420 = vmatmul.f32.gmra.mxu0 %v1782
  %v2421 = vpop.f32.mrf.mxu0
  %v2422 = vadd.f32 %v2402, %v2421
  %2423 = vdwg.mxu0
  %2424 = vst [vmem:[#allocation2] sm:$0xff] %v1822
  %2425 = vst [vmem:[#allocation2 + $0x8] sm:$0xff] %v1862
  %2426 = vst [vmem:[#allocation2 + $0x10] sm:$0xff] %v1902
  %2427 = vst [vmem:[#allocation2 + $0x18] sm:$0xff] %v1942
  %2428 = vst [vmem:[#allocation2 + $0x20] sm:$0xff] %v1982
  %2429 = vst [vmem:[#allocation2 + $0x28] sm:$0xff] %v2022
  %2430 = vst [vmem:[#allocation2 + $0x30] sm:$0xff] %v2062
  %2431 = vst [vmem:[#allocation2 + $0x38] sm:$0xff] %v2102
  %2432 = vst [vmem:[#allocation2 + $0x40] sm:$0xff] %v2142
  %2433 = vst [vmem:[#allocation2 + $0x48] sm:$0xff] %v2182
  %2434 = vst [vmem:[#allocation2 + $0x50] sm:$0xff] %v2222
  %2435 = vst [vmem:[#allocation2 + $0x58] sm:$0xff] %v2262
  %2436 = vst [vmem:[#allocation2 + $0x60] sm:$0xff] %v2302
  %2437 = vst [vmem:[#allocation2 + $0x68] sm:$0xff] %v2342
  %2438 = vst [vmem:[#allocation2 + $0x70] sm:$0xff] %v2382
  %2439 = vst [vmem:[#allocation2 + $0x78] sm:$0xff] %v2422
  %v2440 = vld [vmem:[#allocation2] sm:$0xff]
  %v2441 = vld [vmem:[#allocation2 + $0x8] sm:$0xff]
  %v2442 = vld [vmem:[#allocation2 + $0x10] sm:$0xff]
  %v2443 = vld [vmem:[#allocation2 + $0x18] sm:$0xff]
  %v2444 = vld [vmem:[#allocation2 + $0x20] sm:$0xff]
  %v2445 = vld [vmem:[#allocation2 + $0x28] sm:$0xff]
  %v2446 = vld [vmem:[#allocation2 + $0x30] sm:$0xff]
  %v2447 = vld [vmem:[#allocation2 + $0x38] sm:$0xff]
  %v2448 = vld [vmem:[#allocation2 + $0x40] sm:$0xff]
  %v2449 = vld [vmem:[#allocation2 + $0x48] sm:$0xff]
  %v2450 = vld [vmem:[#allocation2 + $0x50] sm:$0xff]
  %v2451 = vld [vmem:[#allocation2 + $0x58] sm:$0xff]
  %v2452 = vld [vmem:[#allocation2 + $0x60] sm:$0xff]
  %v2453 = vld [vmem:[#allocation2 + $0x68] sm:$0xff]
  %v2454 = vld [vmem:[#allocation2 + $0x70] sm:$0xff]
  %v2455 = vld [vmem:[#allocation2 + $0x78] sm:$0xff]
  %v2456 = vld [vmem:[#allocation2 + $0x80] sm:$0xff]
  %2474 = vrot.lane.b32.xlu0 %v2440, 127
  %v2475 = vpop.permute.xlu0 %2474
  %2476 = vrot.lane.b32.xlu0 %v2441, 127
  %v2477 = vpop.permute.xlu0 %2476
  %2478 = vrot.lane.b32.xlu0 %v2442, 127
  %v2479 = vpop.permute.xlu0 %2478
  %2480 = vrot.lane.b32.xlu0 %v2443, 127
  %v2481 = vpop.permute.xlu0 %2480
  %2482 = vrot.lane.b32.xlu0 %v2444, 127
  %v2483 = vpop.permute.xlu0 %2482
  %2484 = vrot.lane.b32.xlu0 %v2445, 127
  %v2485 = vpop.permute.xlu0 %2484
  %2486 = vrot.lane.b32.xlu0 %v2446, 127
  %v2487 = vpop.permute.xlu0 %2486
  %2488 = vrot.lane.b32.xlu0 %v2447, 127
  %v2489 = vpop.permute.xlu0 %2488
  %2490 = vrot.lane.b32.xlu0 %v2448, 127
  %v2491 = vpop.permute.xlu0 %2490
  %2492 = vrot.lane.b32.xlu0 %v2449, 127
  %v2493 = vpop.permute.xlu0 %2492
  %2494 = vrot.lane.b32.xlu0 %v2450, 127
  %v2495 = vpop.permute.xlu0 %2494
  %2496 = vrot.lane.b32.xlu0 %v2451, 127
  %v2497 = vpop.permute.xlu0 %2496
  %2498 = vrot.lane.b32.xlu0 %v2452, 127
  %v2499 = vpop.permute.xlu0 %2498
  %2500 = vrot.lane.b32.xlu0 %v2453, 127
  %v2501 = vpop.permute.xlu0 %2500
  %2502 = vrot.lane.b32.xlu0 %v2454, 127
  %v2503 = vpop.permute.xlu0 %2502
  %2504 = vrot.lane.b32.xlu0 %v2455, 127
  %v2505 = vpop.permute.xlu0 %2504
  %2506 = vrot.lane.b32.xlu0 %v2456, 127
  %v2507 = vpop.permute.xlu0 %2506
  %v2508 = vsel %vm145, %v2475, %v2477
  %v2509 = vsel %vm145, %v2477, %v2479
  %v2510 = vsel %vm145, %v2479, %v2481
  %v2511 = vsel %vm145, %v2481, %v2483
  %v2512 = vsel %vm145, %v2483, %v2485
  %v2513 = vsel %vm145, %v2485, %v2487
  %v2514 = vsel %vm145, %v2487, %v2489
  %v2515 = vsel %vm145, %v2489, %v2491
  %v2516 = vsel %vm145, %v2491, %v2493
  %v2517 = vsel %vm145, %v2493, %v2495
  %v2518 = vsel %vm145, %v2495, %v2497
  %v2519 = vsel %vm145, %v2497, %v2499
  %v2520 = vsel %vm145, %v2499, %v2501
  %v2521 = vsel %vm145, %v2501, %v2503
  %v2522 = vsel %vm145, %v2503, %v2505
  %v2523 = vsel %vm145, %v2505, %v2507
  %v2540 = vmax.f32 %v2440, %v2508
  %v2541 = vmax.f32 %v2441, %v2509
  %v2542 = vmax.f32 %v2442, %v2510
  %v2543 = vmax.f32 %v2443, %v2511
  %v2544 = vmax.f32 %v2444, %v2512
  %v2545 = vmax.f32 %v2445, %v2513
  %v2546 = vmax.f32 %v2446, %v2514
  %v2547 = vmax.f32 %v2447, %v2515
  %v2548 = vmax.f32 %v2448, %v2516
  %v2549 = vmax.f32 %v2449, %v2517
  %v2550 = vmax.f32 %v2450, %v2518
  %v2551 = vmax.f32 %v2451, %v2519
  %v2552 = vmax.f32 %v2452, %v2520
  %v2553 = vmax.f32 %v2453, %v2521
  %v2554 = vmax.f32 %v2454, %v2522
  %v2555 = vmax.f32 %v2455, %v2523
  %2556 = vrot.lane.b32.xlu0 %v2440, 96
  %v2557 = vpop.permute.xlu0 %2556
  %2558 = vrot.lane.b32.xlu0 %v2441, 96
  %v2559 = vpop.permute.xlu0 %2558
  %2560 = vrot.lane.b32.xlu0 %v2442, 96
  %v2561 = vpop.permute.xlu0 %2560
  %2562 = vrot.lane.b32.xlu0 %v2443, 96
  %v2563 = vpop.permute.xlu0 %2562
  %2564 = vrot.lane.b32.xlu0 %v2444, 96
  %v2565 = vpop.permute.xlu0 %2564
  %2566 = vrot.lane.b32.xlu0 %v2445, 96
  %v2567 = vpop.permute.xlu0 %2566
  %2568 = vrot.lane.b32.xlu0 %v2446, 96
  %v2569 = vpop.permute.xlu0 %2568
  %2570 = vrot.lane.b32.xlu0 %v2447, 96
  %v2571 = vpop.permute.xlu0 %2570
  %2572 = vrot.lane.b32.xlu0 %v2448, 96
  %v2573 = vpop.permute.xlu0 %2572
  %2574 = vrot.lane.b32.xlu0 %v2449, 96
  %v2575 = vpop.permute.xlu0 %2574
  %2576 = vrot.lane.b32.xlu0 %v2450, 96
  %v2577 = vpop.permute.xlu0 %2576
  %2578 = vrot.lane.b32.xlu0 %v2451, 96
  %v2579 = vpop.permute.xlu0 %2578
  %2580 = vrot.lane.b32.xlu0 %v2452, 96
  %v2581 = vpop.permute.xlu0 %2580
  %2582 = vrot.lane.b32.xlu0 %v2453, 96
  %v2583 = vpop.permute.xlu0 %2582
  %2584 = vrot.lane.b32.xlu0 %v2454, 96
  %v2585 = vpop.permute.xlu0 %2584
  %2586 = vrot.lane.b32.xlu0 %v2455, 96
  %v2587 = vpop.permute.xlu0 %2586
  %2588 = vrot.lane.b32.xlu0 %v2456, 96
  %v2589 = vpop.permute.xlu0 %2588
  %v2590 = vsel %vm413, %v2557, %v2559
  %v2591 = vsel %vm413, %v2559, %v2561
  %v2592 = vsel %vm413, %v2561, %v2563
  %v2593 = vsel %vm413, %v2563, %v2565
  %v2594 = vsel %vm413, %v2565, %v2567
  %v2595 = vsel %vm413, %v2567, %v2569
  %v2596 = vsel %vm413, %v2569, %v2571
  %v2597 = vsel %vm413, %v2571, %v2573
  %v2598 = vsel %vm413, %v2573, %v2575
  %v2599 = vsel %vm413, %v2575, %v2577
  %v2600 = vsel %vm413, %v2577, %v2579
  %v2601 = vsel %vm413, %v2579, %v2581
  %v2602 = vsel %vm413, %v2581, %v2583
  %v2603 = vsel %vm413, %v2583, %v2585
  %v2604 = vsel %vm413, %v2585, %v2587
  %v2605 = vsel %vm413, %v2587, %v2589
  %v2622 = vmax.f32 %v2540, %v2590
  %v2623 = vmax.f32 %v2541, %v2591
  %v2624 = vmax.f32 %v2542, %v2592
  %v2625 = vmax.f32 %v2543, %v2593
  %v2626 = vmax.f32 %v2544, %v2594
  %v2627 = vmax.f32 %v2545, %v2595
  %v2628 = vmax.f32 %v2546, %v2596
  %v2629 = vmax.f32 %v2547, %v2597
  %v2630 = vmax.f32 %v2548, %v2598
  %v2631 = vmax.f32 %v2549, %v2599
  %v2632 = vmax.f32 %v2550, %v2600
  %v2633 = vmax.f32 %v2551, %v2601
  %v2634 = vmax.f32 %v2552, %v2602
  %v2635 = vmax.f32 %v2553, %v2603
  %v2636 = vmax.f32 %v2554, %v2604
  %v2637 = vmax.f32 %v2555, %v2605
  %2638 = vrot.lane.b32.xlu0 %v2440, 95
  %v2639 = vpop.permute.xlu0 %2638
  %2640 = vrot.lane.b32.xlu0 %v2441, 95
  %v2641 = vpop.permute.xlu0 %2640
  %2642 = vrot.lane.b32.xlu0 %v2442, 95
  %v2643 = vpop.permute.xlu0 %2642
  %2644 = vrot.lane.b32.xlu0 %v2443, 95
  %v2645 = vpop.permute.xlu0 %2644
  %2646 = vrot.lane.b32.xlu0 %v2444, 95
  %v2647 = vpop.permute.xlu0 %2646
  %2648 = vrot.lane.b32.xlu0 %v2445, 95
  %v2649 = vpop.permute.xlu0 %2648
  %2650 = vrot.lane.b32.xlu0 %v2446, 95
  %v2651 = vpop.permute.xlu0 %2650
  %2652 = vrot.lane.b32.xlu0 %v2447, 95
  %v2653 = vpop.permute.xlu0 %2652
  %2654 = vrot.lane.b32.xlu0 %v2448, 95
  %v2655 = vpop.permute.xlu0 %2654
  %2656 = vrot.lane.b32.xlu0 %v2449, 95
  %v2657 = vpop.permute.xlu0 %2656
  %2658 = vrot.lane.b32.xlu0 %v2450, 95
  %v2659 = vpop.permute.xlu0 %2658
  %2660 = vrot.lane.b32.xlu0 %v2451, 95
  %v2661 = vpop.permute.xlu0 %2660
  %2662 = vrot.lane.b32.xlu0 %v2452, 95
  %v2663 = vpop.permute.xlu0 %2662
  %2664 = vrot.lane.b32.xlu0 %v2453, 95
  %v2665 = vpop.permute.xlu0 %2664
  %2666 = vrot.lane.b32.xlu0 %v2454, 95
  %v2667 = vpop.permute.xlu0 %2666
  %2668 = vrot.lane.b32.xlu0 %v2455, 95
  %v2669 = vpop.permute.xlu0 %2668
  %2670 = vrot.lane.b32.xlu0 %v2456, 95
  %v2671 = vpop.permute.xlu0 %2670
  %v2672 = vsel %vm480, %v2639, %v2641
  %v2673 = vsel %vm480, %v2641, %v2643
  %v2674 = vsel %vm480, %v2643, %v2645
  %v2675 = vsel %vm480, %v2645, %v2647
  %v2676 = vsel %vm480, %v2647, %v2649
  %v2677 = vsel %vm480, %v2649, %v2651
  %v2678 = vsel %vm480, %v2651, %v2653
  %v2679 = vsel %vm480, %v2653, %v2655
  %v2680 = vsel %vm480, %v2655, %v2657
  %v2681 = vsel %vm480, %v2657, %v2659
  %v2682 = vsel %vm480, %v2659, %v2661
  %v2683 = vsel %vm480, %v2661, %v2663
  %v2684 = vsel %vm480, %v2663, %v2665
  %v2685 = vsel %vm480, %v2665, %v2667
  %v2686 = vsel %vm480, %v2667, %v2669
  %v2687 = vsel %vm480, %v2669, %v2671
  %v2704 = vmax.f32 %v2622, %v2672
  %v2705 = vmax.f32 %v2623, %v2673
  %v2706 = vmax.f32 %v2624, %v2674
  %v2707 = vmax.f32 %v2625, %v2675
  %v2708 = vmax.f32 %v2626, %v2676
  %v2709 = vmax.f32 %v2627, %v2677
  %v2710 = vmax.f32 %v2628, %v2678
  %v2711 = vmax.f32 %v2629, %v2679
  %v2712 = vmax.f32 %v2630, %v2680
  %v2713 = vmax.f32 %v2631, %v2681
  %v2714 = vmax.f32 %v2632, %v2682
  %v2715 = vmax.f32 %v2633, %v2683
  %v2716 = vmax.f32 %v2634, %v2684
  %v2717 = vmax.f32 %v2635, %v2685
  %v2718 = vmax.f32 %v2636, %v2686
  %v2719 = vmax.f32 %v2637, %v2687
  %2720 = vst [vmem:[#allocation2] sm:$0xff] %v2704
  %2721 = vst [vmem:[#allocation2 + $0x8] sm:$0xff] %v2705
  %2722 = vst [vmem:[#allocation2 + $0x10] sm:$0xff] %v2706
  %2723 = vst [vmem:[#allocation2 + $0x18] sm:$0xff] %v2707
  %2724 = vst [vmem:[#allocation2 + $0x20] sm:$0xff] %v2708
  %2725 = vst [vmem:[#allocation2 + $0x28] sm:$0xff] %v2709
  %2726 = vst [vmem:[#allocation2 + $0x30] sm:$0xff] %v2710
  %2727 = vst [vmem:[#allocation2 + $0x38] sm:$0xff] %v2711
  %2728 = vst [vmem:[#allocation2 + $0x40] sm:$0xff] %v2712
  %2729 = vst [vmem:[#allocation2 + $0x48] sm:$0xff] %v2713
  %2730 = vst [vmem:[#allocation2 + $0x50] sm:$0xff] %v2714
  %2731 = vst [vmem:[#allocation2 + $0x58] sm:$0xff] %v2715
  %2732 = vst [vmem:[#allocation2 + $0x60] sm:$0xff] %v2716
  %2733 = vst [vmem:[#allocation2 + $0x68] sm:$0xff] %v2717
  %2734 = vst [vmem:[#allocation2 + $0x70] sm:$0xff] %v2718
  %2735 = vst [vmem:[#allocation2 + $0x78] sm:$0xff] %v2719
  %v2736 = vld [vmem:[#allocation2] sm:$0xff]
  %v2737 = vld [vmem:[#allocation2 + $0x8] sm:$0xff]
  %v2738 = vld [vmem:[#allocation2 + $0x10] sm:$0xff]
  %v2739 = vld [vmem:[#allocation2 + $0x18] sm:$0xff]
  %v2740 = vld [vmem:[#allocation2 + $0x20] sm:$0xff]
  %v2741 = vld [vmem:[#allocation2 + $0x28] sm:$0xff]
  %v2742 = vld [vmem:[#allocation2 + $0x30] sm:$0xff]
  %v2743 = vld [vmem:[#allocation2 + $0x38] sm:$0xff]
  %v2744 = vld [vmem:[#allocation2 + $0x40] sm:$0xff]
  %v2745 = vld [vmem:[#allocation2 + $0x48] sm:$0xff]
  %v2746 = vld [vmem:[#allocation2 + $0x50] sm:$0xff]
  %v2747 = vld [vmem:[#allocation2 + $0x58] sm:$0xff]
  %v2748 = vld [vmem:[#allocation2 + $0x60] sm:$0xff]
  %v2749 = vld [vmem:[#allocation2 + $0x68] sm:$0xff]
  %v2750 = vld [vmem:[#allocation2 + $0x70] sm:$0xff]
  %v2751 = vld [vmem:[#allocation2 + $0x78] sm:$0xff]
  %v2752 = vld [vmem:[#allocation2 + $0x80] sm:$0xff]
  %v2753 = vld [vmem:[#allocation2 + $0x88] sm:$0xff]
  %v2754 = vld [vmem:[#allocation2 + $0x90] sm:$0xff]
  %2772 = vrot.lane.b32.xlu0 %v2736, 126
  %v2773 = vpop.permute.xlu0 %2772
  %2774 = vrot.lane.b32.xlu0 %v2737, 126
  %v2775 = vpop.permute.xlu0 %2774
  %2776 = vrot.lane.b32.xlu0 %v2738, 126
  %v2777 = vpop.permute.xlu0 %2776
  %2778 = vrot.lane.b32.xlu0 %v2739, 126
  %v2779 = vpop.permute.xlu0 %2778
  %2780 = vrot.lane.b32.xlu0 %v2740, 126
  %v2781 = vpop.permute.xlu0 %2780
  %2782 = vrot.lane.b32.xlu0 %v2741, 126
  %v2783 = vpop.permute.xlu0 %2782
  %2784 = vrot.lane.b32.xlu0 %v2742, 126
  %v2785 = vpop.permute.xlu0 %2784
  %2786 = vrot.lane.b32.xlu0 %v2743, 126
  %v2787 = vpop.permute.xlu0 %2786
  %2788 = vrot.lane.b32.xlu0 %v2744, 126
  %v2789 = vpop.permute.xlu0 %2788
  %2790 = vrot.lane.b32.xlu0 %v2745, 126
  %v2791 = vpop.permute.xlu0 %2790
  %2792 = vrot.lane.b32.xlu0 %v2746, 126
  %v2793 = vpop.permute.xlu0 %2792
  %2794 = vrot.lane.b32.xlu0 %v2747, 126
  %v2795 = vpop.permute.xlu0 %2794
  %2796 = vrot.lane.b32.xlu0 %v2748, 126
  %v2797 = vpop.permute.xlu0 %2796
  %2798 = vrot.lane.b32.xlu0 %v2749, 126
  %v2799 = vpop.permute.xlu0 %2798
  %2800 = vrot.lane.b32.xlu0 %v2750, 126
  %v2801 = vpop.permute.xlu0 %2800
  %2802 = vrot.lane.b32.xlu0 %v2751, 126
  %v2803 = vpop.permute.xlu0 %2802
  %2804 = vrot.lane.b32.xlu0 %v2752, 126
  %v2805 = vpop.permute.xlu0 %2804
  %v2806 = vsel %vm212, %v2773, %v2775
  %v2807 = vsel %vm212, %v2775, %v2777
  %v2808 = vsel %vm212, %v2777, %v2779
  %v2809 = vsel %vm212, %v2779, %v2781
  %v2810 = vsel %vm212, %v2781, %v2783
  %v2811 = vsel %vm212, %v2783, %v2785
  %v2812 = vsel %vm212, %v2785, %v2787
  %v2813 = vsel %vm212, %v2787, %v2789
  %v2814 = vsel %vm212, %v2789, %v2791
  %v2815 = vsel %vm212, %v2791, %v2793
  %v2816 = vsel %vm212, %v2793, %v2795
  %v2817 = vsel %vm212, %v2795, %v2797
  %v2818 = vsel %vm212, %v2797, %v2799
  %v2819 = vsel %vm212, %v2799, %v2801
  %v2820 = vsel %vm212, %v2801, %v2803
  %v2821 = vsel %vm212, %v2803, %v2805
  %2838 = vrot.lane.b32.xlu0 %v2736, 124
  %v2839 = vpop.permute.xlu0 %2838
  %2840 = vrot.lane.b32.xlu0 %v2737, 124
  %v2841 = vpop.permute.xlu0 %2840
  %2842 = vrot.lane.b32.xlu0 %v2738, 124
  %v2843 = vpop.permute.xlu0 %2842
  %2844 = vrot.lane.b32.xlu0 %v2739, 124
  %v2845 = vpop.permute.xlu0 %2844
  %2846 = vrot.lane.b32.xlu0 %v2740, 124
  %v2847 = vpop.permute.xlu0 %2846
  %2848 = vrot.lane.b32.xlu0 %v2741, 124
  %v2849 = vpop.permute.xlu0 %2848
  %2850 = vrot.lane.b32.xlu0 %v2742, 124
  %v2851 = vpop.permute.xlu0 %2850
  %2852 = vrot.lane.b32.xlu0 %v2743, 124
  %v2853 = vpop.permute.xlu0 %2852
  %2854 = vrot.lane.b32.xlu0 %v2744, 124
  %v2855 = vpop.permute.xlu0 %2854
  %2856 = vrot.lane.b32.xlu0 %v2745, 124
  %v2857 = vpop.permute.xlu0 %2856
  %2858 = vrot.lane.b32.xlu0 %v2746, 124
  %v2859 = vpop.permute.xlu0 %2858
  %2860 = vrot.lane.b32.xlu0 %v2747, 124
  %v2861 = vpop.permute.xlu0 %2860
  %2862 = vrot.lane.b32.xlu0 %v2748, 124
  %v2863 = vpop.permute.xlu0 %2862
  %2864 = vrot.lane.b32.xlu0 %v2749, 124
  %v2865 = vpop.permute.xlu0 %2864
  %2866 = vrot.lane.b32.xlu0 %v2750, 124
  %v2867 = vpop.permute.xlu0 %2866
  %2868 = vrot.lane.b32.xlu0 %v2751, 124
  %v2869 = vpop.permute.xlu0 %2868
  %2870 = vrot.lane.b32.xlu0 %v2752, 124
  %v2871 = vpop.permute.xlu0 %2870
  %v2872 = vsel %vm346, %v2839, %v2841
  %v2873 = vsel %vm346, %v2841, %v2843
  %v2874 = vsel %vm346, %v2843, %v2845
  %v2875 = vsel %vm346, %v2845, %v2847
  %v2876 = vsel %vm346, %v2847, %v2849
  %v2877 = vsel %vm346, %v2849, %v2851
  %v2878 = vsel %vm346, %v2851, %v2853
  %v2879 = vsel %vm346, %v2853, %v2855
  %v2880 = vsel %vm346, %v2855, %v2857
  %v2881 = vsel %vm346, %v2857, %v2859
  %v2882 = vsel %vm346, %v2859, %v2861
  %v2883 = vsel %vm346, %v2861, %v2863
  %v2884 = vsel %vm346, %v2863, %v2865
  %v2885 = vsel %vm346, %v2865, %v2867
  %v2886 = vsel %vm346, %v2867, %v2869
  %v2887 = vsel %vm346, %v2869, %v2871
  %2904 = vrot.lane.b32.xlu0 %v2736, 122
  %v2905 = vpop.permute.xlu0 %2904
  %2906 = vrot.lane.b32.xlu0 %v2737, 122
  %v2907 = vpop.permute.xlu0 %2906
  %2908 = vrot.lane.b32.xlu0 %v2738, 122
  %v2909 = vpop.permute.xlu0 %2908
  %2910 = vrot.lane.b32.xlu0 %v2739, 122
  %v2911 = vpop.permute.xlu0 %2910
  %2912 = vrot.lane.b32.xlu0 %v2740, 122
  %v2913 = vpop.permute.xlu0 %2912
  %2914 = vrot.lane.b32.xlu0 %v2741, 122
  %v2915 = vpop.permute.xlu0 %2914
  %2916 = vrot.lane.b32.xlu0 %v2742, 122
  %v2917 = vpop.permute.xlu0 %2916
  %2918 = vrot.lane.b32.xlu0 %v2743, 122
  %v2919 = vpop.permute.xlu0 %2918
  %2920 = vrot.lane.b32.xlu0 %v2744, 122
  %v2921 = vpop.permute.xlu0 %2920
  %2922 = vrot.lane.b32.xlu0 %v2745, 122
  %v2923 = vpop.permute.xlu0 %2922
  %2924 = vrot.lane.b32.xlu0 %v2746, 122
  %v2925 = vpop.permute.xlu0 %2924
  %2926 = vrot.lane.b32.xlu0 %v2747, 122
  %v2927 = vpop.permute.xlu0 %2926
  %2928 = vrot.lane.b32.xlu0 %v2748, 122
  %v2929 = vpop.permute.xlu0 %2928
  %2930 = vrot.lane.b32.xlu0 %v2749, 122
  %v2931 = vpop.permute.xlu0 %2930
  %2932 = vrot.lane.b32.xlu0 %v2750, 122
  %v2933 = vpop.permute.xlu0 %2932
  %2934 = vrot.lane.b32.xlu0 %v2751, 122
  %v2935 = vpop.permute.xlu0 %2934
  %2936 = vrot.lane.b32.xlu0 %v2752, 122
  %v2937 = vpop.permute.xlu0 %2936
  %vm2938 = vcmask 998400
  %v2939 = vsel %vm2938, %v2905, %v2907
  %v2940 = vsel %vm2938, %v2907, %v2909
  %v2941 = vsel %vm2938, %v2909, %v2911
  %v2942 = vsel %vm2938, %v2911, %v2913
  %v2943 = vsel %vm2938, %v2913, %v2915
  %v2944 = vsel %vm2938, %v2915, %v2917
  %v2945 = vsel %vm2938, %v2917, %v2919
  %v2946 = vsel %vm2938, %v2919, %v2921
  %v2947 = vsel %vm2938, %v2921, %v2923
  %v2948 = vsel %vm2938, %v2923, %v2925
  %v2949 = vsel %vm2938, %v2925, %v2927
  %v2950 = vsel %vm2938, %v2927, %v2929
  %v2951 = vsel %vm2938, %v2929, %v2931
  %v2952 = vsel %vm2938, %v2931, %v2933
  %v2953 = vsel %vm2938, %v2933, %v2935
  %v2954 = vsel %vm2938, %v2935, %v2937
  %2971 = vrot.lane.b32.xlu0 %v2736, 120
  %v2972 = vpop.permute.xlu0 %2971
  %2973 = vrot.lane.b32.xlu0 %v2737, 120
  %v2974 = vpop.permute.xlu0 %2973
  %2975 = vrot.lane.b32.xlu0 %v2738, 120
  %v2976 = vpop.permute.xlu0 %2975
  %2977 = vrot.lane.b32.xlu0 %v2739, 120
  %v2978 = vpop.permute.xlu0 %2977
  %2979 = vrot.lane.b32.xlu0 %v2740, 120
  %v2980 = vpop.permute.xlu0 %2979
  %2981 = vrot.lane.b32.xlu0 %v2741, 120
  %v2982 = vpop.permute.xlu0 %2981
  %2983 = vrot.lane.b32.xlu0 %v2742, 120
  %v2984 = vpop.permute.xlu0 %2983
  %2985 = vrot.lane.b32.xlu0 %v2743, 120
  %v2986 = vpop.permute.xlu0 %2985
  %2987 = vrot.lane.b32.xlu0 %v2744, 120
  %v2988 = vpop.permute.xlu0 %2987
  %2989 = vrot.lane.b32.xlu0 %v2745, 120
  %v2990 = vpop.permute.xlu0 %2989
  %2991 = vrot.lane.b32.xlu0 %v2746, 120
  %v2992 = vpop.permute.xlu0 %2991
  %2993 = vrot.lane.b32.xlu0 %v2747, 120
  %v2994 = vpop.permute.xlu0 %2993
  %2995 = vrot.lane.b32.xlu0 %v2748, 120
  %v2996 = vpop.permute.xlu0 %2995
  %2997 = vrot.lane.b32.xlu0 %v2749, 120
  %v2998 = vpop.permute.xlu0 %2997
  %2999 = vrot.lane.b32.xlu0 %v2750, 120
  %v3000 = vpop.permute.xlu0 %2999
  %3001 = vrot.lane.b32.xlu0 %v2751, 120
  %v3002 = vpop.permute.xlu0 %3001
  %3003 = vrot.lane.b32.xlu0 %v2752, 120
  %v3004 = vpop.permute.xlu0 %3003
  %vm3005 = vcmask 982016
  %v3006 = vsel %vm3005, %v2972, %v2974
  %v3007 = vsel %vm3005, %v2974, %v2976
  %v3008 = vsel %vm3005, %v2976, %v2978
  %v3009 = vsel %vm3005, %v2978, %v2980
  %v3010 = vsel %vm3005, %v2980, %v2982
  %v3011 = vsel %vm3005, %v2982, %v2984
  %v3012 = vsel %vm3005, %v2984, %v2986
  %v3013 = vsel %vm3005, %v2986, %v2988
  %v3014 = vsel %vm3005, %v2988, %v2990
  %v3015 = vsel %vm3005, %v2990, %v2992
  %v3016 = vsel %vm3005, %v2992, %v2994
  %v3017 = vsel %vm3005, %v2994, %v2996
  %v3018 = vsel %vm3005, %v2996, %v2998
  %v3019 = vsel %vm3005, %v2998, %v3000
  %v3020 = vsel %vm3005, %v3000, %v3002
  %v3021 = vsel %vm3005, %v3002, %v3004
  %3038 = vrot.lane.b32.xlu0 %v2736, 64
  %v3039 = vpop.permute.xlu0 %3038
  %3040 = vrot.lane.b32.xlu0 %v2737, 64
  %v3041 = vpop.permute.xlu0 %3040
  %3042 = vrot.lane.b32.xlu0 %v2738, 64
  %v3043 = vpop.permute.xlu0 %3042
  %3044 = vrot.lane.b32.xlu0 %v2739, 64
  %v3045 = vpop.permute.xlu0 %3044
  %3046 = vrot.lane.b32.xlu0 %v2740, 64
  %v3047 = vpop.permute.xlu0 %3046
  %3048 = vrot.lane.b32.xlu0 %v2741, 64
  %v3049 = vpop.permute.xlu0 %3048
  %3050 = vrot.lane.b32.xlu0 %v2742, 64
  %v3051 = vpop.permute.xlu0 %3050
  %3052 = vrot.lane.b32.xlu0 %v2743, 64
  %v3053 = vpop.permute.xlu0 %3052
  %3054 = vrot.lane.b32.xlu0 %v2744, 64
  %v3055 = vpop.permute.xlu0 %3054
  %3056 = vrot.lane.b32.xlu0 %v2745, 64
  %v3057 = vpop.permute.xlu0 %3056
  %3058 = vrot.lane.b32.xlu0 %v2746, 64
  %v3059 = vpop.permute.xlu0 %3058
  %3060 = vrot.lane.b32.xlu0 %v2747, 64
  %v3061 = vpop.permute.xlu0 %3060
  %3062 = vrot.lane.b32.xlu0 %v2748, 64
  %v3063 = vpop.permute.xlu0 %3062
  %3064 = vrot.lane.b32.xlu0 %v2749, 64
  %v3065 = vpop.permute.xlu0 %3064
  %3066 = vrot.lane.b32.xlu0 %v2750, 64
  %v3067 = vpop.permute.xlu0 %3066
  %3068 = vrot.lane.b32.xlu0 %v2751, 64
  %v3069 = vpop.permute.xlu0 %3068
  %3070 = vrot.lane.b32.xlu0 %v2752, 64
  %v3071 = vpop.permute.xlu0 %3070
  %v3072 = vsel %vm748, %v3039, %v3041
  %v3073 = vsel %vm748, %v3041, %v3043
  %v3074 = vsel %vm748, %v3043, %v3045
  %v3075 = vsel %vm748, %v3045, %v3047
  %v3076 = vsel %vm748, %v3047, %v3049
  %v3077 = vsel %vm748, %v3049, %v3051
  %v3078 = vsel %vm748, %v3051, %v3053
  %v3079 = vsel %vm748, %v3053, %v3055
  %v3080 = vsel %vm748, %v3055, %v3057
  %v3081 = vsel %vm748, %v3057, %v3059
  %v3082 = vsel %vm748, %v3059, %v3061
  %v3083 = vsel %vm748, %v3061, %v3063
  %v3084 = vsel %vm748, %v3063, %v3065
  %v3085 = vsel %vm748, %v3065, %v3067
  %v3086 = vsel %vm748, %v3067, %v3069
  %v3087 = vsel %vm748, %v3069, %v3071
  %3104 = vrot.lane.b32.xlu0 %v2736, 62
  %v3105 = vpop.permute.xlu0 %3104
  %3106 = vrot.lane.b32.xlu0 %v2737, 62
  %v3107 = vpop.permute.xlu0 %3106
  %3108 = vrot.lane.b32.xlu0 %v2738, 62
  %v3109 = vpop.permute.xlu0 %3108
  %3110 = vrot.lane.b32.xlu0 %v2739, 62
  %v3111 = vpop.permute.xlu0 %3110
  %3112 = vrot.lane.b32.xlu0 %v2740, 62
  %v3113 = vpop.permute.xlu0 %3112
  %3114 = vrot.lane.b32.xlu0 %v2741, 62
  %v3115 = vpop.permute.xlu0 %3114
  %3116 = vrot.lane.b32.xlu0 %v2742, 62
  %v3117 = vpop.permute.xlu0 %3116
  %3118 = vrot.lane.b32.xlu0 %v2743, 62
  %v3119 = vpop.permute.xlu0 %3118
  %3120 = vrot.lane.b32.xlu0 %v2744, 62
  %v3121 = vpop.permute.xlu0 %3120
  %3122 = vrot.lane.b32.xlu0 %v2745, 62
  %v3123 = vpop.permute.xlu0 %3122
  %3124 = vrot.lane.b32.xlu0 %v2746, 62
  %v3125 = vpop.permute.xlu0 %3124
  %3126 = vrot.lane.b32.xlu0 %v2747, 62
  %v3127 = vpop.permute.xlu0 %3126
  %3128 = vrot.lane.b32.xlu0 %v2748, 62
  %v3129 = vpop.permute.xlu0 %3128
  %3130 = vrot.lane.b32.xlu0 %v2749, 62
  %v3131 = vpop.permute.xlu0 %3130
  %3132 = vrot.lane.b32.xlu0 %v2750, 62
  %v3133 = vpop.permute.xlu0 %3132
  %3134 = vrot.lane.b32.xlu0 %v2751, 62
  %v3135 = vpop.permute.xlu0 %3134
  %3136 = vrot.lane.b32.xlu0 %v2752, 62
  %v3137 = vpop.permute.xlu0 %3136
  %v3138 = vsel %vm882, %v3105, %v3107
  %v3139 = vsel %vm882, %v3107, %v3109
  %v3140 = vsel %vm882, %v3109, %v3111
  %v3141 = vsel %vm882, %v3111, %v3113
  %v3142 = vsel %vm882, %v3113, %v3115
  %v3143 = vsel %vm882, %v3115, %v3117
  %v3144 = vsel %vm882, %v3117, %v3119
  %v3145 = vsel %vm882, %v3119, %v3121
  %v3146 = vsel %vm882, %v3121, %v3123
  %v3147 = vsel %vm882, %v3123, %v3125
  %v3148 = vsel %vm882, %v3125, %v3127
  %v3149 = vsel %vm882, %v3127, %v3129
  %v3150 = vsel %vm882, %v3129, %v3131
  %v3151 = vsel %vm882, %v3131, %v3133
  %v3152 = vsel %vm882, %v3133, %v3135
  %v3153 = vsel %vm882, %v3135, %v3137
  %3170 = vrot.lane.b32.xlu0 %v2736, 60
  %v3171 = vpop.permute.xlu0 %3170
  %3172 = vrot.lane.b32.xlu0 %v2737, 60
  %v3173 = vpop.permute.xlu0 %3172
  %3174 = vrot.lane.b32.xlu0 %v2738, 60
  %v3175 = vpop.permute.xlu0 %3174
  %3176 = vrot.lane.b32.xlu0 %v2739, 60
  %v3177 = vpop.permute.xlu0 %3176
  %3178 = vrot.lane.b32.xlu0 %v2740, 60
  %v3179 = vpop.permute.xlu0 %3178
  %3180 = vrot.lane.b32.xlu0 %v2741, 60
  %v3181 = vpop.permute.xlu0 %3180
  %3182 = vrot.lane.b32.xlu0 %v2742, 60
  %v3183 = vpop.permute.xlu0 %3182
  %3184 = vrot.lane.b32.xlu0 %v2743, 60
  %v3185 = vpop.permute.xlu0 %3184
  %3186 = vrot.lane.b32.xlu0 %v2744, 60
  %v3187 = vpop.permute.xlu0 %3186
  %3188 = vrot.lane.b32.xlu0 %v2745, 60
  %v3189 = vpop.permute.xlu0 %3188
  %3190 = vrot.lane.b32.xlu0 %v2746, 60
  %v3191 = vpop.permute.xlu0 %3190
  %3192 = vrot.lane.b32.xlu0 %v2747, 60
  %v3193 = vpop.permute.xlu0 %3192
  %3194 = vrot.lane.b32.xlu0 %v2748, 60
  %v3195 = vpop.permute.xlu0 %3194
  %3196 = vrot.lane.b32.xlu0 %v2749, 60
  %v3197 = vpop.permute.xlu0 %3196
  %3198 = vrot.lane.b32.xlu0 %v2750, 60
  %v3199 = vpop.permute.xlu0 %3198
  %3200 = vrot.lane.b32.xlu0 %v2751, 60
  %v3201 = vpop.permute.xlu0 %3200
  %3202 = vrot.lane.b32.xlu0 %v2752, 60
  %v3203 = vpop.permute.xlu0 %3202
  %v3204 = vsel %vm1016, %v3171, %v3173
  %v3205 = vsel %vm1016, %v3173, %v3175
  %v3206 = vsel %vm1016, %v3175, %v3177
  %v3207 = vsel %vm1016, %v3177, %v3179
  %v3208 = vsel %vm1016, %v3179, %v3181
  %v3209 = vsel %vm1016, %v3181, %v3183
  %v3210 = vsel %vm1016, %v3183, %v3185
  %v3211 = vsel %vm1016, %v3185, %v3187
  %v3212 = vsel %vm1016, %v3187, %v3189
  %v3213 = vsel %vm1016, %v3189, %v3191
  %v3214 = vsel %vm1016, %v3191, %v3193
  %v3215 = vsel %vm1016, %v3193, %v3195
  %v3216 = vsel %vm1016, %v3195, %v3197
  %v3217 = vsel %vm1016, %v3197, %v3199
  %v3218 = vsel %vm1016, %v3199, %v3201
  %v3219 = vsel %vm1016, %v3201, %v3203
  %3236 = vrot.lane.b32.xlu0 %v2736, 58
  %v3237 = vpop.permute.xlu0 %3236
  %3238 = vrot.lane.b32.xlu0 %v2737, 58
  %v3239 = vpop.permute.xlu0 %3238
  %3240 = vrot.lane.b32.xlu0 %v2738, 58
  %v3241 = vpop.permute.xlu0 %3240
  %3242 = vrot.lane.b32.xlu0 %v2739, 58
  %v3243 = vpop.permute.xlu0 %3242
  %3244 = vrot.lane.b32.xlu0 %v2740, 58
  %v3245 = vpop.permute.xlu0 %3244
  %3246 = vrot.lane.b32.xlu0 %v2741, 58
  %v3247 = vpop.permute.xlu0 %3246
  %3248 = vrot.lane.b32.xlu0 %v2742, 58
  %v3249 = vpop.permute.xlu0 %3248
  %3250 = vrot.lane.b32.xlu0 %v2743, 58
  %v3251 = vpop.permute.xlu0 %3250
  %3252 = vrot.lane.b32.xlu0 %v2744, 58
  %v3253 = vpop.permute.xlu0 %3252
  %3254 = vrot.lane.b32.xlu0 %v2745, 58
  %v3255 = vpop.permute.xlu0 %3254
  %3256 = vrot.lane.b32.xlu0 %v2746, 58
  %v3257 = vpop.permute.xlu0 %3256
  %3258 = vrot.lane.b32.xlu0 %v2747, 58
  %v3259 = vpop.permute.xlu0 %3258
  %3260 = vrot.lane.b32.xlu0 %v2748, 58
  %v3261 = vpop.permute.xlu0 %3260
  %3262 = vrot.lane.b32.xlu0 %v2749, 58
  %v3263 = vpop.permute.xlu0 %3262
  %3264 = vrot.lane.b32.xlu0 %v2750, 58
  %v3265 = vpop.permute.xlu0 %3264
  %3266 = vrot.lane.b32.xlu0 %v2751, 58
  %v3267 = vpop.permute.xlu0 %3266
  %3268 = vrot.lane.b32.xlu0 %v2752, 58
  %v3269 = vpop.permute.xlu0 %3268
  %vm3270 = vcmask 474112
  %v3271 = vsel %vm3270, %v3237, %v3239
  %v3272 = vsel %vm3270, %v3239, %v3241
  %v3273 = vsel %vm3270, %v3241, %v3243
  %v3274 = vsel %vm3270, %v3243, %v3245
  %v3275 = vsel %vm3270, %v3245, %v3247
  %v3276 = vsel %vm3270, %v3247, %v3249
  %v3277 = vsel %vm3270, %v3249, %v3251
  %v3278 = vsel %vm3270, %v3251, %v3253
  %v3279 = vsel %vm3270, %v3253, %v3255
  %v3280 = vsel %vm3270, %v3255, %v3257
  %v3281 = vsel %vm3270, %v3257, %v3259
  %v3282 = vsel %vm3270, %v3259, %v3261
  %v3283 = vsel %vm3270, %v3261, %v3263
  %v3284 = vsel %vm3270, %v3263, %v3265
  %v3285 = vsel %vm3270, %v3265, %v3267
  %v3286 = vsel %vm3270, %v3267, %v3269
  %3303 = vrot.lane.b32.xlu0 %v2736, 56
  %v3304 = vpop.permute.xlu0 %3303
  %3305 = vrot.lane.b32.xlu0 %v2737, 56
  %v3306 = vpop.permute.xlu0 %3305
  %3307 = vrot.lane.b32.xlu0 %v2738, 56
  %v3308 = vpop.permute.xlu0 %3307
  %3309 = vrot.lane.b32.xlu0 %v2739, 56
  %v3310 = vpop.permute.xlu0 %3309
  %3311 = vrot.lane.b32.xlu0 %v2740, 56
  %v3312 = vpop.permute.xlu0 %3311
  %3313 = vrot.lane.b32.xlu0 %v2741, 56
  %v3314 = vpop.permute.xlu0 %3313
  %3315 = vrot.lane.b32.xlu0 %v2742, 56
  %v3316 = vpop.permute.xlu0 %3315
  %3317 = vrot.lane.b32.xlu0 %v2743, 56
  %v3318 = vpop.permute.xlu0 %3317
  %3319 = vrot.lane.b32.xlu0 %v2744, 56
  %v3320 = vpop.permute.xlu0 %3319
  %3321 = vrot.lane.b32.xlu0 %v2745, 56
  %v3322 = vpop.permute.xlu0 %3321
  %3323 = vrot.lane.b32.xlu0 %v2746, 56
  %v3324 = vpop.permute.xlu0 %3323
  %3325 = vrot.lane.b32.xlu0 %v2747, 56
  %v3326 = vpop.permute.xlu0 %3325
  %3327 = vrot.lane.b32.xlu0 %v2748, 56
  %v3328 = vpop.permute.xlu0 %3327
  %3329 = vrot.lane.b32.xlu0 %v2749, 56
  %v3330 = vpop.permute.xlu0 %3329
  %3331 = vrot.lane.b32.xlu0 %v2750, 56
  %v3332 = vpop.permute.xlu0 %3331
  %3333 = vrot.lane.b32.xlu0 %v2751, 56
  %v3334 = vpop.permute.xlu0 %3333
  %3335 = vrot.lane.b32.xlu0 %v2752, 56
  %v3336 = vpop.permute.xlu0 %3335
  %vm3337 = vcmask 457728
  %v3338 = vsel %vm3337, %v3304, %v3306
  %v3339 = vsel %vm3337, %v3306, %v3308
  %v3340 = vsel %vm3337, %v3308, %v3310
  %v3341 = vsel %vm3337, %v3310, %v3312
  %v3342 = vsel %vm3337, %v3312, %v3314
  %v3343 = vsel %vm3337, %v3314, %v3316
  %v3344 = vsel %vm3337, %v3316, %v3318
  %v3345 = vsel %vm3337, %v3318, %v3320
  %v3346 = vsel %vm3337, %v3320, %v3322
  %v3347 = vsel %vm3337, %v3322, %v3324
  %v3348 = vsel %vm3337, %v3324, %v3326
  %v3349 = vsel %vm3337, %v3326, %v3328
  %v3350 = vsel %vm3337, %v3328, %v3330
  %v3351 = vsel %vm3337, %v3330, %v3332
  %v3352 = vsel %vm3337, %v3332, %v3334
  %v3353 = vsel %vm3337, %v3334, %v3336
  %3371 = vrot.lane.b32.xlu0 %v2753, 126
  %v3372 = vpop.permute.xlu0 %3371
  %v3373 = vsel %vm212, %v2805, %v3372
  %3375 = vrot.lane.b32.xlu0 %v2753, 124
  %v3376 = vpop.permute.xlu0 %3375
  %v3377 = vsel %vm346, %v2871, %v3376
  %3379 = vrot.lane.b32.xlu0 %v2753, 122
  %v3380 = vpop.permute.xlu0 %3379
  %v3381 = vsel %vm2938, %v2937, %v3380
  %3383 = vrot.lane.b32.xlu0 %v2753, 120
  %v3384 = vpop.permute.xlu0 %3383
  %v3385 = vsel %vm3005, %v3004, %v3384
  %3387 = vrot.lane.b32.xlu0 %v2753, 64
  %v3388 = vpop.permute.xlu0 %3387
  %v3389 = vsel %vm748, %v3071, %v3388
  %3391 = vrot.lane.b32.xlu0 %v2738, 66
  %v3392 = vpop.permute.xlu0 %3391
  %3393 = vrot.lane.b32.xlu0 %v2739, 66
  %v3394 = vpop.permute.xlu0 %3393
  %3395 = vrot.lane.b32.xlu0 %v2740, 66
  %v3396 = vpop.permute.xlu0 %3395
  %3397 = vrot.lane.b32.xlu0 %v2741, 66
  %v3398 = vpop.permute.xlu0 %3397
  %3399 = vrot.lane.b32.xlu0 %v2742, 66
  %v3400 = vpop.permute.xlu0 %3399
  %3401 = vrot.lane.b32.xlu0 %v2743, 66
  %v3402 = vpop.permute.xlu0 %3401
  %3403 = vrot.lane.b32.xlu0 %v2744, 66
  %v3404 = vpop.permute.xlu0 %3403
  %3405 = vrot.lane.b32.xlu0 %v2745, 66
  %v3406 = vpop.permute.xlu0 %3405
  %3407 = vrot.lane.b32.xlu0 %v2746, 66
  %v3408 = vpop.permute.xlu0 %3407
  %3409 = vrot.lane.b32.xlu0 %v2747, 66
  %v3410 = vpop.permute.xlu0 %3409
  %3411 = vrot.lane.b32.xlu0 %v2748, 66
  %v3412 = vpop.permute.xlu0 %3411
  %3413 = vrot.lane.b32.xlu0 %v2749, 66
  %v3414 = vpop.permute.xlu0 %3413
  %3415 = vrot.lane.b32.xlu0 %v2750, 66
  %v3416 = vpop.permute.xlu0 %3415
  %3417 = vrot.lane.b32.xlu0 %v2751, 66
  %v3418 = vpop.permute.xlu0 %3417
  %3419 = vrot.lane.b32.xlu0 %v2752, 66
  %v3420 = vpop.permute.xlu0 %3419
  %3421 = vrot.lane.b32.xlu0 %v2753, 66
  %v3422 = vpop.permute.xlu0 %3421
  %vm3423 = vcmask 539648
  %v3424 = vsel %vm3423, %v3392, %v3394
  %v3425 = vsel %vm3423, %v3394, %v3396
  %v3426 = vsel %vm3423, %v3396, %v3398
  %v3427 = vsel %vm3423, %v3398, %v3400
  %v3428 = vsel %vm3423, %v3400, %v3402
  %v3429 = vsel %vm3423, %v3402, %v3404
  %v3430 = vsel %vm3423, %v3404, %v3406
  %v3431 = vsel %vm3423, %v3406, %v3408
  %v3432 = vsel %vm3423, %v3408, %v3410
  %v3433 = vsel %vm3423, %v3410, %v3412
  %v3434 = vsel %vm3423, %v3412, %v3414
  %v3435 = vsel %vm3423, %v3414, %v3416
  %v3436 = vsel %vm3423, %v3416, %v3418
  %v3437 = vsel %vm3423, %v3418, %v3420
  %v3438 = vsel %vm3423, %v3420, %v3422
  %3440 = vrot.lane.b32.xlu0 %v2754, 64
  %v3441 = vpop.permute.xlu0 %3440
  %v3442 = vsel %vm748, %v3388, %v3441
  %3443 = vrot.lane.b32.xlu0 %v2753, 62
  %v3444 = vpop.permute.xlu0 %3443
  %3445 = vrot.lane.b32.xlu0 %v2754, 62
  %v3446 = vpop.permute.xlu0 %3445
  %v3447 = vsel %vm882, %v3137, %v3444
  %v3448 = vsel %vm882, %v3444, %v3446
  %3449 = vrot.lane.b32.xlu0 %v2753, 60
  %v3450 = vpop.permute.xlu0 %3449
  %3451 = vrot.lane.b32.xlu0 %v2754, 60
  %v3452 = vpop.permute.xlu0 %3451
  %v3453 = vsel %vm1016, %v3203, %v3450
  %v3454 = vsel %vm1016, %v3450, %v3452
  %3455 = vrot.lane.b32.xlu0 %v2753, 58
  %v3456 = vpop.permute.xlu0 %3455
  %3457 = vrot.lane.b32.xlu0 %v2754, 58
  %v3458 = vpop.permute.xlu0 %3457
  %v3459 = vsel %vm3270, %v3269, %v3456
  %v3460 = vsel %vm3270, %v3456, %v3458
  %3461 = vrot.lane.b32.xlu0 %v2807, 62
  %v3462 = vpop.permute.xlu0 %3461
  %3463 = vrot.lane.b32.xlu0 %v2808, 62
  %v3464 = vpop.permute.xlu0 %3463
  %3465 = vrot.lane.b32.xlu0 %v2809, 62
  %v3466 = vpop.permute.xlu0 %3465
  %3467 = vrot.lane.b32.xlu0 %v2810, 62
  %v3468 = vpop.permute.xlu0 %3467
  %3469 = vrot.lane.b32.xlu0 %v2811, 62
  %v3470 = vpop.permute.xlu0 %3469
  %3471 = vrot.lane.b32.xlu0 %v2812, 62
  %v3472 = vpop.permute.xlu0 %3471
  %3473 = vrot.lane.b32.xlu0 %v2813, 62
  %v3474 = vpop.permute.xlu0 %3473
  %3475 = vrot.lane.b32.xlu0 %v2814, 62
  %v3476 = vpop.permute.xlu0 %3475
  %3477 = vrot.lane.b32.xlu0 %v2815, 62
  %v3478 = vpop.permute.xlu0 %3477
  %3479 = vrot.lane.b32.xlu0 %v2816, 62
  %v3480 = vpop.permute.xlu0 %3479
  %3481 = vrot.lane.b32.xlu0 %v2817, 62
  %v3482 = vpop.permute.xlu0 %3481
  %3483 = vrot.lane.b32.xlu0 %v2818, 62
  %v3484 = vpop.permute.xlu0 %3483
  %3485 = vrot.lane.b32.xlu0 %v2819, 62
  %v3486 = vpop.permute.xlu0 %3485
  %3487 = vrot.lane.b32.xlu0 %v2820, 62
  %v3488 = vpop.permute.xlu0 %3487
  %3489 = vrot.lane.b32.xlu0 %v2821, 62
  %v3490 = vpop.permute.xlu0 %3489
  %3491 = vrot.lane.b32.xlu0 %v3373, 62
  %v3492 = vpop.permute.xlu0 %3491
  %3493 = vrot.lane.b32.xlu0 %v3372, 62
  %v3494 = vpop.permute.xlu0 %3493
  %3495 = vrot.lane.b32.xlu0 %v2873, 62
  %v3496 = vpop.permute.xlu0 %3495
  %3497 = vrot.lane.b32.xlu0 %v2874, 62
  %v3498 = vpop.permute.xlu0 %3497
  %3499 = vrot.lane.b32.xlu0 %v2875, 62
  %v3500 = vpop.permute.xlu0 %3499
  %3501 = vrot.lane.b32.xlu0 %v2876, 62
  %v3502 = vpop.permute.xlu0 %3501
  %3503 = vrot.lane.b32.xlu0 %v2877, 62
  %v3504 = vpop.permute.xlu0 %3503
  %3505 = vrot.lane.b32.xlu0 %v2878, 62
  %v3506 = vpop.permute.xlu0 %3505
  %3507 = vrot.lane.b32.xlu0 %v2879, 62
  %v3508 = vpop.permute.xlu0 %3507
  %3509 = vrot.lane.b32.xlu0 %v2880, 62
  %v3510 = vpop.permute.xlu0 %3509
  %3511 = vrot.lane.b32.xlu0 %v2881, 62
  %v3512 = vpop.permute.xlu0 %3511
  %3513 = vrot.lane.b32.xlu0 %v2882, 62
  %v3514 = vpop.permute.xlu0 %3513
  %3515 = vrot.lane.b32.xlu0 %v2883, 62
  %v3516 = vpop.permute.xlu0 %3515
  %3517 = vrot.lane.b32.xlu0 %v2884, 62
  %v3518 = vpop.permute.xlu0 %3517
  %3519 = vrot.lane.b32.xlu0 %v2885, 62
  %v3520 = vpop.permute.xlu0 %3519
  %3521 = vrot.lane.b32.xlu0 %v2886, 62
  %v3522 = vpop.permute.xlu0 %3521
  %3523 = vrot.lane.b32.xlu0 %v2887, 62
  %v3524 = vpop.permute.xlu0 %3523
  %3525 = vrot.lane.b32.xlu0 %v3377, 62
  %v3526 = vpop.permute.xlu0 %3525
  %3527 = vrot.lane.b32.xlu0 %v3376, 62
  %v3528 = vpop.permute.xlu0 %3527
  %3529 = vrot.lane.b32.xlu0 %v2940, 62
  %v3530 = vpop.permute.xlu0 %3529
  %3531 = vrot.lane.b32.xlu0 %v2941, 62
  %v3532 = vpop.permute.xlu0 %3531
  %3533 = vrot.lane.b32.xlu0 %v2942, 62
  %v3534 = vpop.permute.xlu0 %3533
  %3535 = vrot.lane.b32.xlu0 %v2943, 62
  %v3536 = vpop.permute.xlu0 %3535
  %3537 = vrot.lane.b32.xlu0 %v2944, 62
  %v3538 = vpop.permute.xlu0 %3537
  %3539 = vrot.lane.b32.xlu0 %v2945, 62
  %v3540 = vpop.permute.xlu0 %3539
  %3541 = vrot.lane.b32.xlu0 %v2946, 62
  %v3542 = vpop.permute.xlu0 %3541
  %3543 = vrot.lane.b32.xlu0 %v2947, 62
  %v3544 = vpop.permute.xlu0 %3543
  %3545 = vrot.lane.b32.xlu0 %v2948, 62
  %v3546 = vpop.permute.xlu0 %3545
  %3547 = vrot.lane.b32.xlu0 %v2949, 62
  %v3548 = vpop.permute.xlu0 %3547
  %3549 = vrot.lane.b32.xlu0 %v2950, 62
  %v3550 = vpop.permute.xlu0 %3549
  %3551 = vrot.lane.b32.xlu0 %v2951, 62
  %v3552 = vpop.permute.xlu0 %3551
  %3553 = vrot.lane.b32.xlu0 %v2952, 62
  %v3554 = vpop.permute.xlu0 %3553
  %3555 = vrot.lane.b32.xlu0 %v2953, 62
  %v3556 = vpop.permute.xlu0 %3555
  %3557 = vrot.lane.b32.xlu0 %v2954, 62
  %v3558 = vpop.permute.xlu0 %3557
  %3559 = vrot.lane.b32.xlu0 %v3381, 62
  %v3560 = vpop.permute.xlu0 %3559
  %3561 = vrot.lane.b32.xlu0 %v3380, 62
  %v3562 = vpop.permute.xlu0 %3561
  %3563 = vrot.lane.b32.xlu0 %v3392, 62
  %v3564 = vpop.permute.xlu0 %3563
  %3565 = vrot.lane.b32.xlu0 %v3424, 62
  %v3566 = vpop.permute.xlu0 %3565
  %3567 = vrot.lane.b32.xlu0 %v3425, 62
  %v3568 = vpop.permute.xlu0 %3567
  %3569 = vrot.lane.b32.xlu0 %v3426, 62
  %v3570 = vpop.permute.xlu0 %3569
  %3571 = vrot.lane.b32.xlu0 %v3427, 62
  %v3572 = vpop.permute.xlu0 %3571
  %3573 = vrot.lane.b32.xlu0 %v3428, 62
  %v3574 = vpop.permute.xlu0 %3573
  %3575 = vrot.lane.b32.xlu0 %v3429, 62
  %v3576 = vpop.permute.xlu0 %3575
  %3577 = vrot.lane.b32.xlu0 %v3430, 62
  %v3578 = vpop.permute.xlu0 %3577
  %3579 = vrot.lane.b32.xlu0 %v3431, 62
  %v3580 = vpop.permute.xlu0 %3579
  %3581 = vrot.lane.b32.xlu0 %v3432, 62
  %v3582 = vpop.permute.xlu0 %3581
  %3583 = vrot.lane.b32.xlu0 %v3433, 62
  %v3584 = vpop.permute.xlu0 %3583
  %3585 = vrot.lane.b32.xlu0 %v3434, 62
  %v3586 = vpop.permute.xlu0 %3585
  %3587 = vrot.lane.b32.xlu0 %v3435, 62
  %v3588 = vpop.permute.xlu0 %3587
  %3589 = vrot.lane.b32.xlu0 %v3436, 62
  %v3590 = vpop.permute.xlu0 %3589
  %3591 = vrot.lane.b32.xlu0 %v3437, 62
  %v3592 = vpop.permute.xlu0 %3591
  %3593 = vrot.lane.b32.xlu0 %v3438, 62
  %v3594 = vpop.permute.xlu0 %3593
  %3595 = vrot.lane.b32.xlu0 %v3422, 62
  %v3596 = vpop.permute.xlu0 %3595
  %3597 = vrot.lane.b32.xlu0 %v3043, 62
  %v3598 = vpop.permute.xlu0 %3597
  %3599 = vrot.lane.b32.xlu0 %v3074, 62
  %v3600 = vpop.permute.xlu0 %3599
  %3601 = vrot.lane.b32.xlu0 %v3075, 62
  %v3602 = vpop.permute.xlu0 %3601
  %3603 = vrot.lane.b32.xlu0 %v3076, 62
  %v3604 = vpop.permute.xlu0 %3603
  %3605 = vrot.lane.b32.xlu0 %v3077, 62
  %v3606 = vpop.permute.xlu0 %3605
  %3607 = vrot.lane.b32.xlu0 %v3078, 62
  %v3608 = vpop.permute.xlu0 %3607
  %3609 = vrot.lane.b32.xlu0 %v3079, 62
  %v3610 = vpop.permute.xlu0 %3609
  %3611 = vrot.lane.b32.xlu0 %v3080, 62
  %v3612 = vpop.permute.xlu0 %3611
  %3613 = vrot.lane.b32.xlu0 %v3081, 62
  %v3614 = vpop.permute.xlu0 %3613
  %3615 = vrot.lane.b32.xlu0 %v3082, 62
  %v3616 = vpop.permute.xlu0 %3615
  %3617 = vrot.lane.b32.xlu0 %v3083, 62
  %v3618 = vpop.permute.xlu0 %3617
  %3619 = vrot.lane.b32.xlu0 %v3084, 62
  %v3620 = vpop.permute.xlu0 %3619
  %3621 = vrot.lane.b32.xlu0 %v3085, 62
  %v3622 = vpop.permute.xlu0 %3621
  %3623 = vrot.lane.b32.xlu0 %v3086, 62
  %v3624 = vpop.permute.xlu0 %3623
  %3625 = vrot.lane.b32.xlu0 %v3087, 62
  %v3626 = vpop.permute.xlu0 %3625
  %3627 = vrot.lane.b32.xlu0 %v3389, 62
  %v3628 = vpop.permute.xlu0 %3627
  %3629 = vrot.lane.b32.xlu0 %v3442, 62
  %v3630 = vpop.permute.xlu0 %3629
  %3631 = vrot.lane.b32.xlu0 %v3109, 62
  %v3632 = vpop.permute.xlu0 %3631
  %3633 = vrot.lane.b32.xlu0 %v3140, 62
  %v3634 = vpop.permute.xlu0 %3633
  %3635 = vrot.lane.b32.xlu0 %v3141, 62
  %v3636 = vpop.permute.xlu0 %3635
  %3637 = vrot.lane.b32.xlu0 %v3142, 62
  %v3638 = vpop.permute.xlu0 %3637
  %3639 = vrot.lane.b32.xlu0 %v3143, 62
  %v3640 = vpop.permute.xlu0 %3639
  %3641 = vrot.lane.b32.xlu0 %v3144, 62
  %v3642 = vpop.permute.xlu0 %3641
  %3643 = vrot.lane.b32.xlu0 %v3145, 62
  %v3644 = vpop.permute.xlu0 %3643
  %3645 = vrot.lane.b32.xlu0 %v3146, 62
  %v3646 = vpop.permute.xlu0 %3645
  %3647 = vrot.lane.b32.xlu0 %v3147, 62
  %v3648 = vpop.permute.xlu0 %3647
  %3649 = vrot.lane.b32.xlu0 %v3148, 62
  %v3650 = vpop.permute.xlu0 %3649
  %3651 = vrot.lane.b32.xlu0 %v3149, 62
  %v3652 = vpop.permute.xlu0 %3651
  %3653 = vrot.lane.b32.xlu0 %v3150, 62
  %v3654 = vpop.permute.xlu0 %3653
  %3655 = vrot.lane.b32.xlu0 %v3151, 62
  %v3656 = vpop.permute.xlu0 %3655
  %3657 = vrot.lane.b32.xlu0 %v3152, 62
  %v3658 = vpop.permute.xlu0 %3657
  %3659 = vrot.lane.b32.xlu0 %v3153, 62
  %v3660 = vpop.permute.xlu0 %3659
  %3661 = vrot.lane.b32.xlu0 %v3447, 62
  %v3662 = vpop.permute.xlu0 %3661
  %3663 = vrot.lane.b32.xlu0 %v3448, 62
  %v3664 = vpop.permute.xlu0 %3663
  %3665 = vrot.lane.b32.xlu0 %v3175, 62
  %v3666 = vpop.permute.xlu0 %3665
  %3667 = vrot.lane.b32.xlu0 %v3206, 62
  %v3668 = vpop.permute.xlu0 %3667
  %3669 = vrot.lane.b32.xlu0 %v3207, 62
  %v3670 = vpop.permute.xlu0 %3669
  %3671 = vrot.lane.b32.xlu0 %v3208, 62
  %v3672 = vpop.permute.xlu0 %3671
  %3673 = vrot.lane.b32.xlu0 %v3209, 62
  %v3674 = vpop.permute.xlu0 %3673
  %3675 = vrot.lane.b32.xlu0 %v3210, 62
  %v3676 = vpop.permute.xlu0 %3675
  %3677 = vrot.lane.b32.xlu0 %v3211, 62
  %v3678 = vpop.permute.xlu0 %3677
  %3679 = vrot.lane.b32.xlu0 %v3212, 62
  %v3680 = vpop.permute.xlu0 %3679
  %3681 = vrot.lane.b32.xlu0 %v3213, 62
  %v3682 = vpop.permute.xlu0 %3681
  %3683 = vrot.lane.b32.xlu0 %v3214, 62
  %v3684 = vpop.permute.xlu0 %3683
  %3685 = vrot.lane.b32.xlu0 %v3215, 62
  %v3686 = vpop.permute.xlu0 %3685
  %3687 = vrot.lane.b32.xlu0 %v3216, 62
  %v3688 = vpop.permute.xlu0 %3687
  %3689 = vrot.lane.b32.xlu0 %v3217, 62
  %v3690 = vpop.permute.xlu0 %3689
  %3691 = vrot.lane.b32.xlu0 %v3218, 62
  %v3692 = vpop.permute.xlu0 %3691
  %3693 = vrot.lane.b32.xlu0 %v3219, 62
  %v3694 = vpop.permute.xlu0 %3693
  %3695 = vrot.lane.b32.xlu0 %v3453, 62
  %v3696 = vpop.permute.xlu0 %3695
  %3697 = vrot.lane.b32.xlu0 %v3454, 62
  %v3698 = vpop.permute.xlu0 %3697
  %3699 = vrot.lane.b32.xlu0 %v3241, 62
  %v3700 = vpop.permute.xlu0 %3699
  %3701 = vrot.lane.b32.xlu0 %v3273, 62
  %v3702 = vpop.permute.xlu0 %3701
  %3703 = vrot.lane.b32.xlu0 %v3274, 62
  %v3704 = vpop.permute.xlu0 %3703
  %3705 = vrot.lane.b32.xlu0 %v3275, 62
  %v3706 = vpop.permute.xlu0 %3705
  %3707 = vrot.lane.b32.xlu0 %v3276, 62
  %v3708 = vpop.permute.xlu0 %3707
  %3709 = vrot.lane.b32.xlu0 %v3277, 62
  %v3710 = vpop.permute.xlu0 %3709
  %3711 = vrot.lane.b32.xlu0 %v3278, 62
  %v3712 = vpop.permute.xlu0 %3711
  %3713 = vrot.lane.b32.xlu0 %v3279, 62
  %v3714 = vpop.permute.xlu0 %3713
  %3715 = vrot.lane.b32.xlu0 %v3280, 62
  %v3716 = vpop.permute.xlu0 %3715
  %3717 = vrot.lane.b32.xlu0 %v3281, 62
  %v3718 = vpop.permute.xlu0 %3717
  %3719 = vrot.lane.b32.xlu0 %v3282, 62
  %v3720 = vpop.permute.xlu0 %3719
  %3721 = vrot.lane.b32.xlu0 %v3283, 62
  %v3722 = vpop.permute.xlu0 %3721
  %3723 = vrot.lane.b32.xlu0 %v3284, 62
  %v3724 = vpop.permute.xlu0 %3723
  %3725 = vrot.lane.b32.xlu0 %v3285, 62
  %v3726 = vpop.permute.xlu0 %3725
  %3727 = vrot.lane.b32.xlu0 %v3286, 62
  %v3728 = vpop.permute.xlu0 %3727
  %3729 = vrot.lane.b32.xlu0 %v3459, 62
  %v3730 = vpop.permute.xlu0 %3729
  %3731 = vrot.lane.b32.xlu0 %v3460, 62
  %v3732 = vpop.permute.xlu0 %3731
  %v3733 = vsel %vm882, %v3462, %v3464
  %v3734 = vsel %vm882, %v3464, %v3466
  %v3735 = vsel %vm882, %v3466, %v3468
  %v3736 = vsel %vm882, %v3468, %v3470
  %v3737 = vsel %vm882, %v3470, %v3472
  %v3738 = vsel %vm882, %v3472, %v3474
  %v3739 = vsel %vm882, %v3474, %v3476
  %v3740 = vsel %vm882, %v3476, %v3478
  %v3741 = vsel %vm882, %v3478, %v3480
  %v3742 = vsel %vm882, %v3480, %v3482
  %v3743 = vsel %vm882, %v3482, %v3484
  %v3744 = vsel %vm882, %v3484, %v3486
  %v3745 = vsel %vm882, %v3486, %v3488
  %v3746 = vsel %vm882, %v3488, %v3490
  %v3747 = vsel %vm882, %v3490, %v3492
  %v3748 = vsel %vm882, %v3492, %v3494
  %v3749 = vsel %vm882, %v3496, %v3498
  %v3750 = vsel %vm882, %v3498, %v3500
  %v3751 = vsel %vm882, %v3500, %v3502
  %v3752 = vsel %vm882, %v3502, %v3504
  %v3753 = vsel %vm882, %v3504, %v3506
  %v3754 = vsel %vm882, %v3506, %v3508
  %v3755 = vsel %vm882, %v3508, %v3510
  %v3756 = vsel %vm882, %v3510, %v3512
  %v3757 = vsel %vm882, %v3512, %v3514
  %v3758 = vsel %vm882, %v3514, %v3516
  %v3759 = vsel %vm882, %v3516, %v3518
  %v3760 = vsel %vm882, %v3518, %v3520
  %v3761 = vsel %vm882, %v3520, %v3522
  %v3762 = vsel %vm882, %v3522, %v3524
  %v3763 = vsel %vm882, %v3524, %v3526
  %v3764 = vsel %vm882, %v3526, %v3528
  %v3765 = vsel %vm882, %v3530, %v3532
  %v3766 = vsel %vm882, %v3532, %v3534
  %v3767 = vsel %vm882, %v3534, %v3536
  %v3768 = vsel %vm882, %v3536, %v3538
  %v3769 = vsel %vm882, %v3538, %v3540
  %v3770 = vsel %vm882, %v3540, %v3542
  %v3771 = vsel %vm882, %v3542, %v3544
  %v3772 = vsel %vm882, %v3544, %v3546
  %v3773 = vsel %vm882, %v3546, %v3548
  %v3774 = vsel %vm882, %v3548, %v3550
  %v3775 = vsel %vm882, %v3550, %v3552
  %v3776 = vsel %vm882, %v3552, %v3554
  %v3777 = vsel %vm882, %v3554, %v3556
  %v3778 = vsel %vm882, %v3556, %v3558
  %v3779 = vsel %vm882, %v3558, %v3560
  %v3780 = vsel %vm882, %v3560, %v3562
  %v3781 = vsel %vm882, %v3564, %v3566
  %v3782 = vsel %vm882, %v3566, %v3568
  %v3783 = vsel %vm882, %v3568, %v3570
  %v3784 = vsel %vm882, %v3570, %v3572
  %v3785 = vsel %vm882, %v3572, %v3574
  %v3786 = vsel %vm882, %v3574, %v3576
  %v3787 = vsel %vm882, %v3576, %v3578
  %v3788 = vsel %vm882, %v3578, %v3580
  %v3789 = vsel %vm882, %v3580, %v3582
  %v3790 = vsel %vm882, %v3582, %v3584
  %v3791 = vsel %vm882, %v3584, %v3586
  %v3792 = vsel %vm882, %v3586, %v3588
  %v3793 = vsel %vm882, %v3588, %v3590
  %v3794 = vsel %vm882, %v3590, %v3592
  %v3795 = vsel %vm882, %v3592, %v3594
  %v3796 = vsel %vm882, %v3594, %v3596
  %v3797 = vsel %vm882, %v3598, %v3600
  %v3798 = vsel %vm882, %v3600, %v3602
  %v3799 = vsel %vm882, %v3602, %v3604
  %v3800 = vsel %vm882, %v3604, %v3606
  %v3801 = vsel %vm882, %v3606, %v3608
  %v3802 = vsel %vm882, %v3608, %v3610
  %v3803 = vsel %vm882, %v3610, %v3612
  %v3804 = vsel %vm882, %v3612, %v3614
  %v3805 = vsel %vm882, %v3614, %v3616
  %v3806 = vsel %vm882, %v3616, %v3618
  %v3807 = vsel %vm882, %v3618, %v3620
  %v3808 = vsel %vm882, %v3620, %v3622
  %v3809 = vsel %vm882, %v3622, %v3624
  %v3810 = vsel %vm882, %v3624, %v3626
  %v3811 = vsel %vm882, %v3626, %v3628
  %v3812 = vsel %vm882, %v3628, %v3630
  %v3813 = vsel %vm882, %v3632, %v3634
  %v3814 = vsel %vm882, %v3634, %v3636
  %v3815 = vsel %vm882, %v3636, %v3638
  %v3816 = vsel %vm882, %v3638, %v3640
  %v3817 = vsel %vm882, %v3640, %v3642
  %v3818 = vsel %vm882, %v3642, %v3644
  %v3819 = vsel %vm882, %v3644, %v3646
  %v3820 = vsel %vm882, %v3646, %v3648
  %v3821 = vsel %vm882, %v3648, %v3650
  %v3822 = vsel %vm882, %v3650, %v3652
  %v3823 = vsel %vm882, %v3652, %v3654
  %v3824 = vsel %vm882, %v3654, %v3656
  %v3825 = vsel %vm882, %v3656, %v3658
  %v3826 = vsel %vm882, %v3658, %v3660
  %v3827 = vsel %vm882, %v3660, %v3662
  %v3828 = vsel %vm882, %v3662, %v3664
  %v3829 = vsel %vm882, %v3666, %v3668
  %v3830 = vsel %vm882, %v3668, %v3670
  %v3831 = vsel %vm882, %v3670, %v3672
  %v3832 = vsel %vm882, %v3672, %v3674
  %v3833 = vsel %vm882, %v3674, %v3676
  %v3834 = vsel %vm882, %v3676, %v3678
  %v3835 = vsel %vm882, %v3678, %v3680
  %v3836 = vsel %vm882, %v3680, %v3682
  %v3837 = vsel %vm882, %v3682, %v3684
  %v3838 = vsel %vm882, %v3684, %v3686
  %v3839 = vsel %vm882, %v3686, %v3688
  %v3840 = vsel %vm882, %v3688, %v3690
  %v3841 = vsel %vm882, %v3690, %v3692
  %v3842 = vsel %vm882, %v3692, %v3694
  %v3843 = vsel %vm882, %v3694, %v3696
  %v3844 = vsel %vm882, %v3696, %v3698
  %v3845 = vsel %vm882, %v3700, %v3702
  %v3846 = vsel %vm882, %v3702, %v3704
  %v3847 = vsel %vm882, %v3704, %v3706
  %v3848 = vsel %vm882, %v3706, %v3708
  %v3849 = vsel %vm882, %v3708, %v3710
  %v3850 = vsel %vm882, %v3710, %v3712
  %v3851 = vsel %vm882, %v3712, %v3714
  %v3852 = vsel %vm882, %v3714, %v3716
  %v3853 = vsel %vm882, %v3716, %v3718
  %v3854 = vsel %vm882, %v3718, %v3720
  %v3855 = vsel %vm882, %v3720, %v3722
  %v3856 = vsel %vm882, %v3722, %v3724
  %v3857 = vsel %vm882, %v3724, %v3726
  %v3858 = vsel %vm882, %v3726, %v3728
  %v3859 = vsel %vm882, %v3728, %v3730
  %v3860 = vsel %vm882, %v3730, %v3732
  %v3990 = vld [vmem:[%s3] sm:$0xff]
  %v3991 = vld [vmem:[%s3 + $0x8] sm:$0xff]
  %v3992 = vld [vmem:[%s3 + $0x10] sm:$0xff]
  %v3993 = vld [vmem:[%s3 + $0x18] sm:$0xff]
  %v3994 = vld [vmem:[%s4] sm:$0xff]
  %v3995 = vld [vmem:[%s4 + $0x8] sm:$0xff]
  %3997 = vset.pattern.permute.xlu0 0
  %3998 = vperm.xlu0 %3997, %v3994
  %v3999 = vpop.permute.xlu0 %3998
  %4002 = vset.pattern.permute.xlu0 0
  %4003 = vperm.xlu0 %4002, %v3995
  %v4004 = vpop.permute.xlu0 %4003
  %v4007 = vsel %vm1780, %v3991, 0
  %v4010 = vsel %vm1780, %v3993, 0
  %4012 = vmatpush.msra.mxu0 %v3073
  %4013 = vmatpush.msra.mxu0 %v3007
  %4014 = vmatpush.msra.mxu0 %v2940
  %4015 = vmatpush.msra.mxu0 %v2873
  %4016 = vmatpush.msra.mxu0 %v2807
  %4017 = vmatpush.msra.mxu0 %v2737
  %4018 = vmatpush.msra.mxu0 %v3338
  %4019 = vmatpush.msra.mxu0 %v3271
  %4020 = vmatpush.msra.mxu0 %v3204
  %4021 = vmatpush.msra.mxu0 %v3138
  %4022 = vmatpush.msra.mxu0 %v3072
  %4023 = vmatpush.msra.mxu0 %v3006
  %4024 = vmatpush.msra.mxu0 %v2939
  %4025 = vmatpush.msra.mxu0 %v2872
  %4026 = vmatpush.msra.mxu0 %v2806
  %4027 = vmatpush.msra.mxu0 %v2736
  %4028 = vmatmul.f32.gmra.mxu0 %v3990
  %v4029 = vpop.f32.mrf.mxu0
  %v4030 = vadd.f32 %v3999, %v4029
  %4031 = vmatmul.f32.gmra.mxu0 %v3992
  %v4032 = vpop.f32.mrf.mxu0
  %v4033 = vadd.f32 %v4004, %v4032
  %4034 = vdwg.mxu0
  %4035 = vmatpush.msra.mxu0 0.0
  %4036 = vmatpush.msra.mxu0 0.0
  %4037 = vmatpush.msra.mxu0 0.0
  %4038 = vmatpush.msra.mxu0 0.0
  %4039 = vmatpush.msra.mxu0 0.0
  %4040 = vmatpush.msra.mxu0 0.0
  %4041 = vmatpush.msra.mxu0 0.0
  %4042 = vmatpush.msra.mxu0 %v3845
  %4043 = vmatpush.msra.mxu0 %v3829
  %4044 = vmatpush.msra.mxu0 %v3813
  %4045 = vmatpush.msra.mxu0 %v3797
  %4046 = vmatpush.msra.mxu0 %v3781
  %4047 = vmatpush.msra.mxu0 %v3765
  %4048 = vmatpush.msra.mxu0 %v3749
  %4049 = vmatpush.msra.mxu0 %v3733
  %4050 = vmatpush.msra.mxu0 %v3139
  %4051 = vmatmul.f32.gmra.mxu0 %v4007
  %v4052 = vpop.f32.mrf.mxu0
  %v4053 = vadd.f32 %v4030, %v4052
  %4054 = vmatmul.f32.gmra.mxu0 %v4010
  %v4055 = vpop.f32.mrf.mxu0
  %v4056 = vadd.f32 %v4033, %v4055
  %4057 = vdwg.mxu0
  %4058 = vmatpush.msra.mxu0 %v3074
  %4059 = vmatpush.msra.mxu0 %v3008
  %4060 = vmatpush.msra.mxu0 %v2941
  %4061 = vmatpush.msra.mxu0 %v2874
  %4062 = vmatpush.msra.mxu0 %v2808
  %4063 = vmatpush.msra.mxu0 %v2738
  %4064 = vmatpush.msra.mxu0 %v3339
  %4065 = vmatpush.msra.mxu0 %v3272
  %4066 = vmatpush.msra.mxu0 %v3205
  %4067 = vmatpush.msra.mxu0 %v3139
  %4068 = vmatpush.msra.mxu0 %v3073
  %4069 = vmatpush.msra.mxu0 %v3007
  %4070 = vmatpush.msra.mxu0 %v2940
  %4071 = vmatpush.msra.mxu0 %v2873
  %4072 = vmatpush.msra.mxu0 %v2807
  %4073 = vmatpush.msra.mxu0 %v2737
  %4074 = vmatmul.f32.gmra.mxu0 %v3990
  %v4075 = vpop.f32.mrf.mxu0
  %v4076 = vadd.f32 %v3999, %v4075
  %4077 = vmatmul.f32.gmra.mxu0 %v3992
  %v4078 = vpop.f32.mrf.mxu0
  %v4079 = vadd.f32 %v4004, %v4078
  %4080 = vdwg.mxu0
  %4081 = vmatpush.msra.mxu0 0.0
  %4082 = vmatpush.msra.mxu0 0.0
  %4083 = vmatpush.msra.mxu0 0.0
  %4084 = vmatpush.msra.mxu0 0.0
  %4085 = vmatpush.msra.mxu0 0.0
  %4086 = vmatpush.msra.mxu0 0.0
  %4087 = vmatpush.msra.mxu0 0.0
  %4088 = vmatpush.msra.mxu0 %v3846
  %4089 = vmatpush.msra.mxu0 %v3830
  %4090 = vmatpush.msra.mxu0 %v3814
  %4091 = vmatpush.msra.mxu0 %v3798
  %4092 = vmatpush.msra.mxu0 %v3782
  %4093 = vmatpush.msra.mxu0 %v3766
  %4094 = vmatpush.msra.mxu0 %v3750
  %4095 = vmatpush.msra.mxu0 %v3734
  %4096 = vmatpush.msra.mxu0 %v3140
  %4097 = vmatmul.f32.gmra.mxu0 %v4007
  %v4098 = vpop.f32.mrf.mxu0
  %v4099 = vadd.f32 %v4076, %v4098
  %4100 = vmatmul.f32.gmra.mxu0 %v4010
  %v4101 = vpop.f32.mrf.mxu0
  %v4102 = vadd.f32 %v4079, %v4101
  %4103 = vdwg.mxu0
  %4104 = vmatpush.msra.mxu0 %v3075
  %4105 = vmatpush.msra.mxu0 %v3009
  %4106 = vmatpush.msra.mxu0 %v2942
  %4107 = vmatpush.msra.mxu0 %v2875
  %4108 = vmatpush.msra.mxu0 %v2809
  %4109 = vmatpush.msra.mxu0 %v2739
  %4110 = vmatpush.msra.mxu0 %v3340
  %4111 = vmatpush.msra.mxu0 %v3273
  %4112 = vmatpush.msra.mxu0 %v3206
  %4113 = vmatpush.msra.mxu0 %v3140
  %4114 = vmatpush.msra.mxu0 %v3074
  %4115 = vmatpush.msra.mxu0 %v3008
  %4116 = vmatpush.msra.mxu0 %v2941
  %4117 = vmatpush.msra.mxu0 %v2874
  %4118 = vmatpush.msra.mxu0 %v2808
  %4119 = vmatpush.msra.mxu0 %v2738
  %4120 = vmatmul.f32.gmra.mxu0 %v3990
  %v4121 = vpop.f32.mrf.mxu0
  %v4122 = vadd.f32 %v3999, %v4121
  %4123 = vmatmul.f32.gmra.mxu0 %v3992
  %v4124 = vpop.f32.mrf.mxu0
  %v4125 = vadd.f32 %v4004, %v4124
  %4126 = vdwg.mxu0
  %4127 = vmatpush.msra.mxu0 0.0
  %4128 = vmatpush.msra.mxu0 0.0
  %4129 = vmatpush.msra.mxu0 0.0
  %4130 = vmatpush.msra.mxu0 0.0
  %4131 = vmatpush.msra.mxu0 0.0
  %4132 = vmatpush.msra.mxu0 0.0
  %4133 = vmatpush.msra.mxu0 0.0
  %4134 = vmatpush.msra.mxu0 %v3847
  %4135 = vmatpush.msra.mxu0 %v3831
  %4136 = vmatpush.msra.mxu0 %v3815
  %4137 = vmatpush.msra.mxu0 %v3799
  %4138 = vmatpush.msra.mxu0 %v3783
  %4139 = vmatpush.msra.mxu0 %v3767
  %4140 = vmatpush.msra.mxu0 %v3751
  %4141 = vmatpush.msra.mxu0 %v3735
  %4142 = vmatpush.msra.mxu0 %v3141
  %4143 = vmatmul.f32.gmra.mxu0 %v4007
  %v4144 = vpop.f32.mrf.mxu0
  %v4145 = vadd.f32 %v4122, %v4144
  %4146 = vmatmul.f32.gmra.mxu0 %v4010
  %v4147 = vpop.f32.mrf.mxu0
  %v4148 = vadd.f32 %v4125, %v4147
  %4149 = vdwg.mxu0
  %4150 = vmatpush.msra.mxu0 %v3076
  %4151 = vmatpush.msra.mxu0 %v3010
  %4152 = vmatpush.msra.mxu0 %v2943
  %4153 = vmatpush.msra.mxu0 %v2876
  %4154 = vmatpush.msra.mxu0 %v2810
  %4155 = vmatpush.msra.mxu0 %v2740
  %4156 = vmatpush.msra.mxu0 %v3341
  %4157 = vmatpush.msra.mxu0 %v3274
  %4158 = vmatpush.msra.mxu0 %v3207
  %4159 = vmatpush.msra.mxu0 %v3141
  %4160 = vmatpush.msra.mxu0 %v3075
  %4161 = vmatpush.msra.mxu0 %v3009
  %4162 = vmatpush.msra.mxu0 %v2942
  %4163 = vmatpush.msra.mxu0 %v2875
  %4164 = vmatpush.msra.mxu0 %v2809
  %4165 = vmatpush.msra.mxu0 %v2739
  %4166 = vmatmul.f32.gmra.mxu0 %v3990
  %v4167 = vpop.f32.mrf.mxu0
  %v4168 = vadd.f32 %v3999, %v4167
  %4169 = vmatmul.f32.gmra.mxu0 %v3992
  %v4170 = vpop.f32.mrf.mxu0
  %v4171 = vadd.f32 %v4004, %v4170
  %4172 = vdwg.mxu0
  %4173 = vmatpush.msra.mxu0 0.0
  %4174 = vmatpush.msra.mxu0 0.0
  %4175 = vmatpush.msra.mxu0 0.0
  %4176 = vmatpush.msra.mxu0 0.0
  %4177 = vmatpush.msra.mxu0 0.0
  %4178 = vmatpush.msra.mxu0 0.0
  %4179 = vmatpush.msra.mxu0 0.0
  %4180 = vmatpush.msra.mxu0 %v3848
  %4181 = vmatpush.msra.mxu0 %v3832
  %4182 = vmatpush.msra.mxu0 %v3816
  %4183 = vmatpush.msra.mxu0 %v3800
  %4184 = vmatpush.msra.mxu0 %v3784
  %4185 = vmatpush.msra.mxu0 %v3768
  %4186 = vmatpush.msra.mxu0 %v3752
  %4187 = vmatpush.msra.mxu0 %v3736
  %4188 = vmatpush.msra.mxu0 %v3142
  %4189 = vmatmul.f32.gmra.mxu0 %v4007
  %v4190 = vpop.f32.mrf.mxu0
  %v4191 = vadd.f32 %v4168, %v4190
  %4192 = vmatmul.f32.gmra.mxu0 %v4010
  %v4193 = vpop.f32.mrf.mxu0
  %v4194 = vadd.f32 %v4171, %v4193
  %4195 = vdwg.mxu0
  %4196 = vmatpush.msra.mxu0 %v3077
  %4197 = vmatpush.msra.mxu0 %v3011
  %4198 = vmatpush.msra.mxu0 %v2944
  %4199 = vmatpush.msra.mxu0 %v2877
  %4200 = vmatpush.msra.mxu0 %v2811
  %4201 = vmatpush.msra.mxu0 %v2741
  %4202 = vmatpush.msra.mxu0 %v3342
  %4203 = vmatpush.msra.mxu0 %v3275
  %4204 = vmatpush.msra.mxu0 %v3208
  %4205 = vmatpush.msra.mxu0 %v3142
  %4206 = vmatpush.msra.mxu0 %v3076
  %4207 = vmatpush.msra.mxu0 %v3010
  %4208 = vmatpush.msra.mxu0 %v2943
  %4209 = vmatpush.msra.mxu0 %v2876
  %4210 = vmatpush.msra.mxu0 %v2810
  %4211 = vmatpush.msra.mxu0 %v2740
  %4212 = vmatmul.f32.gmra.mxu0 %v3990
  %v4213 = vpop.f32.mrf.mxu0
  %v4214 = vadd.f32 %v3999, %v4213
  %4215 = vmatmul.f32.gmra.mxu0 %v3992
  %v4216 = vpop.f32.mrf.mxu0
  %v4217 = vadd.f32 %v4004, %v4216
  %4218 = vdwg.mxu0
  %4219 = vmatpush.msra.mxu0 0.0
  %4220 = vmatpush.msra.mxu0 0.0
  %4221 = vmatpush.msra.mxu0 0.0
  %4222 = vmatpush.msra.mxu0 0.0
  %4223 = vmatpush.msra.mxu0 0.0
  %4224 = vmatpush.msra.mxu0 0.0
  %4225 = vmatpush.msra.mxu0 0.0
  %4226 = vmatpush.msra.mxu0 %v3849
  %4227 = vmatpush.msra.mxu0 %v3833
  %4228 = vmatpush.msra.mxu0 %v3817
  %4229 = vmatpush.msra.mxu0 %v3801
  %4230 = vmatpush.msra.mxu0 %v3785
  %4231 = vmatpush.msra.mxu0 %v3769
  %4232 = vmatpush.msra.mxu0 %v3753
  %4233 = vmatpush.msra.mxu0 %v3737
  %4234 = vmatpush.msra.mxu0 %v3143
  %4235 = vmatmul.f32.gmra.mxu0 %v4007
  %v4236 = vpop.f32.mrf.mxu0
  %v4237 = vadd.f32 %v4214, %v4236
  %4238 = vmatmul.f32.gmra.mxu0 %v4010
  %v4239 = vpop.f32.mrf.mxu0
  %v4240 = vadd.f32 %v4217, %v4239
  %4241 = vdwg.mxu0
  %4242 = vmatpush.msra.mxu0 %v3078
  %4243 = vmatpush.msra.mxu0 %v3012
  %4244 = vmatpush.msra.mxu0 %v2945
  %4245 = vmatpush.msra.mxu0 %v2878
  %4246 = vmatpush.msra.mxu0 %v2812
  %4247 = vmatpush.msra.mxu0 %v2742
  %4248 = vmatpush.msra.mxu0 %v3343
  %4249 = vmatpush.msra.mxu0 %v3276
  %4250 = vmatpush.msra.mxu0 %v3209
  %4251 = vmatpush.msra.mxu0 %v3143
  %4252 = vmatpush.msra.mxu0 %v3077
  %4253 = vmatpush.msra.mxu0 %v3011
  %4254 = vmatpush.msra.mxu0 %v2944
  %4255 = vmatpush.msra.mxu0 %v2877
  %4256 = vmatpush.msra.mxu0 %v2811
  %4257 = vmatpush.msra.mxu0 %v2741
  %4258 = vmatmul.f32.gmra.mxu0 %v3990
  %v4259 = vpop.f32.mrf.mxu0
  %v4260 = vadd.f32 %v3999, %v4259
  %4261 = vmatmul.f32.gmra.mxu0 %v3992
  %v4262 = vpop.f32.mrf.mxu0
  %v4263 = vadd.f32 %v4004, %v4262
  %4264 = vdwg.mxu0
  %4265 = vmatpush.msra.mxu0 0.0
  %4266 = vmatpush.msra.mxu0 0.0
  %4267 = vmatpush.msra.mxu0 0.0
  %4268 = vmatpush.msra.mxu0 0.0
  %4269 = vmatpush.msra.mxu0 0.0
  %4270 = vmatpush.msra.mxu0 0.0
  %4271 = vmatpush.msra.mxu0 0.0
  %4272 = vmatpush.msra.mxu0 %v3850
  %4273 = vmatpush.msra.mxu0 %v3834
  %4274 = vmatpush.msra.mxu0 %v3818
  %4275 = vmatpush.msra.mxu0 %v3802
  %4276 = vmatpush.msra.mxu0 %v3786
  %4277 = vmatpush.msra.mxu0 %v3770
  %4278 = vmatpush.msra.mxu0 %v3754
  %4279 = vmatpush.msra.mxu0 %v3738
  %4280 = vmatpush.msra.mxu0 %v3144
  %4281 = vmatmul.f32.gmra.mxu0 %v4007
  %v4282 = vpop.f32.mrf.mxu0
  %v4283 = vadd.f32 %v4260, %v4282
  %4284 = vmatmul.f32.gmra.mxu0 %v4010
  %v4285 = vpop.f32.mrf.mxu0
  %v4286 = vadd.f32 %v4263, %v4285
  %4287 = vdwg.mxu0
  %4288 = vmatpush.msra.mxu0 %v3079
  %4289 = vmatpush.msra.mxu0 %v3013
  %4290 = vmatpush.msra.mxu0 %v2946
  %4291 = vmatpush.msra.mxu0 %v2879
  %4292 = vmatpush.msra.mxu0 %v2813
  %4293 = vmatpush.msra.mxu0 %v2743
  %4294 = vmatpush.msra.mxu0 %v3344
  %4295 = vmatpush.msra.mxu0 %v3277
  %4296 = vmatpush.msra.mxu0 %v3210
  %4297 = vmatpush.msra.mxu0 %v3144
  %4298 = vmatpush.msra.mxu0 %v3078
  %4299 = vmatpush.msra.mxu0 %v3012
  %4300 = vmatpush.msra.mxu0 %v2945
  %4301 = vmatpush.msra.mxu0 %v2878
  %4302 = vmatpush.msra.mxu0 %v2812
  %4303 = vmatpush.msra.mxu0 %v2742
  %4304 = vmatmul.f32.gmra.mxu0 %v3990
  %v4305 = vpop.f32.mrf.mxu0
  %v4306 = vadd.f32 %v3999, %v4305
  %4307 = vmatmul.f32.gmra.mxu0 %v3992
  %v4308 = vpop.f32.mrf.mxu0
  %v4309 = vadd.f32 %v4004, %v4308
  %4310 = vdwg.mxu0
  %4311 = vmatpush.msra.mxu0 0.0
  %4312 = vmatpush.msra.mxu0 0.0
  %4313 = vmatpush.msra.mxu0 0.0
  %4314 = vmatpush.msra.mxu0 0.0
  %4315 = vmatpush.msra.mxu0 0.0
  %4316 = vmatpush.msra.mxu0 0.0
  %4317 = vmatpush.msra.mxu0 0.0
  %4318 = vmatpush.msra.mxu0 %v3851
  %4319 = vmatpush.msra.mxu0 %v3835
  %4320 = vmatpush.msra.mxu0 %v3819
  %4321 = vmatpush.msra.mxu0 %v3803
  %4322 = vmatpush.msra.mxu0 %v3787
  %4323 = vmatpush.msra.mxu0 %v3771
  %4324 = vmatpush.msra.mxu0 %v3755
  %4325 = vmatpush.msra.mxu0 %v3739
  %4326 = vmatpush.msra.mxu0 %v3145
  %4327 = vmatmul.f32.gmra.mxu0 %v4007
  %v4328 = vpop.f32.mrf.mxu0
  %v4329 = vadd.f32 %v4306, %v4328
  %4330 = vmatmul.f32.gmra.mxu0 %v4010
  %v4331 = vpop.f32.mrf.mxu0
  %v4332 = vadd.f32 %v4309, %v4331
  %4333 = vdwg.mxu0
  %4334 = vmatpush.msra.mxu0 %v3080
  %4335 = vmatpush.msra.mxu0 %v3014
  %4336 = vmatpush.msra.mxu0 %v2947
  %4337 = vmatpush.msra.mxu0 %v2880
  %4338 = vmatpush.msra.mxu0 %v2814
  %4339 = vmatpush.msra.mxu0 %v2744
  %4340 = vmatpush.msra.mxu0 %v3345
  %4341 = vmatpush.msra.mxu0 %v3278
  %4342 = vmatpush.msra.mxu0 %v3211
  %4343 = vmatpush.msra.mxu0 %v3145
  %4344 = vmatpush.msra.mxu0 %v3079
  %4345 = vmatpush.msra.mxu0 %v3013
  %4346 = vmatpush.msra.mxu0 %v2946
  %4347 = vmatpush.msra.mxu0 %v2879
  %4348 = vmatpush.msra.mxu0 %v2813
  %4349 = vmatpush.msra.mxu0 %v2743
  %4350 = vmatmul.f32.gmra.mxu0 %v3990
  %v4351 = vpop.f32.mrf.mxu0
  %v4352 = vadd.f32 %v3999, %v4351
  %4353 = vmatmul.f32.gmra.mxu0 %v3992
  %v4354 = vpop.f32.mrf.mxu0
  %v4355 = vadd.f32 %v4004, %v4354
  %4356 = vdwg.mxu0
  %4357 = vmatpush.msra.mxu0 0.0
  %4358 = vmatpush.msra.mxu0 0.0
  %4359 = vmatpush.msra.mxu0 0.0
  %4360 = vmatpush.msra.mxu0 0.0
  %4361 = vmatpush.msra.mxu0 0.0
  %4362 = vmatpush.msra.mxu0 0.0
  %4363 = vmatpush.msra.mxu0 0.0
  %4364 = vmatpush.msra.mxu0 %v3852
  %4365 = vmatpush.msra.mxu0 %v3836
  %4366 = vmatpush.msra.mxu0 %v3820
  %4367 = vmatpush.msra.mxu0 %v3804
  %4368 = vmatpush.msra.mxu0 %v3788
  %4369 = vmatpush.msra.mxu0 %v3772
  %4370 = vmatpush.msra.mxu0 %v3756
  %4371 = vmatpush.msra.mxu0 %v3740
  %4372 = vmatpush.msra.mxu0 %v3146
  %4373 = vmatmul.f32.gmra.mxu0 %v4007
  %v4374 = vpop.f32.mrf.mxu0
  %v4375 = vadd.f32 %v4352, %v4374
  %4376 = vmatmul.f32.gmra.mxu0 %v4010
  %v4377 = vpop.f32.mrf.mxu0
  %v4378 = vadd.f32 %v4355, %v4377
  %4379 = vdwg.mxu0
  %4380 = vmatpush.msra.mxu0 %v3081
  %4381 = vmatpush.msra.mxu0 %v3015
  %4382 = vmatpush.msra.mxu0 %v2948
  %4383 = vmatpush.msra.mxu0 %v2881
  %4384 = vmatpush.msra.mxu0 %v2815
  %4385 = vmatpush.msra.mxu0 %v2745
  %4386 = vmatpush.msra.mxu0 %v3346
  %4387 = vmatpush.msra.mxu0 %v3279
  %4388 = vmatpush.msra.mxu0 %v3212
  %4389 = vmatpush.msra.mxu0 %v3146
  %4390 = vmatpush.msra.mxu0 %v3080
  %4391 = vmatpush.msra.mxu0 %v3014
  %4392 = vmatpush.msra.mxu0 %v2947
  %4393 = vmatpush.msra.mxu0 %v2880
  %4394 = vmatpush.msra.mxu0 %v2814
  %4395 = vmatpush.msra.mxu0 %v2744
  %4396 = vmatmul.f32.gmra.mxu0 %v3990
  %v4397 = vpop.f32.mrf.mxu0
  %v4398 = vadd.f32 %v3999, %v4397
  %4399 = vmatmul.f32.gmra.mxu0 %v3992
  %v4400 = vpop.f32.mrf.mxu0
  %v4401 = vadd.f32 %v4004, %v4400
  %4402 = vdwg.mxu0
  %4403 = vmatpush.msra.mxu0 0.0
  %4404 = vmatpush.msra.mxu0 0.0
  %4405 = vmatpush.msra.mxu0 0.0
  %4406 = vmatpush.msra.mxu0 0.0
  %4407 = vmatpush.msra.mxu0 0.0
  %4408 = vmatpush.msra.mxu0 0.0
  %4409 = vmatpush.msra.mxu0 0.0
  %4410 = vmatpush.msra.mxu0 %v3853
  %4411 = vmatpush.msra.mxu0 %v3837
  %4412 = vmatpush.msra.mxu0 %v3821
  %4413 = vmatpush.msra.mxu0 %v3805
  %4414 = vmatpush.msra.mxu0 %v3789
  %4415 = vmatpush.msra.mxu0 %v3773
  %4416 = vmatpush.msra.mxu0 %v3757
  %4417 = vmatpush.msra.mxu0 %v3741
  %4418 = vmatpush.msra.mxu0 %v3147
  %4419 = vmatmul.f32.gmra.mxu0 %v4007
  %v4420 = vpop.f32.mrf.mxu0
  %v4421 = vadd.f32 %v4398, %v4420
  %4422 = vmatmul.f32.gmra.mxu0 %v4010
  %v4423 = vpop.f32.mrf.mxu0
  %v4424 = vadd.f32 %v4401, %v4423
  %4425 = vdwg.mxu0
  %4426 = vmatpush.msra.mxu0 %v3082
  %4427 = vmatpush.msra.mxu0 %v3016
  %4428 = vmatpush.msra.mxu0 %v2949
  %4429 = vmatpush.msra.mxu0 %v2882
  %4430 = vmatpush.msra.mxu0 %v2816
  %4431 = vmatpush.msra.mxu0 %v2746
  %4432 = vmatpush.msra.mxu0 %v3347
  %4433 = vmatpush.msra.mxu0 %v3280
  %4434 = vmatpush.msra.mxu0 %v3213
  %4435 = vmatpush.msra.mxu0 %v3147
  %4436 = vmatpush.msra.mxu0 %v3081
  %4437 = vmatpush.msra.mxu0 %v3015
  %4438 = vmatpush.msra.mxu0 %v2948
  %4439 = vmatpush.msra.mxu0 %v2881
  %4440 = vmatpush.msra.mxu0 %v2815
  %4441 = vmatpush.msra.mxu0 %v2745
  %4442 = vmatmul.f32.gmra.mxu0 %v3990
  %v4443 = vpop.f32.mrf.mxu0
  %v4444 = vadd.f32 %v3999, %v4443
  %4445 = vmatmul.f32.gmra.mxu0 %v3992
  %v4446 = vpop.f32.mrf.mxu0
  %v4447 = vadd.f32 %v4004, %v4446
  %4448 = vdwg.mxu0
  %4449 = vmatpush.msra.mxu0 0.0
  %4450 = vmatpush.msra.mxu0 0.0
  %4451 = vmatpush.msra.mxu0 0.0
  %4452 = vmatpush.msra.mxu0 0.0
  %4453 = vmatpush.msra.mxu0 0.0
  %4454 = vmatpush.msra.mxu0 0.0
  %4455 = vmatpush.msra.mxu0 0.0
  %4456 = vmatpush.msra.mxu0 %v3854
  %4457 = vmatpush.msra.mxu0 %v3838
  %4458 = vmatpush.msra.mxu0 %v3822
  %4459 = vmatpush.msra.mxu0 %v3806
  %4460 = vmatpush.msra.mxu0 %v3790
  %4461 = vmatpush.msra.mxu0 %v3774
  %4462 = vmatpush.msra.mxu0 %v3758
  %4463 = vmatpush.msra.mxu0 %v3742
  %4464 = vmatpush.msra.mxu0 %v3148
  %4465 = vmatmul.f32.gmra.mxu0 %v4007
  %v4466 = vpop.f32.mrf.mxu0
  %v4467 = vadd.f32 %v4444, %v4466
  %4468 = vmatmul.f32.gmra.mxu0 %v4010
  %v4469 = vpop.f32.mrf.mxu0
  %v4470 = vadd.f32 %v4447, %v4469
  %4471 = vdwg.mxu0
  %4472 = vmatpush.msra.mxu0 %v3083
  %4473 = vmatpush.msra.mxu0 %v3017
  %4474 = vmatpush.msra.mxu0 %v2950
  %4475 = vmatpush.msra.mxu0 %v2883
  %4476 = vmatpush.msra.mxu0 %v2817
  %4477 = vmatpush.msra.mxu0 %v2747
  %4478 = vmatpush.msra.mxu0 %v3348
  %4479 = vmatpush.msra.mxu0 %v3281
  %4480 = vmatpush.msra.mxu0 %v3214
  %4481 = vmatpush.msra.mxu0 %v3148
  %4482 = vmatpush.msra.mxu0 %v3082
  %4483 = vmatpush.msra.mxu0 %v3016
  %4484 = vmatpush.msra.mxu0 %v2949
  %4485 = vmatpush.msra.mxu0 %v2882
  %4486 = vmatpush.msra.mxu0 %v2816
  %4487 = vmatpush.msra.mxu0 %v2746
  %4488 = vmatmul.f32.gmra.mxu0 %v3990
  %v4489 = vpop.f32.mrf.mxu0
  %v4490 = vadd.f32 %v3999, %v4489
  %4491 = vmatmul.f32.gmra.mxu0 %v3992
  %v4492 = vpop.f32.mrf.mxu0
  %v4493 = vadd.f32 %v4004, %v4492
  %4494 = vdwg.mxu0
  %4495 = vmatpush.msra.mxu0 0.0
  %4496 = vmatpush.msra.mxu0 0.0
  %4497 = vmatpush.msra.mxu0 0.0
  %4498 = vmatpush.msra.mxu0 0.0
  %4499 = vmatpush.msra.mxu0 0.0
  %4500 = vmatpush.msra.mxu0 0.0
  %4501 = vmatpush.msra.mxu0 0.0
  %4502 = vmatpush.msra.mxu0 %v3855
  %4503 = vmatpush.msra.mxu0 %v3839
  %4504 = vmatpush.msra.mxu0 %v3823
  %4505 = vmatpush.msra.mxu0 %v3807
  %4506 = vmatpush.msra.mxu0 %v3791
  %4507 = vmatpush.msra.mxu0 %v3775
  %4508 = vmatpush.msra.mxu0 %v3759
  %4509 = vmatpush.msra.mxu0 %v3743
  %4510 = vmatpush.msra.mxu0 %v3149
  %4511 = vmatmul.f32.gmra.mxu0 %v4007
  %v4512 = vpop.f32.mrf.mxu0
  %v4513 = vadd.f32 %v4490, %v4512
  %4514 = vmatmul.f32.gmra.mxu0 %v4010
  %v4515 = vpop.f32.mrf.mxu0
  %v4516 = vadd.f32 %v4493, %v4515
  %4517 = vdwg.mxu0
  %4518 = vmatpush.msra.mxu0 %v3084
  %4519 = vmatpush.msra.mxu0 %v3018
  %4520 = vmatpush.msra.mxu0 %v2951
  %4521 = vmatpush.msra.mxu0 %v2884
  %4522 = vmatpush.msra.mxu0 %v2818
  %4523 = vmatpush.msra.mxu0 %v2748
  %4524 = vmatpush.msra.mxu0 %v3349
  %4525 = vmatpush.msra.mxu0 %v3282
  %4526 = vmatpush.msra.mxu0 %v3215
  %4527 = vmatpush.msra.mxu0 %v3149
  %4528 = vmatpush.msra.mxu0 %v3083
  %4529 = vmatpush.msra.mxu0 %v3017
  %4530 = vmatpush.msra.mxu0 %v2950
  %4531 = vmatpush.msra.mxu0 %v2883
  %4532 = vmatpush.msra.mxu0 %v2817
  %4533 = vmatpush.msra.mxu0 %v2747
  %4534 = vmatmul.f32.gmra.mxu0 %v3990
  %v4535 = vpop.f32.mrf.mxu0
  %v4536 = vadd.f32 %v3999, %v4535
  %4537 = vmatmul.f32.gmra.mxu0 %v3992
  %v4538 = vpop.f32.mrf.mxu0
  %v4539 = vadd.f32 %v4004, %v4538
  %4540 = vdwg.mxu0
  %4541 = vmatpush.msra.mxu0 0.0
  %4542 = vmatpush.msra.mxu0 0.0
  %4543 = vmatpush.msra.mxu0 0.0
  %4544 = vmatpush.msra.mxu0 0.0
  %4545 = vmatpush.msra.mxu0 0.0
  %4546 = vmatpush.msra.mxu0 0.0
  %4547 = vmatpush.msra.mxu0 0.0
  %4548 = vmatpush.msra.mxu0 %v3856
  %4549 = vmatpush.msra.mxu0 %v3840
  %4550 = vmatpush.msra.mxu0 %v3824
  %4551 = vmatpush.msra.mxu0 %v3808
  %4552 = vmatpush.msra.mxu0 %v3792
  %4553 = vmatpush.msra.mxu0 %v3776
  %4554 = vmatpush.msra.mxu0 %v3760
  %4555 = vmatpush.msra.mxu0 %v3744
  %4556 = vmatpush.msra.mxu0 %v3150
  %4557 = vmatmul.f32.gmra.mxu0 %v4007
  %v4558 = vpop.f32.mrf.mxu0
  %v4559 = vadd.f32 %v4536, %v4558
  %4560 = vmatmul.f32.gmra.mxu0 %v4010
  %v4561 = vpop.f32.mrf.mxu0
  %v4562 = vadd.f32 %v4539, %v4561
  %4563 = vdwg.mxu0
  %4564 = vmatpush.msra.mxu0 %v3085
  %4565 = vmatpush.msra.mxu0 %v3019
  %4566 = vmatpush.msra.mxu0 %v2952
  %4567 = vmatpush.msra.mxu0 %v2885
  %4568 = vmatpush.msra.mxu0 %v2819
  %4569 = vmatpush.msra.mxu0 %v2749
  %4570 = vmatpush.msra.mxu0 %v3350
  %4571 = vmatpush.msra.mxu0 %v3283
  %4572 = vmatpush.msra.mxu0 %v3216
  %4573 = vmatpush.msra.mxu0 %v3150
  %4574 = vmatpush.msra.mxu0 %v3084
  %4575 = vmatpush.msra.mxu0 %v3018
  %4576 = vmatpush.msra.mxu0 %v2951
  %4577 = vmatpush.msra.mxu0 %v2884
  %4578 = vmatpush.msra.mxu0 %v2818
  %4579 = vmatpush.msra.mxu0 %v2748
  %4580 = vmatmul.f32.gmra.mxu0 %v3990
  %v4581 = vpop.f32.mrf.mxu0
  %v4582 = vadd.f32 %v3999, %v4581
  %4583 = vmatmul.f32.gmra.mxu0 %v3992
  %v4584 = vpop.f32.mrf.mxu0
  %v4585 = vadd.f32 %v4004, %v4584
  %4586 = vdwg.mxu0
  %4587 = vmatpush.msra.mxu0 0.0
  %4588 = vmatpush.msra.mxu0 0.0
  %4589 = vmatpush.msra.mxu0 0.0
  %4590 = vmatpush.msra.mxu0 0.0
  %4591 = vmatpush.msra.mxu0 0.0
  %4592 = vmatpush.msra.mxu0 0.0
  %4593 = vmatpush.msra.mxu0 0.0
  %4594 = vmatpush.msra.mxu0 %v3857
  %4595 = vmatpush.msra.mxu0 %v3841
  %4596 = vmatpush.msra.mxu0 %v3825
  %4597 = vmatpush.msra.mxu0 %v3809
  %4598 = vmatpush.msra.mxu0 %v3793
  %4599 = vmatpush.msra.mxu0 %v3777
  %4600 = vmatpush.msra.mxu0 %v3761
  %4601 = vmatpush.msra.mxu0 %v3745
  %4602 = vmatpush.msra.mxu0 %v3151
  %4603 = vmatmul.f32.gmra.mxu0 %v4007
  %v4604 = vpop.f32.mrf.mxu0
  %v4605 = vadd.f32 %v4582, %v4604
  %4606 = vmatmul.f32.gmra.mxu0 %v4010
  %v4607 = vpop.f32.mrf.mxu0
  %v4608 = vadd.f32 %v4585, %v4607
  %4609 = vdwg.mxu0
  %4610 = vmatpush.msra.mxu0 %v3086
  %4611 = vmatpush.msra.mxu0 %v3020
  %4612 = vmatpush.msra.mxu0 %v2953
  %4613 = vmatpush.msra.mxu0 %v2886
  %4614 = vmatpush.msra.mxu0 %v2820
  %4615 = vmatpush.msra.mxu0 %v2750
  %4616 = vmatpush.msra.mxu0 %v3351
  %4617 = vmatpush.msra.mxu0 %v3284
  %4618 = vmatpush.msra.mxu0 %v3217
  %4619 = vmatpush.msra.mxu0 %v3151
  %4620 = vmatpush.msra.mxu0 %v3085
  %4621 = vmatpush.msra.mxu0 %v3019
  %4622 = vmatpush.msra.mxu0 %v2952
  %4623 = vmatpush.msra.mxu0 %v2885
  %4624 = vmatpush.msra.mxu0 %v2819
  %4625 = vmatpush.msra.mxu0 %v2749
  %4626 = vmatmul.f32.gmra.mxu0 %v3990
  %v4627 = vpop.f32.mrf.mxu0
  %v4628 = vadd.f32 %v3999, %v4627
  %4629 = vmatmul.f32.gmra.mxu0 %v3992
  %v4630 = vpop.f32.mrf.mxu0
  %v4631 = vadd.f32 %v4004, %v4630
  %4632 = vdwg.mxu0
  %4633 = vmatpush.msra.mxu0 0.0
  %4634 = vmatpush.msra.mxu0 0.0
  %4635 = vmatpush.msra.mxu0 0.0
  %4636 = vmatpush.msra.mxu0 0.0
  %4637 = vmatpush.msra.mxu0 0.0
  %4638 = vmatpush.msra.mxu0 0.0
  %4639 = vmatpush.msra.mxu0 0.0
  %4640 = vmatpush.msra.mxu0 %v3858
  %4641 = vmatpush.msra.mxu0 %v3842
  %4642 = vmatpush.msra.mxu0 %v3826
  %4643 = vmatpush.msra.mxu0 %v3810
  %4644 = vmatpush.msra.mxu0 %v3794
  %4645 = vmatpush.msra.mxu0 %v3778
  %4646 = vmatpush.msra.mxu0 %v3762
  %4647 = vmatpush.msra.mxu0 %v3746
  %4648 = vmatpush.msra.mxu0 %v3152
  %4649 = vmatmul.f32.gmra.mxu0 %v4007
  %v4650 = vpop.f32.mrf.mxu0
  %v4651 = vadd.f32 %v4628, %v4650
  %4652 = vmatmul.f32.gmra.mxu0 %v4010
  %v4653 = vpop.f32.mrf.mxu0
  %v4654 = vadd.f32 %v4631, %v4653
  %4655 = vdwg.mxu0
  %4656 = vmatpush.msra.mxu0 %v3087
  %4657 = vmatpush.msra.mxu0 %v3021
  %4658 = vmatpush.msra.mxu0 %v2954
  %4659 = vmatpush.msra.mxu0 %v2887
  %4660 = vmatpush.msra.mxu0 %v2821
  %4661 = vmatpush.msra.mxu0 %v2751
  %4662 = vmatpush.msra.mxu0 %v3352
  %4663 = vmatpush.msra.mxu0 %v3285
  %4664 = vmatpush.msra.mxu0 %v3218
  %4665 = vmatpush.msra.mxu0 %v3152
  %4666 = vmatpush.msra.mxu0 %v3086
  %4667 = vmatpush.msra.mxu0 %v3020
  %4668 = vmatpush.msra.mxu0 %v2953
  %4669 = vmatpush.msra.mxu0 %v2886
  %4670 = vmatpush.msra.mxu0 %v2820
  %4671 = vmatpush.msra.mxu0 %v2750
  %4672 = vmatmul.f32.gmra.mxu0 %v3990
  %v4673 = vpop.f32.mrf.mxu0
  %v4674 = vadd.f32 %v3999, %v4673
  %4675 = vmatmul.f32.gmra.mxu0 %v3992
  %v4676 = vpop.f32.mrf.mxu0
  %v4677 = vadd.f32 %v4004, %v4676
  %4678 = vdwg.mxu0
  %4679 = vmatpush.msra.mxu0 0.0
  %4680 = vmatpush.msra.mxu0 0.0
  %4681 = vmatpush.msra.mxu0 0.0
  %4682 = vmatpush.msra.mxu0 0.0
  %4683 = vmatpush.msra.mxu0 0.0
  %4684 = vmatpush.msra.mxu0 0.0
  %4685 = vmatpush.msra.mxu0 0.0
  %4686 = vmatpush.msra.mxu0 %v3859
  %4687 = vmatpush.msra.mxu0 %v3843
  %4688 = vmatpush.msra.mxu0 %v3827
  %4689 = vmatpush.msra.mxu0 %v3811
  %4690 = vmatpush.msra.mxu0 %v3795
  %4691 = vmatpush.msra.mxu0 %v3779
  %4692 = vmatpush.msra.mxu0 %v3763
  %4693 = vmatpush.msra.mxu0 %v3747
  %4694 = vmatpush.msra.mxu0 %v3153
  %4695 = vmatmul.f32.gmra.mxu0 %v4007
  %v4696 = vpop.f32.mrf.mxu0
  %v4697 = vadd.f32 %v4674, %v4696
  %4698 = vmatmul.f32.gmra.mxu0 %v4010
  %v4699 = vpop.f32.mrf.mxu0
  %v4700 = vadd.f32 %v4677, %v4699
  %4701 = vdwg.mxu0
  %4702 = vmatpush.msra.mxu0 %v3389
  %4703 = vmatpush.msra.mxu0 %v3385
  %4704 = vmatpush.msra.mxu0 %v3381
  %4705 = vmatpush.msra.mxu0 %v3377
  %4706 = vmatpush.msra.mxu0 %v3373
  %4707 = vmatpush.msra.mxu0 %v2752
  %4708 = vmatpush.msra.mxu0 %v3353
  %4709 = vmatpush.msra.mxu0 %v3286
  %4710 = vmatpush.msra.mxu0 %v3219
  %4711 = vmatpush.msra.mxu0 %v3153
  %4712 = vmatpush.msra.mxu0 %v3087
  %4713 = vmatpush.msra.mxu0 %v3021
  %4714 = vmatpush.msra.mxu0 %v2954
  %4715 = vmatpush.msra.mxu0 %v2887
  %4716 = vmatpush.msra.mxu0 %v2821
  %4717 = vmatpush.msra.mxu0 %v2751
  %4718 = vmatmul.f32.gmra.mxu0 %v3990
  %v4719 = vpop.f32.mrf.mxu0
  %v4720 = vadd.f32 %v3999, %v4719
  %4721 = vmatmul.f32.gmra.mxu0 %v3992
  %v4722 = vpop.f32.mrf.mxu0
  %v4723 = vadd.f32 %v4004, %v4722
  %4724 = vdwg.mxu0
  %4725 = vmatpush.msra.mxu0 0.0
  %4726 = vmatpush.msra.mxu0 0.0
  %4727 = vmatpush.msra.mxu0 0.0
  %4728 = vmatpush.msra.mxu0 0.0
  %4729 = vmatpush.msra.mxu0 0.0
  %4730 = vmatpush.msra.mxu0 0.0
  %4731 = vmatpush.msra.mxu0 0.0
  %4732 = vmatpush.msra.mxu0 %v3860
  %4733 = vmatpush.msra.mxu0 %v3844
  %4734 = vmatpush.msra.mxu0 %v3828
  %4735 = vmatpush.msra.mxu0 %v3812
  %4736 = vmatpush.msra.mxu0 %v3796
  %4737 = vmatpush.msra.mxu0 %v3780
  %4738 = vmatpush.msra.mxu0 %v3764
  %4739 = vmatpush.msra.mxu0 %v3748
  %4740 = vmatpush.msra.mxu0 %v3447
  %4741 = vmatmul.f32.gmra.mxu0 %v4007
  %v4742 = vpop.f32.mrf.mxu0
  %v4743 = vadd.f32 %v4720, %v4742
  %4744 = vmatmul.f32.gmra.mxu0 %v4010
  %v4745 = vpop.f32.mrf.mxu0
  %v4746 = vadd.f32 %v4723, %v4745
  %4747 = vdwg.mxu0
  %4748 = vst [vmem:[#allocation2] sm:$0xff] %v4053
  %4749 = vst [vmem:[#allocation2 + $0x8] sm:$0xff] %v4099
  %4750 = vst [vmem:[#allocation2 + $0x10] sm:$0xff] %v4145
  %4751 = vst [vmem:[#allocation2 + $0x18] sm:$0xff] %v4191
  %4752 = vst [vmem:[#allocation2 + $0x20] sm:$0xff] %v4237
  %4753 = vst [vmem:[#allocation2 + $0x28] sm:$0xff] %v4283
  %4754 = vst [vmem:[#allocation2 + $0x30] sm:$0xff] %v4329
  %4755 = vst [vmem:[#allocation2 + $0x38] sm:$0xff] %v4375
  %4756 = vst [vmem:[#allocation2 + $0x40] sm:$0xff] %v4421
  %4757 = vst [vmem:[#allocation2 + $0x48] sm:$0xff] %v4467
  %4758 = vst [vmem:[#allocation2 + $0x50] sm:$0xff] %v4513
  %4759 = vst [vmem:[#allocation2 + $0x58] sm:$0xff] %v4559
  %4760 = vst [vmem:[#allocation2 + $0x60] sm:$0xff] %v4605
  %4761 = vst [vmem:[#allocation2 + $0x68] sm:$0xff] %v4651
  %4762 = vst [vmem:[#allocation2 + $0x70] sm:$0xff] %v4697
  %4763 = vst [vmem:[#allocation2 + $0x78] sm:$0xff] %v4743
  %4764 = vst [vmem:[#allocation2 + $0x98] sm:$0xff] %v4056
  %4765 = vst [vmem:[#allocation2 + $0xa0] sm:$0xff] %v4102
  %4766 = vst [vmem:[#allocation2 + $0xa8] sm:$0xff] %v4148
  %4767 = vst [vmem:[#allocation2 + $0xb0] sm:$0xff] %v4194
  %4768 = vst [vmem:[#allocation2 + $0xb8] sm:$0xff] %v4240
  %4769 = vst [vmem:[#allocation2 + $0xc0] sm:$0xff] %v4286
  %4770 = vst [vmem:[#allocation2 + $0xc8] sm:$0xff] %v4332
  %4771 = vst [vmem:[#allocation2 + $0xd0] sm:$0xff] %v4378
  %4772 = vst [vmem:[#allocation2 + $0xd8] sm:$0xff] %v4424
  %4773 = vst [vmem:[#allocation2 + $0xe0] sm:$0xff] %v4470
  %4774 = vst [vmem:[#allocation2 + $0xe8] sm:$0xff] %v4516
  %4775 = vst [vmem:[#allocation2 + $0xf0] sm:$0xff] %v4562
  %4776 = vst [vmem:[#allocation2 + $0xf8] sm:$0xff] %v4608
  %4777 = vst [vmem:[#allocation2 + $0x100] sm:$0xff] %v4654
  %4778 = vst [vmem:[#allocation2 + $0x108] sm:$0xff] %v4700
  %4779 = vst [vmem:[#allocation2 + $0x110] sm:$0xff] %v4746
  %v4780 = vld [vmem:[#allocation2] sm:$0xff]
  %v4781 = vld [vmem:[#allocation2 + $0x8] sm:$0xff]
  %v4782 = vld [vmem:[#allocation2 + $0x10] sm:$0xff]
  %v4783 = vld [vmem:[#allocation2 + $0x18] sm:$0xff]
  %v4784 = vld [vmem:[#allocation2 + $0x20] sm:$0xff]
  %v4785 = vld [vmem:[#allocation2 + $0x28] sm:$0xff]
  %v4786 = vld [vmem:[#allocation2 + $0x40] sm:$0xff]
  %v4787 = vld [vmem:[#allocation2 + $0x48] sm:$0xff]
  %v4788 = vld [vmem:[#allocation2 + $0x50] sm:$0xff]
  %v4789 = vld [vmem:[#allocation2 + $0x58] sm:$0xff]
  %v4790 = vld [vmem:[#allocation2 + $0x60] sm:$0xff]
  %v4791 = vld [vmem:[#allocation2 + $0x68] sm:$0xff]
  %v4792 = vld [vmem:[#allocation2 + $0x98] sm:$0xff]
  %v4793 = vld [vmem:[#allocation2 + $0xa0] sm:$0xff]
  %v4794 = vld [vmem:[#allocation2 + $0xa8] sm:$0xff]
  %v4795 = vld [vmem:[#allocation2 + $0xb0] sm:$0xff]
  %v4796 = vld [vmem:[#allocation2 + $0xb8] sm:$0xff]
  %v4797 = vld [vmem:[#allocation2 + $0xc0] sm:$0xff]
  %v4798 = vld [vmem:[#allocation2 + $0xd8] sm:$0xff]
  %v4799 = vld [vmem:[#allocation2 + $0xe0] sm:$0xff]
  %v4800 = vld [vmem:[#allocation2 + $0xe8] sm:$0xff]
  %v4801 = vld [vmem:[#allocation2 + $0xf0] sm:$0xff]
  %v4802 = vld [vmem:[#allocation2 + $0xf8] sm:$0xff]
  %v4803 = vld [vmem:[#allocation2 + $0x100] sm:$0xff]
  %4828 = vrot.lane.b32.xlu0 %v4780, 126
  %v4829 = vpop.permute.xlu0 %4828
  %4830 = vrot.lane.b32.xlu0 %v4781, 126
  %v4831 = vpop.permute.xlu0 %4830
  %4832 = vrot.lane.b32.xlu0 %v4782, 126
  %v4833 = vpop.permute.xlu0 %4832
  %4834 = vrot.lane.b32.xlu0 %v4783, 126
  %v4835 = vpop.permute.xlu0 %4834
  %4836 = vrot.lane.b32.xlu0 %v4784, 126
  %v4837 = vpop.permute.xlu0 %4836
  %4838 = vrot.lane.b32.xlu0 %v4785, 126
  %v4839 = vpop.permute.xlu0 %4838
  %4840 = vrot.lane.b32.xlu0 %v4786, 126
  %v4841 = vpop.permute.xlu0 %4840
  %4842 = vrot.lane.b32.xlu0 %v4787, 126
  %v4843 = vpop.permute.xlu0 %4842
  %4844 = vrot.lane.b32.xlu0 %v4788, 126
  %v4845 = vpop.permute.xlu0 %4844
  %4846 = vrot.lane.b32.xlu0 %v4789, 126
  %v4847 = vpop.permute.xlu0 %4846
  %4848 = vrot.lane.b32.xlu0 %v4790, 126
  %v4849 = vpop.permute.xlu0 %4848
  %4850 = vrot.lane.b32.xlu0 %v4791, 126
  %v4851 = vpop.permute.xlu0 %4850
  %4852 = vrot.lane.b32.xlu0 %v4792, 126
  %v4853 = vpop.permute.xlu0 %4852
  %4854 = vrot.lane.b32.xlu0 %v4793, 126
  %v4855 = vpop.permute.xlu0 %4854
  %4856 = vrot.lane.b32.xlu0 %v4794, 126
  %v4857 = vpop.permute.xlu0 %4856
  %4858 = vrot.lane.b32.xlu0 %v4795, 126
  %v4859 = vpop.permute.xlu0 %4858
  %4860 = vrot.lane.b32.xlu0 %v4796, 126
  %v4861 = vpop.permute.xlu0 %4860
  %4862 = vrot.lane.b32.xlu0 %v4797, 126
  %v4863 = vpop.permute.xlu0 %4862
  %4864 = vrot.lane.b32.xlu0 %v4798, 126
  %v4865 = vpop.permute.xlu0 %4864
  %4866 = vrot.lane.b32.xlu0 %v4799, 126
  %v4867 = vpop.permute.xlu0 %4866
  %4868 = vrot.lane.b32.xlu0 %v4800, 126
  %v4869 = vpop.permute.xlu0 %4868
  %4870 = vrot.lane.b32.xlu0 %v4801, 126
  %v4871 = vpop.permute.xlu0 %4870
  %4872 = vrot.lane.b32.xlu0 %v4802, 126
  %v4873 = vpop.permute.xlu0 %4872
  %4874 = vrot.lane.b32.xlu0 %v4803, 126
  %v4875 = vpop.permute.xlu0 %4874
  %v4876 = vsel %vm212, %v4829, %v4831
  %v4877 = vsel %vm212, %v4831, %v4833
  %v4878 = vsel %vm212, %v4833, %v4835
  %v4879 = vsel %vm212, %v4835, %v4837
  %v4880 = vsel %vm212, %v4837, %v4839
  %v4881 = vsel %vm212, %v4841, %v4843
  %v4882 = vsel %vm212, %v4843, %v4845
  %v4883 = vsel %vm212, %v4845, %v4847
  %v4884 = vsel %vm212, %v4847, %v4849
  %v4885 = vsel %vm212, %v4849, %v4851
  %v4886 = vsel %vm212, %v4853, %v4855
  %v4887 = vsel %vm212, %v4855, %v4857
  %v4888 = vsel %vm212, %v4857, %v4859
  %v4889 = vsel %vm212, %v4859, %v4861
  %v4890 = vsel %vm212, %v4861, %v4863
  %v4891 = vsel %vm212, %v4865, %v4867
  %v4892 = vsel %vm212, %v4867, %v4869
  %v4893 = vsel %vm212, %v4869, %v4871
  %v4894 = vsel %vm212, %v4871, %v4873
  %v4895 = vsel %vm212, %v4873, %v4875
  %v4916 = vmax.f32 %v4780, %v4876
  %v4917 = vmax.f32 %v4781, %v4877
  %v4918 = vmax.f32 %v4782, %v4878
  %v4919 = vmax.f32 %v4783, %v4879
  %v4920 = vmax.f32 %v4784, %v4880
  %v4921 = vmax.f32 %v4786, %v4881
  %v4922 = vmax.f32 %v4787, %v4882
  %v4923 = vmax.f32 %v4788, %v4883
  %v4924 = vmax.f32 %v4789, %v4884
  %v4925 = vmax.f32 %v4790, %v4885
  %v4926 = vmax.f32 %v4792, %v4886
  %v4927 = vmax.f32 %v4793, %v4887
  %v4928 = vmax.f32 %v4794, %v4888
  %v4929 = vmax.f32 %v4795, %v4889
  %v4930 = vmax.f32 %v4796, %v4890
  %v4931 = vmax.f32 %v4798, %v4891
  %v4932 = vmax.f32 %v4799, %v4892
  %v4933 = vmax.f32 %v4800, %v4893
  %v4934 = vmax.f32 %v4801, %v4894
  %v4935 = vmax.f32 %v4802, %v4895
  %4936 = vrot.lane.b32.xlu0 %v4780, 64
  %v4937 = vpop.permute.xlu0 %4936
  %4938 = vrot.lane.b32.xlu0 %v4781, 64
  %v4939 = vpop.permute.xlu0 %4938
  %4940 = vrot.lane.b32.xlu0 %v4782, 64
  %v4941 = vpop.permute.xlu0 %4940
  %4942 = vrot.lane.b32.xlu0 %v4783, 64
  %v4943 = vpop.permute.xlu0 %4942
  %4944 = vrot.lane.b32.xlu0 %v4784, 64
  %v4945 = vpop.permute.xlu0 %4944
  %4946 = vrot.lane.b32.xlu0 %v4785, 64
  %v4947 = vpop.permute.xlu0 %4946
  %4948 = vrot.lane.b32.xlu0 %v4786, 64
  %v4949 = vpop.permute.xlu0 %4948
  %4950 = vrot.lane.b32.xlu0 %v4787, 64
  %v4951 = vpop.permute.xlu0 %4950
  %4952 = vrot.lane.b32.xlu0 %v4788, 64
  %v4953 = vpop.permute.xlu0 %4952
  %4954 = vrot.lane.b32.xlu0 %v4789, 64
  %v4955 = vpop.permute.xlu0 %4954
  %4956 = vrot.lane.b32.xlu0 %v4790, 64
  %v4957 = vpop.permute.xlu0 %4956
  %4958 = vrot.lane.b32.xlu0 %v4791, 64
  %v4959 = vpop.permute.xlu0 %4958
  %4960 = vrot.lane.b32.xlu0 %v4792, 64
  %v4961 = vpop.permute.xlu0 %4960
  %4962 = vrot.lane.b32.xlu0 %v4793, 64
  %v4963 = vpop.permute.xlu0 %4962
  %4964 = vrot.lane.b32.xlu0 %v4794, 64
  %v4965 = vpop.permute.xlu0 %4964
  %4966 = vrot.lane.b32.xlu0 %v4795, 64
  %v4967 = vpop.permute.xlu0 %4966
  %4968 = vrot.lane.b32.xlu0 %v4796, 64
  %v4969 = vpop.permute.xlu0 %4968
  %4970 = vrot.lane.b32.xlu0 %v4797, 64
  %v4971 = vpop.permute.xlu0 %4970
  %4972 = vrot.lane.b32.xlu0 %v4798, 64
  %v4973 = vpop.permute.xlu0 %4972
  %4974 = vrot.lane.b32.xlu0 %v4799, 64
  %v4975 = vpop.permute.xlu0 %4974
  %4976 = vrot.lane.b32.xlu0 %v4800, 64
  %v4977 = vpop.permute.xlu0 %4976
  %4978 = vrot.lane.b32.xlu0 %v4801, 64
  %v4979 = vpop.permute.xlu0 %4978
  %4980 = vrot.lane.b32.xlu0 %v4802, 64
  %v4981 = vpop.permute.xlu0 %4980
  %4982 = vrot.lane.b32.xlu0 %v4803, 64
  %v4983 = vpop.permute.xlu0 %4982
  %v4984 = vsel %vm748, %v4937, %v4939
  %v4985 = vsel %vm748, %v4939, %v4941
  %v4986 = vsel %vm748, %v4941, %v4943
  %v4987 = vsel %vm748, %v4943, %v4945
  %v4988 = vsel %vm748, %v4945, %v4947
  %v4989 = vsel %vm748, %v4949, %v4951
  %v4990 = vsel %vm748, %v4951, %v4953
  %v4991 = vsel %vm748, %v4953, %v4955
  %v4992 = vsel %vm748, %v4955, %v4957
  %v4993 = vsel %vm748, %v4957, %v4959
  %v4994 = vsel %vm748, %v4961, %v4963
  %v4995 = vsel %vm748, %v4963, %v4965
  %v4996 = vsel %vm748, %v4965, %v4967
  %v4997 = vsel %vm748, %v4967, %v4969
  %v4998 = vsel %vm748, %v4969, %v4971
  %v4999 = vsel %vm748, %v4973, %v4975
  %v5000 = vsel %vm748, %v4975, %v4977
  %v5001 = vsel %vm748, %v4977, %v4979
  %v5002 = vsel %vm748, %v4979, %v4981
  %v5003 = vsel %vm748, %v4981, %v4983
  %v5024 = vmax.f32 %v4916, %v4984
  %v5025 = vmax.f32 %v4917, %v4985
  %v5026 = vmax.f32 %v4918, %v4986
  %v5027 = vmax.f32 %v4919, %v4987
  %v5028 = vmax.f32 %v4920, %v4988
  %v5029 = vmax.f32 %v4921, %v4989
  %v5030 = vmax.f32 %v4922, %v4990
  %v5031 = vmax.f32 %v4923, %v4991
  %v5032 = vmax.f32 %v4924, %v4992
  %v5033 = vmax.f32 %v4925, %v4993
  %v5034 = vmax.f32 %v4926, %v4994
  %v5035 = vmax.f32 %v4927, %v4995
  %v5036 = vmax.f32 %v4928, %v4996
  %v5037 = vmax.f32 %v4929, %v4997
  %v5038 = vmax.f32 %v4930, %v4998
  %v5039 = vmax.f32 %v4931, %v4999
  %v5040 = vmax.f32 %v4932, %v5000
  %v5041 = vmax.f32 %v4933, %v5001
  %v5042 = vmax.f32 %v4934, %v5002
  %v5043 = vmax.f32 %v4935, %v5003
  %5044 = vrot.lane.b32.xlu0 %v4780, 62
  %v5045 = vpop.permute.xlu0 %5044
  %5046 = vrot.lane.b32.xlu0 %v4781, 62
  %v5047 = vpop.permute.xlu0 %5046
  %5048 = vrot.lane.b32.xlu0 %v4782, 62
  %v5049 = vpop.permute.xlu0 %5048
  %5050 = vrot.lane.b32.xlu0 %v4783, 62
  %v5051 = vpop.permute.xlu0 %5050
  %5052 = vrot.lane.b32.xlu0 %v4784, 62
  %v5053 = vpop.permute.xlu0 %5052
  %5054 = vrot.lane.b32.xlu0 %v4785, 62
  %v5055 = vpop.permute.xlu0 %5054
  %5056 = vrot.lane.b32.xlu0 %v4786, 62
  %v5057 = vpop.permute.xlu0 %5056
  %5058 = vrot.lane.b32.xlu0 %v4787, 62
  %v5059 = vpop.permute.xlu0 %5058
  %5060 = vrot.lane.b32.xlu0 %v4788, 62
  %v5061 = vpop.permute.xlu0 %5060
  %5062 = vrot.lane.b32.xlu0 %v4789, 62
  %v5063 = vpop.permute.xlu0 %5062
  %5064 = vrot.lane.b32.xlu0 %v4790, 62
  %v5065 = vpop.permute.xlu0 %5064
  %5066 = vrot.lane.b32.xlu0 %v4791, 62
  %v5067 = vpop.permute.xlu0 %5066
  %5068 = vrot.lane.b32.xlu0 %v4792, 62
  %v5069 = vpop.permute.xlu0 %5068
  %5070 = vrot.lane.b32.xlu0 %v4793, 62
  %v5071 = vpop.permute.xlu0 %5070
  %5072 = vrot.lane.b32.xlu0 %v4794, 62
  %v5073 = vpop.permute.xlu0 %5072
  %5074 = vrot.lane.b32.xlu0 %v4795, 62
  %v5075 = vpop.permute.xlu0 %5074
  %5076 = vrot.lane.b32.xlu0 %v4796, 62
  %v5077 = vpop.permute.xlu0 %5076
  %5078 = vrot.lane.b32.xlu0 %v4797, 62
  %v5079 = vpop.permute.xlu0 %5078
  %5080 = vrot.lane.b32.xlu0 %v4798, 62
  %v5081 = vpop.permute.xlu0 %5080
  %5082 = vrot.lane.b32.xlu0 %v4799, 62
  %v5083 = vpop.permute.xlu0 %5082
  %5084 = vrot.lane.b32.xlu0 %v4800, 62
  %v5085 = vpop.permute.xlu0 %5084
  %5086 = vrot.lane.b32.xlu0 %v4801, 62
  %v5087 = vpop.permute.xlu0 %5086
  %5088 = vrot.lane.b32.xlu0 %v4802, 62
  %v5089 = vpop.permute.xlu0 %5088
  %5090 = vrot.lane.b32.xlu0 %v4803, 62
  %v5091 = vpop.permute.xlu0 %5090
  %v5092 = vsel %vm882, %v5045, %v5047
  %v5093 = vsel %vm882, %v5047, %v5049
  %v5094 = vsel %vm882, %v5049, %v5051
  %v5095 = vsel %vm882, %v5051, %v5053
  %v5096 = vsel %vm882, %v5053, %v5055
  %v5097 = vsel %vm882, %v5057, %v5059
  %v5098 = vsel %vm882, %v5059, %v5061
  %v5099 = vsel %vm882, %v5061, %v5063
  %v5100 = vsel %vm882, %v5063, %v5065
  %v5101 = vsel %vm882, %v5065, %v5067
  %v5102 = vsel %vm882, %v5069, %v5071
  %v5103 = vsel %vm882, %v5071, %v5073
  %v5104 = vsel %vm882, %v5073, %v5075
  %v5105 = vsel %vm882, %v5075, %v5077
  %v5106 = vsel %vm882, %v5077, %v5079
  %v5107 = vsel %vm882, %v5081, %v5083
  %v5108 = vsel %vm882, %v5083, %v5085
  %v5109 = vsel %vm882, %v5085, %v5087
  %v5110 = vsel %vm882, %v5087, %v5089
  %v5111 = vsel %vm882, %v5089, %v5091
  %v5132 = vmax.f32 %v5024, %v5092
  %v5133 = vmax.f32 %v5025, %v5093
  %v5134 = vmax.f32 %v5026, %v5094
  %v5135 = vmax.f32 %v5027, %v5095
  %v5136 = vmax.f32 %v5028, %v5096
  %v5137 = vmax.f32 %v5029, %v5097
  %v5138 = vmax.f32 %v5030, %v5098
  %v5139 = vmax.f32 %v5031, %v5099
  %v5140 = vmax.f32 %v5032, %v5100
  %v5141 = vmax.f32 %v5033, %v5101
  %v5142 = vmax.f32 %v5034, %v5102
  %v5143 = vmax.f32 %v5035, %v5103
  %v5144 = vmax.f32 %v5036, %v5104
  %v5145 = vmax.f32 %v5037, %v5105
  %v5146 = vmax.f32 %v5038, %v5106
  %v5147 = vmax.f32 %v5039, %v5107
  %v5148 = vmax.f32 %v5040, %v5108
  %v5149 = vmax.f32 %v5041, %v5109
  %v5150 = vmax.f32 %v5042, %v5110
  %v5151 = vmax.f32 %v5043, %v5111
  %5154 = vrot.lane.b32.xlu0 %v5132, 124
  %v5155 = vpop.permute.xlu0 %5154
  %5156 = vrot.lane.b32.xlu0 %v5142, 124
  %v5157 = vpop.permute.xlu0 %5156
  %5160 = vrot.lane.b32.xlu0 %v5132, 120
  %v5161 = vpop.permute.xlu0 %5160
  %5162 = vrot.lane.b32.xlu0 %v5142, 120
  %v5163 = vpop.permute.xlu0 %5162
  %5166 = vrot.lane.b32.xlu0 %v5132, 116
  %v5167 = vpop.permute.xlu0 %5166
  %5168 = vrot.lane.b32.xlu0 %v5142, 116
  %v5169 = vpop.permute.xlu0 %5168
  %5172 = vrot.lane.b32.xlu0 %v5132, 112
  %v5173 = vpop.permute.xlu0 %5172
  %5174 = vrot.lane.b32.xlu0 %v5142, 112
  %v5175 = vpop.permute.xlu0 %5174
  %5180 = vrot.lane.b32.xlu0 %v5133, 124
  %v5181 = vpop.permute.xlu0 %5180
  %5182 = vrot.lane.b32.xlu0 %v5143, 124
  %v5183 = vpop.permute.xlu0 %5182
  %5186 = vrot.lane.b32.xlu0 %v5133, 120
  %v5187 = vpop.permute.xlu0 %5186
  %5188 = vrot.lane.b32.xlu0 %v5143, 120
  %v5189 = vpop.permute.xlu0 %5188
  %5192 = vrot.lane.b32.xlu0 %v5133, 116
  %v5193 = vpop.permute.xlu0 %5192
  %5194 = vrot.lane.b32.xlu0 %v5143, 116
  %v5195 = vpop.permute.xlu0 %5194
  %5198 = vrot.lane.b32.xlu0 %v5133, 112
  %v5199 = vpop.permute.xlu0 %5198
  %5200 = vrot.lane.b32.xlu0 %v5143, 112
  %v5201 = vpop.permute.xlu0 %5200
  %5206 = vrot.lane.b32.xlu0 %v5134, 124
  %v5207 = vpop.permute.xlu0 %5206
  %5208 = vrot.lane.b32.xlu0 %v5144, 124
  %v5209 = vpop.permute.xlu0 %5208
  %5212 = vrot.lane.b32.xlu0 %v5134, 120
  %v5213 = vpop.permute.xlu0 %5212
  %5214 = vrot.lane.b32.xlu0 %v5144, 120
  %v5215 = vpop.permute.xlu0 %5214
  %5218 = vrot.lane.b32.xlu0 %v5134, 116
  %v5219 = vpop.permute.xlu0 %5218
  %5220 = vrot.lane.b32.xlu0 %v5144, 116
  %v5221 = vpop.permute.xlu0 %5220
  %5224 = vrot.lane.b32.xlu0 %v5134, 112
  %v5225 = vpop.permute.xlu0 %5224
  %5226 = vrot.lane.b32.xlu0 %v5144, 112
  %v5227 = vpop.permute.xlu0 %5226
  %5232 = vrot.lane.b32.xlu0 %v5135, 124
  %v5233 = vpop.permute.xlu0 %5232
  %5234 = vrot.lane.b32.xlu0 %v5145, 124
  %v5235 = vpop.permute.xlu0 %5234
  %5236 = vrot.lane.b32.xlu0 %v5135, 120
  %v5237 = vpop.permute.xlu0 %5236
  %5238 = vrot.lane.b32.xlu0 %v5145, 120
  %v5239 = vpop.permute.xlu0 %5238
  %5240 = vrot.lane.b32.xlu0 %v5135, 116
  %v5241 = vpop.permute.xlu0 %5240
  %5242 = vrot.lane.b32.xlu0 %v5145, 116
  %v5243 = vpop.permute.xlu0 %5242
  %5246 = vrot.lane.b32.xlu0 %v5136, 4
  %v5247 = vpop.permute.xlu0 %5246
  %5248 = vrot.lane.b32.xlu0 %v5146, 4
  %v5249 = vpop.permute.xlu0 %5248
  %5250 = vrot.lane.b32.xlu0 %v5136, 124
  %v5251 = vpop.permute.xlu0 %5250
  %5252 = vrot.lane.b32.xlu0 %v5146, 124
  %v5253 = vpop.permute.xlu0 %5252
  %5254 = vrot.lane.b32.xlu0 %v5136, 120
  %v5255 = vpop.permute.xlu0 %5254
  %5256 = vrot.lane.b32.xlu0 %v5146, 120
  %v5257 = vpop.permute.xlu0 %5256
  %5258 = vrot.lane.b32.xlu0 %v5136, 116
  %v5259 = vpop.permute.xlu0 %5258
  %5260 = vrot.lane.b32.xlu0 %v5146, 116
  %v5261 = vpop.permute.xlu0 %5260
  %5262 = vrot.lane.b32.xlu0 %v5233, 124
  %v5263 = vpop.permute.xlu0 %5262
  %5264 = vrot.lane.b32.xlu0 %v5235, 124
  %v5265 = vpop.permute.xlu0 %5264
  %5266 = vrot.lane.b32.xlu0 %v5237, 124
  %v5267 = vpop.permute.xlu0 %5266
  %5268 = vrot.lane.b32.xlu0 %v5239, 124
  %v5269 = vpop.permute.xlu0 %5268
  %5270 = vrot.lane.b32.xlu0 %v5241, 124
  %v5271 = vpop.permute.xlu0 %5270
  %5272 = vrot.lane.b32.xlu0 %v5243, 124
  %v5273 = vpop.permute.xlu0 %5272
  %5274 = vrot.lane.b32.xlu0 %v5247, 124
  %v5275 = vpop.permute.xlu0 %5274
  %5276 = vrot.lane.b32.xlu0 %v5249, 124
  %v5277 = vpop.permute.xlu0 %5276
  %5278 = vrot.lane.b32.xlu0 %v5251, 124
  %v5279 = vpop.permute.xlu0 %5278
  %5280 = vrot.lane.b32.xlu0 %v5253, 124
  %v5281 = vpop.permute.xlu0 %5280
  %5282 = vrot.lane.b32.xlu0 %v5255, 124
  %v5283 = vpop.permute.xlu0 %5282
  %5284 = vrot.lane.b32.xlu0 %v5257, 124
  %v5285 = vpop.permute.xlu0 %5284
  %5286 = vrot.lane.b32.xlu0 %v5259, 124
  %v5287 = vpop.permute.xlu0 %5286
  %5288 = vrot.lane.b32.xlu0 %v5261, 124
  %v5289 = vpop.permute.xlu0 %5288
  %v5308 = vld [vmem:[%s5] sm:$0xff]
  %v5309 = vld [vmem:[%s5 + $0x8] sm:$0xff]
  %v5310 = vld [vmem:[%s5 + $0x10] sm:$0xff]
  %v5311 = vld [vmem:[%s5 + $0x18] sm:$0xff]
  %v5312 = vld [vmem:[%s5 + $0x20] sm:$0xff]
  %v5313 = vld [vmem:[%s5 + $0x28] sm:$0xff]
  %v5314 = vld [vmem:[%s5 + $0x30] sm:$0xff]
  %v5315 = vld [vmem:[%s5 + $0x38] sm:$0xff]
  %v5316 = vld [vmem:[%s5 + $0x40] sm:$0xff]
  %v5317 = vld [vmem:[%s5 + $0x48] sm:$0xff]
  %v5318 = vld [vmem:[%s5 + $0x50] sm:$0xff]
  %v5319 = vld [vmem:[%s5 + $0x58] sm:$0xff]
  %v5320 = vld [vmem:[%s5 + $0x60] sm:$0xff]
  %v5321 = vld [vmem:[%s5 + $0x68] sm:$0xff]
  %v5322 = vld [vmem:[%s5 + $0x70] sm:$0xff]
  %v5323 = vld [vmem:[%s5 + $0x78] sm:$0xff]
  %v5324 = vld [vmem:[%s5 + $0x80] sm:$0xff]
  %v5325 = vld [vmem:[%s5 + $0x88] sm:$0xff]
  %v5326 = vld [vmem:[%s5 + $0x90] sm:$0xff]
  %v5327 = vld [vmem:[%s5 + $0x98] sm:$0xff]
  %v5328 = vld [vmem:[%s5 + $0xa0] sm:$0xff]
  %v5329 = vld [vmem:[%s5 + $0xa8] sm:$0xff]
  %v5330 = vld [vmem:[%s5 + $0xb0] sm:$0xff]
  %v5331 = vld [vmem:[%s5 + $0xb8] sm:$0xff]
  %v5332 = vld [vmem:[%s5 + $0xc0] sm:$0xff]
  %v5333 = vld [vmem:[%s5 + $0xc8] sm:$0xff]
  %v5334 = vld [vmem:[%s5 + $0xd0] sm:$0xff]
  %v5335 = vld [vmem:[%s5 + $0xd8] sm:$0xff]
  %v5336 = vld [vmem:[%s5 + $0xe0] sm:$0xff]
  %v5337 = vld [vmem:[%s5 + $0xe8] sm:$0xff]
  %v5338 = vld [vmem:[%s5 + $0xf0] sm:$0xff]
  %v5339 = vld [vmem:[%s5 + $0xf8] sm:$0xff]
  %v5340 = vld [vmem:[%s5 + $0x100] sm:$0xff]
  %v5341 = vld [vmem:[%s5 + $0x108] sm:$0xff]
  %v5342 = vld [vmem:[%s5 + $0x110] sm:$0xff]
  %v5343 = vld [vmem:[%s5 + $0x118] sm:$0xff]
  %v5344 = vld [vmem:[%s5 + $0x120] sm:$0xff]
  %v5345 = vld [vmem:[%s5 + $0x128] sm:$0xff]
  %v5346 = vld [vmem:[%s5 + $0x130] sm:$0xff]
  %v5347 = vld [vmem:[%s5 + $0x138] sm:$0xff]
  %v5348 = vld [vmem:[%s5 + $0x140] sm:$0xff]
  %v5349 = vld [vmem:[%s5 + $0x148] sm:$0xff]
  %v5350 = vld [vmem:[%s5 + $0x150] sm:$0xff]
  %v5351 = vld [vmem:[%s5 + $0x158] sm:$0xff]
  %v5352 = vld [vmem:[%s5 + $0x160] sm:$0xff]
  %v5353 = vld [vmem:[%s5 + $0x168] sm:$0xff]
  %v5354 = vld [vmem:[%s5 + $0x170] sm:$0xff]
  %v5355 = vld [vmem:[%s5 + $0x178] sm:$0xff]
  %v5356 = vld [vmem:[%s5 + $0x180] sm:$0xff]
  %v5357 = vld [vmem:[%s5 + $0x188] sm:$0xff]
  %v5358 = vld [vmem:[%s5 + $0x190] sm:$0xff]
  %v5359 = vld [vmem:[%s5 + $0x198] sm:$0xff]
  %v5360 = vld [vmem:[%s5 + $0x1a0] sm:$0xff]
  %v5361 = vld [vmem:[%s5 + $0x1a8] sm:$0xff]
  %v5362 = vld [vmem:[%s5 + $0x1b0] sm:$0xff]
  %v5363 = vld [vmem:[%s5 + $0x1b8] sm:$0xff]
  %v5364 = vld [vmem:[%s5 + $0x1c0] sm:$0xff]
  %v5365 = vld [vmem:[%s5 + $0x1c8] sm:$0xff]
  %v5366 = vld [vmem:[%s5 + $0x1d0] sm:$0xff]
  %v5367 = vld [vmem:[%s5 + $0x1d8] sm:$0xff]
  %v5368 = vld [vmem:[%s6] sm:$0xff]
  %v5369 = vld [vmem:[%s6 + $0x8] sm:$0xff]
  %v5370 = vld [vmem:[%s6 + $0x10] sm:$0xff]
  %v5371 = vld [vmem:[%s6 + $0x18] sm:$0xff]
  %v5372 = vld [vmem:[%s6 + $0x20] sm:$0xff]
  %v5373 = vld [vmem:[%s6 + $0x28] sm:$0xff]
  %v5374 = vld [vmem:[%s6 + $0x30] sm:$0xff]
  %v5375 = vld [vmem:[%s6 + $0x38] sm:$0xff]
  %v5376 = vld [vmem:[%s6 + $0x40] sm:$0xff]
  %v5377 = vld [vmem:[%s6 + $0x48] sm:$0xff]
  %v5378 = vld [vmem:[%s6 + $0x50] sm:$0xff]
  %v5379 = vld [vmem:[%s6 + $0x58] sm:$0xff]
  %v5380 = vld [vmem:[%s6 + $0x60] sm:$0xff]
  %v5381 = vld [vmem:[%s6 + $0x68] sm:$0xff]
  %v5382 = vld [vmem:[%s6 + $0x70] sm:$0xff]
  %5384 = vset.pattern.permute.xlu0 0
  %5385 = vperm.xlu0 %5384, %v5368
  %v5386 = vpop.permute.xlu0 %5385
  %5389 = vset.pattern.permute.xlu0 0
  %5390 = vperm.xlu0 %5389, %v5369
  %v5391 = vpop.permute.xlu0 %5390
  %5394 = vset.pattern.permute.xlu0 0
  %5395 = vperm.xlu0 %5394, %v5370
  %v5396 = vpop.permute.xlu0 %5395
  %5399 = vset.pattern.permute.xlu0 0
  %5400 = vperm.xlu0 %5399, %v5371
  %v5401 = vpop.permute.xlu0 %5400
  %5404 = vset.pattern.permute.xlu0 0
  %5405 = vperm.xlu0 %5404, %v5372
  %v5406 = vpop.permute.xlu0 %5405
  %5409 = vset.pattern.permute.xlu0 0
  %5410 = vperm.xlu0 %5409, %v5373
  %v5411 = vpop.permute.xlu0 %5410
  %5414 = vset.pattern.permute.xlu0 0
  %5415 = vperm.xlu0 %5414, %v5374
  %v5416 = vpop.permute.xlu0 %5415
  %5419 = vset.pattern.permute.xlu0 0
  %5420 = vperm.xlu0 %5419, %v5375
  %v5421 = vpop.permute.xlu0 %5420
  %5424 = vset.pattern.permute.xlu0 0
  %5425 = vperm.xlu0 %5424, %v5376
  %v5426 = vpop.permute.xlu0 %5425
  %5429 = vset.pattern.permute.xlu0 0
  %5430 = vperm.xlu0 %5429, %v5377
  %v5431 = vpop.permute.xlu0 %5430
  %5434 = vset.pattern.permute.xlu0 0
  %5435 = vperm.xlu0 %5434, %v5378
  %v5436 = vpop.permute.xlu0 %5435
  %5439 = vset.pattern.permute.xlu0 0
  %5440 = vperm.xlu0 %5439, %v5379
  %v5441 = vpop.permute.xlu0 %5440
  %5444 = vset.pattern.permute.xlu0 0
  %5445 = vperm.xlu0 %5444, %v5380
  %v5446 = vpop.permute.xlu0 %5445
  %5449 = vset.pattern.permute.xlu0 0
  %5450 = vperm.xlu0 %5449, %v5381
  %v5451 = vpop.permute.xlu0 %5450
  %5454 = vset.pattern.permute.xlu0 0
  %5455 = vperm.xlu0 %5454, %v5382
  %v5456 = vpop.permute.xlu0 %5455
  %vm5458 = vcmask 130048
  %v5460 = vsel %vm5458, %v5311, 0
  %v5463 = vsel %vm5458, %v5315, 0
  %v5466 = vsel %vm5458, %v5319, 0
  %v5469 = vsel %vm5458, %v5323, 0
  %v5472 = vsel %vm5458, %v5327, 0
  %v5475 = vsel %vm5458, %v5331, 0
  %v5478 = vsel %vm5458, %v5335, 0
  %v5481 = vsel %vm5458, %v5339, 0
  %v5484 = vsel %vm5458, %v5343, 0
  %v5487 = vsel %vm5458, %v5347, 0
  %v5490 = vsel %vm5458, %v5351, 0
  %v5493 = vsel %vm5458, %v5355, 0
  %v5496 = vsel %vm5458, %v5359, 0
  %v5499 = vsel %vm5458, %v5363, 0
  %v5502 = vsel %vm5458, %v5367, 0
  %5504 = vmatpush.msra.mxu0 %v5189
  %5505 = vmatpush.msra.mxu0 %v5187
  %5506 = vmatpush.msra.mxu0 %v5183
  %5507 = vmatpush.msra.mxu0 %v5181
  %5508 = vmatpush.msra.mxu0 %v5143
  %5509 = vmatpush.msra.mxu0 %v5133
  %5510 = vmatpush.msra.mxu0 %v5175
  %5511 = vmatpush.msra.mxu0 %v5173
  %5512 = vmatpush.msra.mxu0 %v5169
  %5513 = vmatpush.msra.mxu0 %v5167
  %5514 = vmatpush.msra.mxu0 %v5163
  %5515 = vmatpush.msra.mxu0 %v5161
  %5516 = vmatpush.msra.mxu0 %v5157
  %5517 = vmatpush.msra.mxu0 %v5155
  %5518 = vmatpush.msra.mxu0 %v5142
  %5519 = vmatpush.msra.mxu0 %v5132
  %5520 = vmatmul.f32.gmra.mxu0 %v5308
  %v5521 = vpop.f32.mrf.mxu0
  %v5522 = vadd.f32 %v5386, %v5521
  %5523 = vmatmul.f32.gmra.mxu0 %v5312
  %v5524 = vpop.f32.mrf.mxu0
  %v5525 = vadd.f32 %v5391, %v5524
  %5526 = vmatmul.f32.gmra.mxu0 %v5316
  %v5527 = vpop.f32.mrf.mxu0
  %v5528 = vadd.f32 %v5396, %v5527
  %5529 = vmatmul.f32.gmra.mxu0 %v5320
  %v5530 = vpop.f32.mrf.mxu0
  %v5531 = vadd.f32 %v5401, %v5530
  %5532 = vmatmul.f32.gmra.mxu0 %v5324
  %v5533 = vpop.f32.mrf.mxu0
  %v5534 = vadd.f32 %v5406, %v5533
  %5535 = vmatmul.f32.gmra.mxu0 %v5328
  %v5536 = vpop.f32.mrf.mxu0
  %v5537 = vadd.f32 %v5411, %v5536
  %5538 = vmatmul.f32.gmra.mxu0 %v5332
  %v5539 = vpop.f32.mrf.mxu0
  %v5540 = vadd.f32 %v5416, %v5539
  %5541 = vmatmul.f32.gmra.mxu0 %v5336
  %v5542 = vpop.f32.mrf.mxu0
  %v5543 = vadd.f32 %v5421, %v5542
  %5544 = vmatmul.f32.gmra.mxu0 %v5340
  %v5545 = vpop.f32.mrf.mxu0
  %v5546 = vadd.f32 %v5426, %v5545
  %5547 = vmatmul.f32.gmra.mxu0 %v5344
  %v5548 = vpop.f32.mrf.mxu0
  %v5549 = vadd.f32 %v5431, %v5548
  %5550 = vmatmul.f32.gmra.mxu0 %v5348
  %v5551 = vpop.f32.mrf.mxu0
  %v5552 = vadd.f32 %v5436, %v5551
  %5553 = vmatmul.f32.gmra.mxu0 %v5352
  %v5554 = vpop.f32.mrf.mxu0
  %v5555 = vadd.f32 %v5441, %v5554
  %5556 = vmatmul.f32.gmra.mxu0 %v5356
  %v5557 = vpop.f32.mrf.mxu0
  %v5558 = vadd.f32 %v5446, %v5557
  %5559 = vmatmul.f32.gmra.mxu0 %v5360
  %v5560 = vpop.f32.mrf.mxu0
  %v5561 = vadd.f32 %v5451, %v5560
  %5562 = vmatmul.f32.gmra.mxu0 %v5364
  %v5563 = vpop.f32.mrf.mxu0
  %v5564 = vadd.f32 %v5456, %v5563
  %5565 = vdwg.mxu0
  %5566 = vmatpush.msra.mxu0 %v5145
  %5567 = vmatpush.msra.mxu0 %v5135
  %5568 = vmatpush.msra.mxu0 %v5227
  %5569 = vmatpush.msra.mxu0 %v5225
  %5570 = vmatpush.msra.mxu0 %v5221
  %5571 = vmatpush.msra.mxu0 %v5219
  %5572 = vmatpush.msra.mxu0 %v5215
  %5573 = vmatpush.msra.mxu0 %v5213
  %5574 = vmatpush.msra.mxu0 %v5209
  %5575 = vmatpush.msra.mxu0 %v5207
  %5576 = vmatpush.msra.mxu0 %v5144
  %5577 = vmatpush.msra.mxu0 %v5134
  %5578 = vmatpush.msra.mxu0 %v5201
  %5579 = vmatpush.msra.mxu0 %v5199
  %5580 = vmatpush.msra.mxu0 %v5195
  %5581 = vmatpush.msra.mxu0 %v5193
  %5582 = vmatmul.f32.gmra.mxu0 %v5309
  %v5583 = vpop.f32.mrf.mxu0
  %v5584 = vadd.f32 %v5522, %v5583
  %5585 = vmatmul.f32.gmra.mxu0 %v5313
  %v5586 = vpop.f32.mrf.mxu0
  %v5587 = vadd.f32 %v5525, %v5586
  %5588 = vmatmul.f32.gmra.mxu0 %v5317
  %v5589 = vpop.f32.mrf.mxu0
  %v5590 = vadd.f32 %v5528, %v5589
  %5591 = vmatmul.f32.gmra.mxu0 %v5321
  %v5592 = vpop.f32.mrf.mxu0
  %v5593 = vadd.f32 %v5531, %v5592
  %5594 = vmatmul.f32.gmra.mxu0 %v5325
  %v5595 = vpop.f32.mrf.mxu0
  %v5596 = vadd.f32 %v5534, %v5595
  %5597 = vmatmul.f32.gmra.mxu0 %v5329
  %v5598 = vpop.f32.mrf.mxu0
  %v5599 = vadd.f32 %v5537, %v5598
  %5600 = vmatmul.f32.gmra.mxu0 %v5333
  %v5601 = vpop.f32.mrf.mxu0
  %v5602 = vadd.f32 %v5540, %v5601
  %5603 = vmatmul.f32.gmra.mxu0 %v5337
  %v5604 = vpop.f32.mrf.mxu0
  %v5605 = vadd.f32 %v5543, %v5604
  %5606 = vmatmul.f32.gmra.mxu0 %v5341
  %v5607 = vpop.f32.mrf.mxu0
  %v5608 = vadd.f32 %v5546, %v5607
  %5609 = vmatmul.f32.gmra.mxu0 %v5345
  %v5610 = vpop.f32.mrf.mxu0
  %v5611 = vadd.f32 %v5549, %v5610
  %5612 = vmatmul.f32.gmra.mxu0 %v5349
  %v5613 = vpop.f32.mrf.mxu0
  %v5614 = vadd.f32 %v5552, %v5613
  %5615 = vmatmul.f32.gmra.mxu0 %v5353
  %v5616 = vpop.f32.mrf.mxu0
  %v5617 = vadd.f32 %v5555, %v5616
  %5618 = vmatmul.f32.gmra.mxu0 %v5357
  %v5619 = vpop.f32.mrf.mxu0
  %v5620 = vadd.f32 %v5558, %v5619
  %5621 = vmatmul.f32.gmra.mxu0 %v5361
  %v5622 = vpop.f32.mrf.mxu0
  %v5623 = vadd.f32 %v5561, %v5622
  %5624 = vmatmul.f32.gmra.mxu0 %v5365
  %v5625 = vpop.f32.mrf.mxu0
  %v5626 = vadd.f32 %v5564, %v5625
  %5627 = vdwg.mxu0
  %5628 = vmatpush.msra.mxu0 %v5285
  %5629 = vmatpush.msra.mxu0 %v5283
  %5630 = vmatpush.msra.mxu0 %v5281
  %5631 = vmatpush.msra.mxu0 %v5279
  %5632 = vmatpush.msra.mxu0 %v5253
  %5633 = vmatpush.msra.mxu0 %v5251
  %5634 = vmatpush.msra.mxu0 %v5277
  %5635 = vmatpush.msra.mxu0 %v5275
  %5636 = vmatpush.msra.mxu0 %v5273
  %5637 = vmatpush.msra.mxu0 %v5271
  %5638 = vmatpush.msra.mxu0 %v5269
  %5639 = vmatpush.msra.mxu0 %v5267
  %5640 = vmatpush.msra.mxu0 %v5265
  %5641 = vmatpush.msra.mxu0 %v5263
  %5642 = vmatpush.msra.mxu0 %v5235
  %5643 = vmatpush.msra.mxu0 %v5233
  %5644 = vmatmul.f32.gmra.mxu0 %v5310
  %v5645 = vpop.f32.mrf.mxu0
  %v5646 = vadd.f32 %v5584, %v5645
  %5647 = vmatmul.f32.gmra.mxu0 %v5314
  %v5648 = vpop.f32.mrf.mxu0
  %v5649 = vadd.f32 %v5587, %v5648
  %5650 = vmatmul.f32.gmra.mxu0 %v5318
  %v5651 = vpop.f32.mrf.mxu0
  %v5652 = vadd.f32 %v5590, %v5651
  %5653 = vmatmul.f32.gmra.mxu0 %v5322
  %v5654 = vpop.f32.mrf.mxu0
  %v5655 = vadd.f32 %v5593, %v5654
  %5656 = vmatmul.f32.gmra.mxu0 %v5326
  %v5657 = vpop.f32.mrf.mxu0
  %v5658 = vadd.f32 %v5596, %v5657
  %5659 = vmatmul.f32.gmra.mxu0 %v5330
  %v5660 = vpop.f32.mrf.mxu0
  %v5661 = vadd.f32 %v5599, %v5660
  %5662 = vmatmul.f32.gmra.mxu0 %v5334
  %v5663 = vpop.f32.mrf.mxu0
  %v5664 = vadd.f32 %v5602, %v5663
  %5665 = vmatmul.f32.gmra.mxu0 %v5338
  %v5666 = vpop.f32.mrf.mxu0
  %v5667 = vadd.f32 %v5605, %v5666
  %5668 = vmatmul.f32.gmra.mxu0 %v5342
  %v5669 = vpop.f32.mrf.mxu0
  %v5670 = vadd.f32 %v5608, %v5669
  %5671 = vmatmul.f32.gmra.mxu0 %v5346
  %v5672 = vpop.f32.mrf.mxu0
  %v5673 = vadd.f32 %v5611, %v5672
  %5674 = vmatmul.f32.gmra.mxu0 %v5350
  %v5675 = vpop.f32.mrf.mxu0
  %v5676 = vadd.f32 %v5614, %v5675
  %5677 = vmatmul.f32.gmra.mxu0 %v5354
  %v5678 = vpop.f32.mrf.mxu0
  %v5679 = vadd.f32 %v5617, %v5678
  %5680 = vmatmul.f32.gmra.mxu0 %v5358
  %v5681 = vpop.f32.mrf.mxu0
  %v5682 = vadd.f32 %v5620, %v5681
  %5683 = vmatmul.f32.gmra.mxu0 %v5362
  %v5684 = vpop.f32.mrf.mxu0
  %v5685 = vadd.f32 %v5623, %v5684
  %5686 = vmatmul.f32.gmra.mxu0 %v5366
  %v5687 = vpop.f32.mrf.mxu0
  %v5688 = vadd.f32 %v5626, %v5687
  %5689 = vdwg.mxu0
  %5690 = vmatpush.msra.mxu0 0.0
  %5691 = vmatpush.msra.mxu0 0.0
  %5692 = vmatpush.msra.mxu0 0.0
  %5693 = vmatpush.msra.mxu0 0.0
  %5694 = vmatpush.msra.mxu0 0.0
  %5695 = vmatpush.msra.mxu0 0.0
  %5696 = vmatpush.msra.mxu0 0.0
  %5697 = vmatpush.msra.mxu0 0.0
  %5698 = vmatpush.msra.mxu0 0.0
  %5699 = vmatpush.msra.mxu0 0.0
  %5700 = vmatpush.msra.mxu0 0.0
  %5701 = vmatpush.msra.mxu0 0.0
  %5702 = vmatpush.msra.mxu0 0.0
  %5703 = vmatpush.msra.mxu0 0.0
  %5704 = vmatpush.msra.mxu0 %v5289
  %5705 = vmatpush.msra.mxu0 %v5287
  %5706 = vmatmul.f32.gmra.mxu0 %v5460
  %v5707 = vpop.f32.mrf.mxu0
  %v5708 = vadd.f32 %v5646, %v5707
  %5709 = vmatmul.f32.gmra.mxu0 %v5463
  %v5710 = vpop.f32.mrf.mxu0
  %v5711 = vadd.f32 %v5649, %v5710
  %5712 = vmatmul.f32.gmra.mxu0 %v5466
  %v5713 = vpop.f32.mrf.mxu0
  %v5714 = vadd.f32 %v5652, %v5713
  %5715 = vmatmul.f32.gmra.mxu0 %v5469
  %v5716 = vpop.f32.mrf.mxu0
  %v5717 = vadd.f32 %v5655, %v5716
  %5718 = vmatmul.f32.gmra.mxu0 %v5472
  %v5719 = vpop.f32.mrf.mxu0
  %v5720 = vadd.f32 %v5658, %v5719
  %5721 = vmatmul.f32.gmra.mxu0 %v5475
  %v5722 = vpop.f32.mrf.mxu0
  %v5723 = vadd.f32 %v5661, %v5722
  %5724 = vmatmul.f32.gmra.mxu0 %v5478
  %v5725 = vpop.f32.mrf.mxu0
  %v5726 = vadd.f32 %v5664, %v5725
  %5727 = vmatmul.f32.gmra.mxu0 %v5481
  %v5728 = vpop.f32.mrf.mxu0
  %v5729 = vadd.f32 %v5667, %v5728
  %5730 = vmatmul.f32.gmra.mxu0 %v5484
  %v5731 = vpop.f32.mrf.mxu0
  %v5732 = vadd.f32 %v5670, %v5731
  %5733 = vmatmul.f32.gmra.mxu0 %v5487
  %v5734 = vpop.f32.mrf.mxu0
  %v5735 = vadd.f32 %v5673, %v5734
  %5736 = vmatmul.f32.gmra.mxu0 %v5490
  %v5737 = vpop.f32.mrf.mxu0
  %v5738 = vadd.f32 %v5676, %v5737
  %5739 = vmatmul.f32.gmra.mxu0 %v5493
  %v5740 = vpop.f32.mrf.mxu0
  %v5741 = vadd.f32 %v5679, %v5740
  %5742 = vmatmul.f32.gmra.mxu0 %v5496
  %v5743 = vpop.f32.mrf.mxu0
  %v5744 = vadd.f32 %v5682, %v5743
  %5745 = vmatmul.f32.gmra.mxu0 %v5499
  %v5746 = vpop.f32.mrf.mxu0
  %v5747 = vadd.f32 %v5685, %v5746
  %5748 = vmatmul.f32.gmra.mxu0 %v5502
  %v5749 = vpop.f32.mrf.mxu0
  %v5750 = vadd.f32 %v5688, %v5749
  %5751 = vdwg.mxu0
  %v5752 = vld [vmem:[%s7] sm:$0xff]
  %v5753 = vld [vmem:[%s7 + $0x8] sm:$0xff]
  %v5754 = vld [vmem:[%s7 + $0x10] sm:$0xff]
  %v5755 = vld [vmem:[%s7 + $0x18] sm:$0xff]
  %v5756 = vld [vmem:[%s7 + $0x20] sm:$0xff]
  %v5757 = vld [vmem:[%s7 + $0x28] sm:$0xff]
  %v5758 = vld [vmem:[%s7 + $0x30] sm:$0xff]
  %v5759 = vld [vmem:[%s7 + $0x38] sm:$0xff]
  %v5760 = vld [vmem:[%s7 + $0x40] sm:$0xff]
  %v5761 = vld [vmem:[%s7 + $0x48] sm:$0xff]
  %v5762 = vld [vmem:[%s7 + $0x50] sm:$0xf]
  %v5763 = vld [vmem:[%s8] sm:$0xff]
  %v5764 = vld [vmem:[%s8 + $0x8] sm:$0xff]
  %v5765 = vld [vmem:[%s8 + $0x10] sm:$0xff]
  %v5766 = vld [vmem:[%s8 + $0x18] sm:$0xff]
  %v5767 = vld [vmem:[%s8 + $0x20] sm:$0xff]
  %v5768 = vld [vmem:[%s8 + $0x28] sm:$0xff]
  %v5769 = vld [vmem:[%s8 + $0x30] sm:$0xff]
  %v5770 = vld [vmem:[%s8 + $0x38] sm:$0xff]
  %v5771 = vld [vmem:[%s8 + $0x40] sm:$0xff]
  %v5772 = vld [vmem:[%s8 + $0x48] sm:$0xff]
  %v5773 = vld [vmem:[%s8 + $0x50] sm:$0xf]
  %5775 = vset.pattern.permute.xlu0 0
  %5776 = vperm.xlu0 %5775, %v5763
  %v5777 = vpop.permute.xlu0 %5776
  %5780 = vset.pattern.permute.xlu0 0
  %5781 = vperm.xlu0 %5780, %v5764
  %v5782 = vpop.permute.xlu0 %5781
  %5785 = vset.pattern.permute.xlu0 0
  %5786 = vperm.xlu0 %5785, %v5765
  %v5787 = vpop.permute.xlu0 %5786
  %5790 = vset.pattern.permute.xlu0 0
  %5791 = vperm.xlu0 %5790, %v5766
  %v5792 = vpop.permute.xlu0 %5791
  %5795 = vset.pattern.permute.xlu0 0
  %5796 = vperm.xlu0 %5795, %v5767
  %v5797 = vpop.permute.xlu0 %5796
  %5800 = vset.pattern.permute.xlu0 0
  %5801 = vperm.xlu0 %5800, %v5768
  %v5802 = vpop.permute.xlu0 %5801
  %5805 = vset.pattern.permute.xlu0 0
  %5806 = vperm.xlu0 %5805, %v5769
  %v5807 = vpop.permute.xlu0 %5806
  %5810 = vset.pattern.permute.xlu0 0
  %5811 = vperm.xlu0 %5810, %v5770
  %v5812 = vpop.permute.xlu0 %5811
  %5815 = vset.pattern.permute.xlu0 0
  %5816 = vperm.xlu0 %5815, %v5771
  %v5817 = vpop.permute.xlu0 %5816
  %5820 = vset.pattern.permute.xlu0 0
  %5821 = vperm.xlu0 %5820, %v5772
  %v5822 = vpop.permute.xlu0 %5821
  %5825 = vset.pattern.permute.xlu0 0
  %5826 = vperm.xlu0 %5825, %v5773
  %v5827 = vpop.permute.xlu0 %5826
  %v5830 = vsel %vm3005, %v5752, 0
  %v5833 = vsel %vm3005, %v5753, 0
  %v5836 = vsel %vm3005, %v5754, 0
  %v5839 = vsel %vm3005, %v5755, 0
  %v5842 = vsel %vm3005, %v5756, 0
  %v5845 = vsel %vm3005, %v5757, 0
  %v5848 = vsel %vm3005, %v5758, 0
  %v5851 = vsel %vm3005, %v5759, 0
  %v5854 = vsel %vm3005, %v5760, 0
  %v5857 = vsel %vm3005, %v5761, 0
  %v5860 = vsel %vm3005, %v5762, 0
  %5862 = vmatpush.msra.mxu0 0.0
  %5863 = vmatpush.msra.mxu0 %v5750
  %5864 = vmatpush.msra.mxu0 %v5747
  %5865 = vmatpush.msra.mxu0 %v5744
  %5866 = vmatpush.msra.mxu0 %v5741
  %5867 = vmatpush.msra.mxu0 %v5738
  %5868 = vmatpush.msra.mxu0 %v5735
  %5869 = vmatpush.msra.mxu0 %v5732
  %5870 = vmatpush.msra.mxu0 %v5729
  %5871 = vmatpush.msra.mxu0 %v5726
  %5872 = vmatpush.msra.mxu0 %v5723
  %5873 = vmatpush.msra.mxu0 %v5720
  %5874 = vmatpush.msra.mxu0 %v5717
  %5875 = vmatpush.msra.mxu0 %v5714
  %5876 = vmatpush.msra.mxu0 %v5711
  %5877 = vmatpush.msra.mxu0 %v5708
  %5878 = vmatmul.f32.gmra.mxu0 %v5830
  %v5879 = vpop.f32.mrf.mxu0
  %v5880 = vadd.f32 %v5777, %v5879
  %5881 = vmatmul.f32.gmra.mxu0 %v5833
  %v5882 = vpop.f32.mrf.mxu0
  %v5883 = vadd.f32 %v5782, %v5882
  %5884 = vmatmul.f32.gmra.mxu0 %v5836
  %v5885 = vpop.f32.mrf.mxu0
  %v5886 = vadd.f32 %v5787, %v5885
  %5887 = vmatmul.f32.gmra.mxu0 %v5839
  %v5888 = vpop.f32.mrf.mxu0
  %v5889 = vadd.f32 %v5792, %v5888
  %5890 = vmatmul.f32.gmra.mxu0 %v5842
  %v5891 = vpop.f32.mrf.mxu0
  %v5892 = vadd.f32 %v5797, %v5891
  %5893 = vmatmul.f32.gmra.mxu0 %v5845
  %v5894 = vpop.f32.mrf.mxu0
  %v5895 = vadd.f32 %v5802, %v5894
  %5896 = vmatmul.f32.gmra.mxu0 %v5848
  %v5897 = vpop.f32.mrf.mxu0
  %v5898 = vadd.f32 %v5807, %v5897
  %5899 = vmatmul.f32.gmra.mxu0 %v5851
  %v5900 = vpop.f32.mrf.mxu0
  %v5901 = vadd.f32 %v5812, %v5900
  %5902 = vmatmul.f32.gmra.mxu0 %v5854
  %v5903 = vpop.f32.mrf.mxu0
  %v5904 = vadd.f32 %v5817, %v5903
  %5905 = vmatmul.f32.gmra.mxu0 %v5857
  %v5906 = vpop.f32.mrf.mxu0
  %v5907 = vadd.f32 %v5822, %v5906
  %5908 = vmatmul.f32.gmra.mxu0 %v5860
  %v5909 = vpop.f32.mrf.mxu0
  %v5910 = vadd.f32 %v5827, %v5909
  %5911 = vdwg.mxu0
  %v5912 = vld [vmem:[%s9] sm:$0xff]
  %v5913 = vld [vmem:[%s9 + $0x8] sm:$0xff]
  %v5914 = vld [vmem:[%s10] sm:$0xff]
  %v5915 = vld [vmem:[%s10 + $0x8] sm:$0xff]
  %5917 = vset.pattern.permute.xlu0 0
  %5918 = vperm.xlu0 %5917, %v5914
  %v5919 = vpop.permute.xlu0 %5918
  %5922 = vset.pattern.permute.xlu0 0
  %5923 = vperm.xlu0 %5922, %v5915
  %v5924 = vpop.permute.xlu0 %5923
  %vm5926 = vcmask 687104
  %v5928 = vsel %vm5926, %v5912, 0
  %v5931 = vsel %vm5926, %v5913, 0
  %vm5933 = vcmask 1043456
  %v5935 = vsel %vm5933, %v5910, 0
  %5937 = vmatpush.msra.mxu0 0.0
  %5938 = vmatpush.msra.mxu0 0.0
  %5939 = vmatpush.msra.mxu0 0.0
  %5940 = vmatpush.msra.mxu0 0.0
  %5941 = vmatpush.msra.mxu0 0.0
  %5942 = vmatpush.msra.mxu0 %v5935
  %5943 = vmatpush.msra.mxu0 %v5907
  %5944 = vmatpush.msra.mxu0 %v5904
  %5945 = vmatpush.msra.mxu0 %v5901
  %5946 = vmatpush.msra.mxu0 %v5898
  %5947 = vmatpush.msra.mxu0 %v5895
  %5948 = vmatpush.msra.mxu0 %v5892
  %5949 = vmatpush.msra.mxu0 %v5889
  %5950 = vmatpush.msra.mxu0 %v5886
  %5951 = vmatpush.msra.mxu0 %v5883
  %5952 = vmatpush.msra.mxu0 %v5880
  %5953 = vmatmul.f32.gmra.mxu0 %v5928
  %v5954 = vpop.f32.mrf.mxu0
  %v5955 = vadd.f32 %v5919, %v5954
  %5956 = vmatmul.f32.gmra.mxu0 %v5931
  %v5957 = vpop.f32.mrf.mxu0
  %v5958 = vadd.f32 %v5924, %v5957
  %5959 = vdwg.mxu0
  %5962 = vrot.lane.b32.xlu0 %v5137, 124
  %v5963 = vpop.permute.xlu0 %5962
  %5964 = vrot.lane.b32.xlu0 %v5147, 124
  %v5965 = vpop.permute.xlu0 %5964
  %5968 = vrot.lane.b32.xlu0 %v5137, 120
  %v5969 = vpop.permute.xlu0 %5968
  %5970 = vrot.lane.b32.xlu0 %v5147, 120
  %v5971 = vpop.permute.xlu0 %5970
  %5974 = vrot.lane.b32.xlu0 %v5137, 116
  %v5975 = vpop.permute.xlu0 %5974
  %5976 = vrot.lane.b32.xlu0 %v5147, 116
  %v5977 = vpop.permute.xlu0 %5976
  %5980 = vrot.lane.b32.xlu0 %v5137, 112
  %v5981 = vpop.permute.xlu0 %5980
  %5982 = vrot.lane.b32.xlu0 %v5147, 112
  %v5983 = vpop.permute.xlu0 %5982
  %5988 = vrot.lane.b32.xlu0 %v5138, 124
  %v5989 = vpop.permute.xlu0 %5988
  %5990 = vrot.lane.b32.xlu0 %v5148, 124
  %v5991 = vpop.permute.xlu0 %5990
  %5994 = vrot.lane.b32.xlu0 %v5138, 120
  %v5995 = vpop.permute.xlu0 %5994
  %5996 = vrot.lane.b32.xlu0 %v5148, 120
  %v5997 = vpop.permute.xlu0 %5996
  %6000 = vrot.lane.b32.xlu0 %v5138, 116
  %v6001 = vpop.permute.xlu0 %6000
  %6002 = vrot.lane.b32.xlu0 %v5148, 116
  %v6003 = vpop.permute.xlu0 %6002
  %6006 = vrot.lane.b32.xlu0 %v5138, 112
  %v6007 = vpop.permute.xlu0 %6006
  %6008 = vrot.lane.b32.xlu0 %v5148, 112
  %v6009 = vpop.permute.xlu0 %6008
  %6014 = vrot.lane.b32.xlu0 %v5139, 124
  %v6015 = vpop.permute.xlu0 %6014
  %6016 = vrot.lane.b32.xlu0 %v5149, 124
  %v6017 = vpop.permute.xlu0 %6016
  %6020 = vrot.lane.b32.xlu0 %v5139, 120
  %v6021 = vpop.permute.xlu0 %6020
  %6022 = vrot.lane.b32.xlu0 %v5149, 120
  %v6023 = vpop.permute.xlu0 %6022
  %6026 = vrot.lane.b32.xlu0 %v5139, 116
  %v6027 = vpop.permute.xlu0 %6026
  %6028 = vrot.lane.b32.xlu0 %v5149, 116
  %v6029 = vpop.permute.xlu0 %6028
  %6032 = vrot.lane.b32.xlu0 %v5139, 112
  %v6033 = vpop.permute.xlu0 %6032
  %6034 = vrot.lane.b32.xlu0 %v5149, 112
  %v6035 = vpop.permute.xlu0 %6034
  %6040 = vrot.lane.b32.xlu0 %v5140, 124
  %v6041 = vpop.permute.xlu0 %6040
  %6042 = vrot.lane.b32.xlu0 %v5150, 124
  %v6043 = vpop.permute.xlu0 %6042
  %6044 = vrot.lane.b32.xlu0 %v5140, 120
  %v6045 = vpop.permute.xlu0 %6044
  %6046 = vrot.lane.b32.xlu0 %v5150, 120
  %v6047 = vpop.permute.xlu0 %6046
  %6048 = vrot.lane.b32.xlu0 %v5140, 116
  %v6049 = vpop.permute.xlu0 %6048
  %6050 = vrot.lane.b32.xlu0 %v5150, 116
  %v6051 = vpop.permute.xlu0 %6050
  %6054 = vrot.lane.b32.xlu0 %v5141, 4
  %v6055 = vpop.permute.xlu0 %6054
  %6056 = vrot.lane.b32.xlu0 %v5151, 4
  %v6057 = vpop.permute.xlu0 %6056
  %6058 = vrot.lane.b32.xlu0 %v5141, 124
  %v6059 = vpop.permute.xlu0 %6058
  %6060 = vrot.lane.b32.xlu0 %v5151, 124
  %v6061 = vpop.permute.xlu0 %6060
  %6062 = vrot.lane.b32.xlu0 %v5141, 120
  %v6063 = vpop.permute.xlu0 %6062
  %6064 = vrot.lane.b32.xlu0 %v5151, 120
  %v6065 = vpop.permute.xlu0 %6064
  %6066 = vrot.lane.b32.xlu0 %v5141, 116
  %v6067 = vpop.permute.xlu0 %6066
  %6068 = vrot.lane.b32.xlu0 %v5151, 116
  %v6069 = vpop.permute.xlu0 %6068
  %6070 = vrot.lane.b32.xlu0 %v6041, 124
  %v6071 = vpop.permute.xlu0 %6070
  %6072 = vrot.lane.b32.xlu0 %v6043, 124
  %v6073 = vpop.permute.xlu0 %6072
  %6074 = vrot.lane.b32.xlu0 %v6045, 124
  %v6075 = vpop.permute.xlu0 %6074
  %6076 = vrot.lane.b32.xlu0 %v6047, 124
  %v6077 = vpop.permute.xlu0 %6076
  %6078 = vrot.lane.b32.xlu0 %v6049, 124
  %v6079 = vpop.permute.xlu0 %6078
  %6080 = vrot.lane.b32.xlu0 %v6051, 124
  %v6081 = vpop.permute.xlu0 %6080
  %6082 = vrot.lane.b32.xlu0 %v6055, 124
  %v6083 = vpop.permute.xlu0 %6082
  %6084 = vrot.lane.b32.xlu0 %v6057, 124
  %v6085 = vpop.permute.xlu0 %6084
  %6086 = vrot.lane.b32.xlu0 %v6059, 124
  %v6087 = vpop.permute.xlu0 %6086
  %6088 = vrot.lane.b32.xlu0 %v6061, 124
  %v6089 = vpop.permute.xlu0 %6088
  %6090 = vrot.lane.b32.xlu0 %v6063, 124
  %v6091 = vpop.permute.xlu0 %6090
  %6092 = vrot.lane.b32.xlu0 %v6065, 124
  %v6093 = vpop.permute.xlu0 %6092
  %6094 = vrot.lane.b32.xlu0 %v6067, 124
  %v6095 = vpop.permute.xlu0 %6094
  %6096 = vrot.lane.b32.xlu0 %v6069, 124
  %v6097 = vpop.permute.xlu0 %6096
  %6116 = vmatpush.msra.mxu0 %v5997
  %6117 = vmatpush.msra.mxu0 %v5995
  %6118 = vmatpush.msra.mxu0 %v5991
  %6119 = vmatpush.msra.mxu0 %v5989
  %6120 = vmatpush.msra.mxu0 %v5148
  %6121 = vmatpush.msra.mxu0 %v5138
  %6122 = vmatpush.msra.mxu0 %v5983
  %6123 = vmatpush.msra.mxu0 %v5981
  %6124 = vmatpush.msra.mxu0 %v5977
  %6125 = vmatpush.msra.mxu0 %v5975
  %6126 = vmatpush.msra.mxu0 %v5971
  %6127 = vmatpush.msra.mxu0 %v5969
  %6128 = vmatpush.msra.mxu0 %v5965
  %6129 = vmatpush.msra.mxu0 %v5963
  %6130 = vmatpush.msra.mxu0 %v5147
  %6131 = vmatpush.msra.mxu0 %v5137
  %6132 = vmatmul.f32.gmra.mxu0 %v5308
  %v6133 = vpop.f32.mrf.mxu0
  %v6134 = vadd.f32 %v5386, %v6133
  %6135 = vmatmul.f32.gmra.mxu0 %v5312
  %v6136 = vpop.f32.mrf.mxu0
  %v6137 = vadd.f32 %v5391, %v6136
  %6138 = vmatmul.f32.gmra.mxu0 %v5316
  %v6139 = vpop.f32.mrf.mxu0
  %v6140 = vadd.f32 %v5396, %v6139
  %6141 = vmatmul.f32.gmra.mxu0 %v5320
  %v6142 = vpop.f32.mrf.mxu0
  %v6143 = vadd.f32 %v5401, %v6142
  %6144 = vmatmul.f32.gmra.mxu0 %v5324
  %v6145 = vpop.f32.mrf.mxu0
  %v6146 = vadd.f32 %v5406, %v6145
  %6147 = vmatmul.f32.gmra.mxu0 %v5328
  %v6148 = vpop.f32.mrf.mxu0
  %v6149 = vadd.f32 %v5411, %v6148
  %6150 = vmatmul.f32.gmra.mxu0 %v5332
  %v6151 = vpop.f32.mrf.mxu0
  %v6152 = vadd.f32 %v5416, %v6151
  %6153 = vmatmul.f32.gmra.mxu0 %v5336
  %v6154 = vpop.f32.mrf.mxu0
  %v6155 = vadd.f32 %v5421, %v6154
  %6156 = vmatmul.f32.gmra.mxu0 %v5340
  %v6157 = vpop.f32.mrf.mxu0
  %v6158 = vadd.f32 %v5426, %v6157
  %6159 = vmatmul.f32.gmra.mxu0 %v5344
  %v6160 = vpop.f32.mrf.mxu0
  %v6161 = vadd.f32 %v5431, %v6160
  %6162 = vmatmul.f32.gmra.mxu0 %v5348
  %v6163 = vpop.f32.mrf.mxu0
  %v6164 = vadd.f32 %v5436, %v6163
  %6165 = vmatmul.f32.gmra.mxu0 %v5352
  %v6166 = vpop.f32.mrf.mxu0
  %v6167 = vadd.f32 %v5441, %v6166
  %6168 = vmatmul.f32.gmra.mxu0 %v5356
  %v6169 = vpop.f32.mrf.mxu0
  %v6170 = vadd.f32 %v5446, %v6169
  %6171 = vmatmul.f32.gmra.mxu0 %v5360
  %v6172 = vpop.f32.mrf.mxu0
  %v6173 = vadd.f32 %v5451, %v6172
  %6174 = vmatmul.f32.gmra.mxu0 %v5364
  %v6175 = vpop.f32.mrf.mxu0
  %v6176 = vadd.f32 %v5456, %v6175
  %6177 = vdwg.mxu0
  %6178 = vmatpush.msra.mxu0 %v5150
  %6179 = vmatpush.msra.mxu0 %v5140
  %6180 = vmatpush.msra.mxu0 %v6035
  %6181 = vmatpush.msra.mxu0 %v6033
  %6182 = vmatpush.msra.mxu0 %v6029
  %6183 = vmatpush.msra.mxu0 %v6027
  %6184 = vmatpush.msra.mxu0 %v6023
  %6185 = vmatpush.msra.mxu0 %v6021
  %6186 = vmatpush.msra.mxu0 %v6017
  %6187 = vmatpush.msra.mxu0 %v6015
  %6188 = vmatpush.msra.mxu0 %v5149
  %6189 = vmatpush.msra.mxu0 %v5139
  %6190 = vmatpush.msra.mxu0 %v6009
  %6191 = vmatpush.msra.mxu0 %v6007
  %6192 = vmatpush.msra.mxu0 %v6003
  %6193 = vmatpush.msra.mxu0 %v6001
  %6194 = vmatmul.f32.gmra.mxu0 %v5309
  %v6195 = vpop.f32.mrf.mxu0
  %v6196 = vadd.f32 %v6134, %v6195
  %6197 = vmatmul.f32.gmra.mxu0 %v5313
  %v6198 = vpop.f32.mrf.mxu0
  %v6199 = vadd.f32 %v6137, %v6198
  %6200 = vmatmul.f32.gmra.mxu0 %v5317
  %v6201 = vpop.f32.mrf.mxu0
  %v6202 = vadd.f32 %v6140, %v6201
  %6203 = vmatmul.f32.gmra.mxu0 %v5321
  %v6204 = vpop.f32.mrf.mxu0
  %v6205 = vadd.f32 %v6143, %v6204
  %6206 = vmatmul.f32.gmra.mxu0 %v5325
  %v6207 = vpop.f32.mrf.mxu0
  %v6208 = vadd.f32 %v6146, %v6207
  %6209 = vmatmul.f32.gmra.mxu0 %v5329
  %v6210 = vpop.f32.mrf.mxu0
  %v6211 = vadd.f32 %v6149, %v6210
  %6212 = vmatmul.f32.gmra.mxu0 %v5333
  %v6213 = vpop.f32.mrf.mxu0
  %v6214 = vadd.f32 %v6152, %v6213
  %6215 = vmatmul.f32.gmra.mxu0 %v5337
  %v6216 = vpop.f32.mrf.mxu0
  %v6217 = vadd.f32 %v6155, %v6216
  %6218 = vmatmul.f32.gmra.mxu0 %v5341
  %v6219 = vpop.f32.mrf.mxu0
  %v6220 = vadd.f32 %v6158, %v6219
  %6221 = vmatmul.f32.gmra.mxu0 %v5345
  %v6222 = vpop.f32.mrf.mxu0
  %v6223 = vadd.f32 %v6161, %v6222
  %6224 = vmatmul.f32.gmra.mxu0 %v5349
  %v6225 = vpop.f32.mrf.mxu0
  %v6226 = vadd.f32 %v6164, %v6225
  %6227 = vmatmul.f32.gmra.mxu0 %v5353
  %v6228 = vpop.f32.mrf.mxu0
  %v6229 = vadd.f32 %v6167, %v6228
  %6230 = vmatmul.f32.gmra.mxu0 %v5357
  %v6231 = vpop.f32.mrf.mxu0
  %v6232 = vadd.f32 %v6170, %v6231
  %6233 = vmatmul.f32.gmra.mxu0 %v5361
  %v6234 = vpop.f32.mrf.mxu0
  %v6235 = vadd.f32 %v6173, %v6234
  %6236 = vmatmul.f32.gmra.mxu0 %v5365
  %v6237 = vpop.f32.mrf.mxu0
  %v6238 = vadd.f32 %v6176, %v6237
  %6239 = vdwg.mxu0
  %6240 = vmatpush.msra.mxu0 %v6093
  %6241 = vmatpush.msra.mxu0 %v6091
  %6242 = vmatpush.msra.mxu0 %v6089
  %6243 = vmatpush.msra.mxu0 %v6087
  %6244 = vmatpush.msra.mxu0 %v6061
  %6245 = vmatpush.msra.mxu0 %v6059
  %6246 = vmatpush.msra.mxu0 %v6085
  %6247 = vmatpush.msra.mxu0 %v6083
  %6248 = vmatpush.msra.mxu0 %v6081
  %6249 = vmatpush.msra.mxu0 %v6079
  %6250 = vmatpush.msra.mxu0 %v6077
  %6251 = vmatpush.msra.mxu0 %v6075
  %6252 = vmatpush.msra.mxu0 %v6073
  %6253 = vmatpush.msra.mxu0 %v6071
  %6254 = vmatpush.msra.mxu0 %v6043
  %6255 = vmatpush.msra.mxu0 %v6041
  %6256 = vmatmul.f32.gmra.mxu0 %v5310
  %v6257 = vpop.f32.mrf.mxu0
  %v6258 = vadd.f32 %v6196, %v6257
  %6259 = vmatmul.f32.gmra.mxu0 %v5314
  %v6260 = vpop.f32.mrf.mxu0
  %v6261 = vadd.f32 %v6199, %v6260
  %6262 = vmatmul.f32.gmra.mxu0 %v5318
  %v6263 = vpop.f32.mrf.mxu0
  %v6264 = vadd.f32 %v6202, %v6263
  %6265 = vmatmul.f32.gmra.mxu0 %v5322
  %v6266 = vpop.f32.mrf.mxu0
  %v6267 = vadd.f32 %v6205, %v6266
  %6268 = vmatmul.f32.gmra.mxu0 %v5326
  %v6269 = vpop.f32.mrf.mxu0
  %v6270 = vadd.f32 %v6208, %v6269
  %6271 = vmatmul.f32.gmra.mxu0 %v5330
  %v6272 = vpop.f32.mrf.mxu0
  %v6273 = vadd.f32 %v6211, %v6272
  %6274 = vmatmul.f32.gmra.mxu0 %v5334
  %v6275 = vpop.f32.mrf.mxu0
  %v6276 = vadd.f32 %v6214, %v6275
  %6277 = vmatmul.f32.gmra.mxu0 %v5338
  %v6278 = vpop.f32.mrf.mxu0
  %v6279 = vadd.f32 %v6217, %v6278
  %6280 = vmatmul.f32.gmra.mxu0 %v5342
  %v6281 = vpop.f32.mrf.mxu0
  %v6282 = vadd.f32 %v6220, %v6281
  %6283 = vmatmul.f32.gmra.mxu0 %v5346
  %v6284 = vpop.f32.mrf.mxu0
  %v6285 = vadd.f32 %v6223, %v6284
  %6286 = vmatmul.f32.gmra.mxu0 %v5350
  %v6287 = vpop.f32.mrf.mxu0
  %v6288 = vadd.f32 %v6226, %v6287
  %6289 = vmatmul.f32.gmra.mxu0 %v5354
  %v6290 = vpop.f32.mrf.mxu0
  %v6291 = vadd.f32 %v6229, %v6290
  %6292 = vmatmul.f32.gmra.mxu0 %v5358
  %v6293 = vpop.f32.mrf.mxu0
  %v6294 = vadd.f32 %v6232, %v6293
  %6295 = vmatmul.f32.gmra.mxu0 %v5362
  %v6296 = vpop.f32.mrf.mxu0
  %v6297 = vadd.f32 %v6235, %v6296
  %6298 = vmatmul.f32.gmra.mxu0 %v5366
  %v6299 = vpop.f32.mrf.mxu0
  %v6300 = vadd.f32 %v6238, %v6299
  %6301 = vdwg.mxu0
  %6302 = vmatpush.msra.mxu0 0.0
  %6303 = vmatpush.msra.mxu0 0.0
  %6304 = vmatpush.msra.mxu0 0.0
  %6305 = vmatpush.msra.mxu0 0.0
  %6306 = vmatpush.msra.mxu0 0.0
  %6307 = vmatpush.msra.mxu0 0.0
  %6308 = vmatpush.msra.mxu0 0.0
  %6309 = vmatpush.msra.mxu0 0.0
  %6310 = vmatpush.msra.mxu0 0.0
  %6311 = vmatpush.msra.mxu0 0.0
  %6312 = vmatpush.msra.mxu0 0.0
  %6313 = vmatpush.msra.mxu0 0.0
  %6314 = vmatpush.msra.mxu0 0.0
  %6315 = vmatpush.msra.mxu0 0.0
  %6316 = vmatpush.msra.mxu0 %v6097
  %6317 = vmatpush.msra.mxu0 %v6095
  %6318 = vmatmul.f32.gmra.mxu0 %v5460
  %v6319 = vpop.f32.mrf.mxu0
  %v6320 = vadd.f32 %v6258, %v6319
  %6321 = vmatmul.f32.gmra.mxu0 %v5463
  %v6322 = vpop.f32.mrf.mxu0
  %v6323 = vadd.f32 %v6261, %v6322
  %6324 = vmatmul.f32.gmra.mxu0 %v5466
  %v6325 = vpop.f32.mrf.mxu0
  %v6326 = vadd.f32 %v6264, %v6325
  %6327 = vmatmul.f32.gmra.mxu0 %v5469
  %v6328 = vpop.f32.mrf.mxu0
  %v6329 = vadd.f32 %v6267, %v6328
  %6330 = vmatmul.f32.gmra.mxu0 %v5472
  %v6331 = vpop.f32.mrf.mxu0
  %v6332 = vadd.f32 %v6270, %v6331
  %6333 = vmatmul.f32.gmra.mxu0 %v5475
  %v6334 = vpop.f32.mrf.mxu0
  %v6335 = vadd.f32 %v6273, %v6334
  %6336 = vmatmul.f32.gmra.mxu0 %v5478
  %v6337 = vpop.f32.mrf.mxu0
  %v6338 = vadd.f32 %v6276, %v6337
  %6339 = vmatmul.f32.gmra.mxu0 %v5481
  %v6340 = vpop.f32.mrf.mxu0
  %v6341 = vadd.f32 %v6279, %v6340
  %6342 = vmatmul.f32.gmra.mxu0 %v5484
  %v6343 = vpop.f32.mrf.mxu0
  %v6344 = vadd.f32 %v6282, %v6343
  %6345 = vmatmul.f32.gmra.mxu0 %v5487
  %v6346 = vpop.f32.mrf.mxu0
  %v6347 = vadd.f32 %v6285, %v6346
  %6348 = vmatmul.f32.gmra.mxu0 %v5490
  %v6349 = vpop.f32.mrf.mxu0
  %v6350 = vadd.f32 %v6288, %v6349
  %6351 = vmatmul.f32.gmra.mxu0 %v5493
  %v6352 = vpop.f32.mrf.mxu0
  %v6353 = vadd.f32 %v6291, %v6352
  %6354 = vmatmul.f32.gmra.mxu0 %v5496
  %v6355 = vpop.f32.mrf.mxu0
  %v6356 = vadd.f32 %v6294, %v6355
  %6357 = vmatmul.f32.gmra.mxu0 %v5499
  %v6358 = vpop.f32.mrf.mxu0
  %v6359 = vadd.f32 %v6297, %v6358
  %6360 = vmatmul.f32.gmra.mxu0 %v5502
  %v6361 = vpop.f32.mrf.mxu0
  %v6362 = vadd.f32 %v6300, %v6361
  %6363 = vdwg.mxu0
  %6364 = vmatpush.msra.mxu0 0.0
  %6365 = vmatpush.msra.mxu0 %v6362
  %6366 = vmatpush.msra.mxu0 %v6359
  %6367 = vmatpush.msra.mxu0 %v6356
  %6368 = vmatpush.msra.mxu0 %v6353
  %6369 = vmatpush.msra.mxu0 %v6350
  %6370 = vmatpush.msra.mxu0 %v6347
  %6371 = vmatpush.msra.mxu0 %v6344
  %6372 = vmatpush.msra.mxu0 %v6341
  %6373 = vmatpush.msra.mxu0 %v6338
  %6374 = vmatpush.msra.mxu0 %v6335
  %6375 = vmatpush.msra.mxu0 %v6332
  %6376 = vmatpush.msra.mxu0 %v6329
  %6377 = vmatpush.msra.mxu0 %v6326
  %6378 = vmatpush.msra.mxu0 %v6323
  %6379 = vmatpush.msra.mxu0 %v6320
  %6380 = vmatmul.f32.gmra.mxu0 %v5830
  %v6381 = vpop.f32.mrf.mxu0
  %v6382 = vadd.f32 %v5777, %v6381
  %6383 = vmatmul.f32.gmra.mxu0 %v5833
  %v6384 = vpop.f32.mrf.mxu0
  %v6385 = vadd.f32 %v5782, %v6384
  %6386 = vmatmul.f32.gmra.mxu0 %v5836
  %v6387 = vpop.f32.mrf.mxu0
  %v6388 = vadd.f32 %v5787, %v6387
  %6389 = vmatmul.f32.gmra.mxu0 %v5839
  %v6390 = vpop.f32.mrf.mxu0
  %v6391 = vadd.f32 %v5792, %v6390
  %6392 = vmatmul.f32.gmra.mxu0 %v5842
  %v6393 = vpop.f32.mrf.mxu0
  %v6394 = vadd.f32 %v5797, %v6393
  %6395 = vmatmul.f32.gmra.mxu0 %v5845
  %v6396 = vpop.f32.mrf.mxu0
  %v6397 = vadd.f32 %v5802, %v6396
  %6398 = vmatmul.f32.gmra.mxu0 %v5848
  %v6399 = vpop.f32.mrf.mxu0
  %v6400 = vadd.f32 %v5807, %v6399
  %6401 = vmatmul.f32.gmra.mxu0 %v5851
  %v6402 = vpop.f32.mrf.mxu0
  %v6403 = vadd.f32 %v5812, %v6402
  %6404 = vmatmul.f32.gmra.mxu0 %v5854
  %v6405 = vpop.f32.mrf.mxu0
  %v6406 = vadd.f32 %v5817, %v6405
  %6407 = vmatmul.f32.gmra.mxu0 %v5857
  %v6408 = vpop.f32.mrf.mxu0
  %v6409 = vadd.f32 %v5822, %v6408
  %6410 = vmatmul.f32.gmra.mxu0 %v5860
  %v6411 = vpop.f32.mrf.mxu0
  %v6412 = vadd.f32 %v5827, %v6411
  %6413 = vdwg.mxu0
  %v6415 = vsel %vm5933, %v6412, 0
  %6417 = vmatpush.msra.mxu0 0.0
  %6418 = vmatpush.msra.mxu0 0.0
  %6419 = vmatpush.msra.mxu0 0.0
  %6420 = vmatpush.msra.mxu0 0.0
  %6421 = vmatpush.msra.mxu0 0.0
  %6422 = vmatpush.msra.mxu0 %v6415
  %6423 = vmatpush.msra.mxu0 %v6409
  %6424 = vmatpush.msra.mxu0 %v6406
  %6425 = vmatpush.msra.mxu0 %v6403
  %6426 = vmatpush.msra.mxu0 %v6400
  %6427 = vmatpush.msra.mxu0 %v6397
  %6428 = vmatpush.msra.mxu0 %v6394
  %6429 = vmatpush.msra.mxu0 %v6391
  %6430 = vmatpush.msra.mxu0 %v6388
  %6431 = vmatpush.msra.mxu0 %v6385
  %6432 = vmatpush.msra.mxu0 %v6382
  %6433 = vmatmul.f32.gmra.mxu0 %v5928
  %v6434 = vpop.f32.mrf.mxu0
  %v6435 = vadd.f32 %v5919, %v6434
  %6436 = vmatmul.f32.gmra.mxu0 %v5931
  %v6437 = vpop.f32.mrf.mxu0
  %v6438 = vadd.f32 %v5924, %v6437
  %6439 = vdwg.mxu0
  %vm6440 = vcmask 64512
  %6441 = vst.msk [vmem:[%s11] sm:$0xff] %vm6440, %v5955
  %6442 = vst.msk [vmem:[%s11 + $0x8] sm:$0xff] %vm6440, %v5958
  %6443 = vst.msk [vmem:[%s11 + $0x10] sm:$0xff] %vm6440, %v6435
  %6444 = vst.msk [vmem:[%s11 + $0x18] sm:$0xff] %vm6440, %v6438
  // Predicated region
  $region46: #{forward_pallas.1} parent=0 // pred_check
    _
  $region47: #{forward_pallas.1} parent=0 // pred_check_branch
    %6446 = sbr.rel (0) target = $region49
  $region48: #{forward_pallas.1} parent=0 // pred_region
    _
  $region49: #{forward_pallas.1} parent=0 // pred_fallthru
    _
  // Predicated region
  $region50: #{forward_pallas.1} parent=0 // pred_check
    _
  $region51: #{forward_pallas.1} parent=0 // pred_check_branch
    %6448 = sbr.rel (0) target = $region53
  $region52: #{forward_pallas.1} parent=0 // pred_region
    _
  $region53: #{forward_pallas.1} parent=0 // pred_fallthru
    _

</llo_original>
